<compile_context>
chip_gen: v6e
topology: v6e:2x2x1
jax: 0.10.0
libtpu: 0.0.40
codegen_flags: <defaults>
</compile_context>

<pallas_src>
import functools

import jax
import jax.numpy as jnp
from jax.experimental import pallas as pl
from jax.experimental.pallas import tpu as pltpu

INPUT_SIZE = 16
HIDDEN_SIZE = 50    # forward() hardcodes h_0/c_0 with hidden size 50
HIDDEN_PAD = 64     # padded hidden so the fused gate slab is 4*64 = 256 lanes
NUM_LAYERS = 2      # forward() hardcodes h_0/c_0 with 2 layers
BATCH = 2
BATCH_PAD = 8       # padded batch = one full sublane tile
SEQ = 8


def _hazard_lstm_kernel(x_ref, wih0_ref, whh0_ref, b0_ref,
                        wih1_ref, whh1_ref, b1_ref,
                        fcw_ref, fcb_ref, out_ref, *, seq, bp):
    """2-layer LSTM recurrence + final FC, fully resident in VMEM."""
    HP = whh0_ref.shape[0]          # padded hidden size (64)
    G = 4 * HP                      # fused gate width (256)

    # Hoist recurrent weights and the bias broadcast out of the time loop.
    whh0 = whh0_ref[...]
    wih1 = wih1_ref[...]
    whh1 = whh1_ref[...]
    b1 = jnp.broadcast_to(b1_ref[...], (bp, G))

    # Layer-0 input projection (+ bias) for every timestep in one matmul,
    # off the serial recurrence path:  (T*BP, D) @ (D, 4*HP).
    xw = jnp.dot(x_ref[...], wih0_ref[...],
                 preferred_element_type=jnp.float32) + b0_ref[...]

    def gates(z, c):
        # Lane layout of z: [ i | f | o | g ], each HP lanes wide.
        s = jax.nn.sigmoid(z[:, :3 * HP])      # one EUP slab: i, f, o
        g = jnp.tanh(z[:, 3 * HP:])            # one EUP slab: g
        i = s[:, :HP]
        f = s[:, HP:2 * HP]
        o = s[:, 2 * HP:3 * HP]
        c_new = f * c + i * g
        h_new = o * jnp.tanh(c_new)
        return h_new, c_new

    zeros = jnp.zeros((bp, HP), jnp.float32)
    h0, c0, h1, c1 = zeros, zeros, zeros, zeros

    # T is small and static -> full unroll keeps MXU/EUP latencies overlapped.
    for t in range(seq):
        # Sublane-aligned (BP, 4HP) slab of the precomputed input projection.
        z0 = xw[t * bp:(t + 1) * bp, :] + jnp.dot(
            h0, whh0, preferred_element_type=jnp.float32)
        h0, c0 = gates(z0, c0)
        # h1 @ whh1 depends only on the previous step, so the scheduler can
        # overlap it with layer-0 above; keep it as a separate dot.
        z1 = (jnp.dot(h0, wih1, preferred_element_type=jnp.float32)
              + jnp.dot(h1, whh1, preferred_element_type=jnp.float32)
              + b1)
        h1, c1 = gates(z1, c1)

    # fc(out[:, -1, :]) -> (BP, 1); padded rows of fcw are zero, padded batch
    # rows are discarded by the wrapper.
    out_ref[...] = (jnp.dot(h1, fcw_ref[...],
                            preferred_element_type=jnp.float32)
                    + fcb_ref[...]).astype(out_ref.dtype)


def hazard_lstm_forward(x, p):
    """x: (B, T, D) float32 (batch_first, like the PyTorch module)."""
    B, T, D = x.shape
    BP = BATCH_PAD
    # Time-major, batch zero-padded to a full 8-sublane tile, then flattened
    # so the kernel does one (T*BP, D) input matmul and every per-step slice
    # lands on a vreg sublane boundary.
    x_tm = jnp.transpose(x, (1, 0, 2))                      # (T, B, D)
    x_tm = jnp.pad(x_tm, ((0, 0), (0, BP - B), (0, 0)))     # (T, BP, D)
    x_tm = x_tm.reshape(T * BP, D)

    vmem = pl.BlockSpec(memory_space=pltpu.MemorySpace.VMEM)
    kernel = functools.partial(_hazard_lstm_kernel, seq=T, bp=BP)
    out = pl.pallas_call(
        kernel,
        out_shape=jax.ShapeDtypeStruct((BP, 1), jnp.float32),
        in_specs=[vmem] * 9,
        out_specs=vmem,
    )(x_tm, p["wih0"], p["whh0"], p["b0"],
      p["wih1"], p["whh1"], p["b1"], p["fcw"], p["fcb"])
    return out[:B]


# ----------------------------- parameter packing -----------------------------

def _pack_gate_matrix(w, H, HP):
    """PyTorch (4H, in) gate-major weight -> (in, 4*HP) right-multiply form,
    gate blocks reordered (i,f,g,o) -> (i,f,o,g), each zero-padded H -> HP."""
    wt = w.T                                            # (in, 4H), cols i|f|g|o
    wi, wf, wg, wo = jnp.split(wt, 4, axis=1)
    pad = ((0, 0), (0, HP - H))
    return jnp.concatenate(
        [jnp.pad(wi, pad), jnp.pad(wf, pad), jnp.pad(wo, pad), jnp.pad(wg, pad)],
        axis=1)


def _pack_gate_bias(b, H, HP):
    bi, bf, bg, bo = jnp.split(b, 4)
    pad = (0, HP - H)
    return jnp.concatenate(
        [jnp.pad(bi, pad), jnp.pad(bf, pad), jnp.pad(bo, pad), jnp.pad(bg, pad)]
    ).reshape(1, 4 * HP)


def _pad_rows(w, rows):
    return jnp.pad(w, ((0, rows - w.shape[0]), (0, 0)))


def init_params(key):
    """PyTorch-style raw params (uniform(-1/sqrt(H), 1/sqrt(H))) plus the
    fused / padded layout the kernel consumes."""
    H, D, HP = HIDDEN_SIZE, INPUT_SIZE, HIDDEN_PAD
    bound = 1.0 / (H ** 0.5)
    ks = jax.random.split(key, 10)

    def u(k, shape):
        return jax.random.uniform(k, shape, jnp.float32, -bound, bound)

    raw = {
        "w_ih_l0": u(ks[0], (4 * H, D)),
        "w_hh_l0": u(ks[1], (4 * H, H)),
        "b_ih_l0": u(ks[2], (4 * H,)),
        "b_hh_l0": u(ks[3], (4 * H,)),
        "w_ih_l1": u(ks[4], (4 * H, H)),
        "w_hh_l1": u(ks[5], (4 * H, H)),
        "b_ih_l1": u(ks[6], (4 * H,)),
        "b_hh_l1": u(ks[7], (4 * H,)),
        "fc_w": u(ks[8], (1, H)),
        "fc_b": u(ks[9], (1,)),
    }

    packed = {
        "wih0": _pack_gate_matrix(raw["w_ih_l0"], H, HP),                 # (D, 4HP)
        "whh0": _pad_rows(_pack_gate_matrix(raw["w_hh_l0"], H, HP), HP),  # (HP, 4HP)
        "b0": _pack_gate_bias(raw["b_ih_l0"] + raw["b_hh_l0"], H, HP),    # (1, 4HP)
        "wih1": _pad_rows(_pack_gate_matrix(raw["w_ih_l1"], H, HP), HP),  # (HP, 4HP)
        "whh1": _pad_rows(_pack_gate_matrix(raw["w_hh_l1"], H, HP), HP),  # (HP, 4HP)
        "b1": _pack_gate_bias(raw["b_ih_l1"] + raw["b_hh_l1"], H, HP),    # (1, 4HP)
        "fcw": _pad_rows(raw["fc_w"].T, HP),                              # (HP, 1)
        "fcb": raw["fc_b"].reshape(1, 1),                                 # (1, 1)
    }
    return raw, packed


# ----------------------------- pure-JAX reference ----------------------------

def reference_forward(x, raw):
    """Reference of the PyTorch forward pass, using the raw (unpacked) params."""
    B, T, _ = x.shape
    H = HIDDEN_SIZE

    def cell(x_t, h, c, w_ih, w_hh, b_ih, b_hh):
        z = x_t @ w_ih.T + h @ w_hh.T + b_ih + b_hh       # (B, 4H), i|f|g|o
        i = jax.nn.sigmoid(z[:, 0 * H:1 * H])
        f = jax.nn.sigmoid(z[:, 1 * H:2 * H])
        g = jnp.tanh(z[:, 2 * H:3 * H])
        o = jax.nn.sigmoid(z[:, 3 * H:4 * H])
        c = f * c + i * g
        h = o * jnp.tanh(c)
        return h, c

    h0 = c0 = h1 = c1 = jnp.zeros((B, H), jnp.float32)
    for t in range(T):
        x_t = x[:, t, :]
        h0, c0 = cell(x_t, h0, c0, raw["w_ih_l0"], raw["w_hh_l0"],
                      raw["b_ih_l0"], raw["b_hh_l0"])
        h1, c1 = cell(h0, h1, c1, raw["w_ih_l1"], raw["w_hh_l1"],
                      raw["b_ih_l1"], raw["b_hh_l1"])
    return h1 @ raw["fc_w"].T + raw["fc_b"]


if __name__ == "__main__":
    key = jax.random.PRNGKey(0)
    kx, kp = jax.random.split(key)
    x = jax.random.normal(kx, (BATCH, SEQ, INPUT_SIZE), jnp.float32)
    raw, packed = init_params(kp)

    out = jax.block_until_ready(hazard_lstm_forward(x, packed))
    ref = reference_forward(x, raw)

    assert out.shape == (BATCH, 1), out.shape
    assert jnp.allclose(out, ref, rtol=1e-5, atol=1e-5), (out, ref)
    print("KERNEL_OK")
</pallas_src>

<mosaic_0001>
module attributes {stable_mosaic.version = 11 : i64} {
  func.func @_hazard_lstm_kernel(%arg0: memref<64x16xf32, #tpu.memory_space<vmem>>, %arg1: memref<16x256xf32, #tpu.memory_space<vmem>>, %arg2: memref<64x256xf32, #tpu.memory_space<vmem>>, %arg3: memref<1x256xf32, #tpu.memory_space<vmem>>, %arg4: memref<64x256xf32, #tpu.memory_space<vmem>>, %arg5: memref<64x256xf32, #tpu.memory_space<vmem>>, %arg6: memref<1x256xf32, #tpu.memory_space<vmem>>, %arg7: memref<64x1xf32, #tpu.memory_space<vmem>>, %arg8: memref<1x1xf32, #tpu.memory_space<vmem>>, %arg9: memref<8x1xf32, #tpu.memory_space<vmem>>) attributes {dimension_semantics = [], scalar_prefetch = 0 : i64, scratch_operands = 0 : i64, tpu.core_type = #tpu.core_type<tc>} {
    %c0 = arith.constant 0 : index
    %c0_0 = arith.constant 0 : index
    %0 = vector.load %arg2[%c0, %c0_0] : memref<64x256xf32, #tpu.memory_space<vmem>>, vector<64x256xf32>
    %c0_1 = arith.constant 0 : index
    %c0_2 = arith.constant 0 : index
    %1 = vector.load %arg4[%c0_1, %c0_2] : memref<64x256xf32, #tpu.memory_space<vmem>>, vector<64x256xf32>
    %c0_3 = arith.constant 0 : index
    %c0_4 = arith.constant 0 : index
    %2 = vector.load %arg5[%c0_3, %c0_4] : memref<64x256xf32, #tpu.memory_space<vmem>>, vector<64x256xf32>
    %c0_5 = arith.constant 0 : index
    %c0_6 = arith.constant 0 : index
    %3 = vector.load %arg6[%c0_5, %c0_6] : memref<1x256xf32, #tpu.memory_space<vmem>>, vector<1x256xf32>
    %4 = vector.shape_cast %3 : vector<1x256xf32> to vector<1x256xf32>
    %5 = vector.broadcast %4 : vector<1x256xf32> to vector<8x256xf32>
    %c0_7 = arith.constant 0 : index
    %c0_8 = arith.constant 0 : index
    %6 = vector.load %arg0[%c0_7, %c0_8] : memref<64x16xf32, #tpu.memory_space<vmem>>, vector<64x16xf32>
    %c0_9 = arith.constant 0 : index
    %c0_10 = arith.constant 0 : index
    %7 = vector.load %arg1[%c0_9, %c0_10] : memref<16x256xf32, #tpu.memory_space<vmem>>, vector<16x256xf32>
    %cst = arith.constant dense<0.000000e+00> : vector<64x256xf32>
    %8 = tpu.matmul %6, %7, %cst {dimension_numbers = #tpu.dot_dimension_numbers<[1], [0], [0], [1], [0, 0, 1, 1], [], []>} : vector<64x16xf32>, vector<16x256xf32>, vector<64x256xf32> -> vector<64x256xf32>
    %c0_11 = arith.constant 0 : index
    %c0_12 = arith.constant 0 : index
    %9 = vector.load %arg3[%c0_11, %c0_12] : memref<1x256xf32, #tpu.memory_space<vmem>>, vector<1x256xf32>
    %10 = vector.broadcast %9 : vector<1x256xf32> to vector<64x256xf32>
    %11 = arith.addf %8, %10 : vector<64x256xf32>
    %cst_13 = arith.constant 0.000000e+00 : f32
    %12 = vector.broadcast %cst_13 : f32 to vector<8x64xf32>
    %13 = vector.extract_strided_slice %11 {offsets = [0, 0], sizes = [8, 256], strides = [1, 1]} : vector<64x256xf32> to vector<8x256xf32>
    %cst_14 = arith.constant dense<0.000000e+00> : vector<8x256xf32>
    %14 = tpu.matmul %12, %0, %cst_14 {dimension_numbers = #tpu.dot_dimension_numbers<[1], [0], [0], [1], [0, 0, 1, 1], [], []>} : vector<8x64xf32>, vector<64x256xf32>, vector<8x256xf32> -> vector<8x256xf32>
    %15 = arith.addf %13, %14 : vector<8x256xf32>
    %16 = vector.extract_strided_slice %15 {offsets = [0, 0], sizes = [8, 192], strides = [1, 1]} : vector<8x256xf32> to vector<8x192xf32>
    %17 = arith.negf %16 : vector<8x192xf32>
    %18 = math.exp %17 : vector<8x192xf32>
    %cst_15 = arith.constant 1.000000e+00 : f32
    %19 = vector.broadcast %cst_15 : f32 to vector<8x192xf32>
    %20 = arith.addf %19, %18 : vector<8x192xf32>
    %21 = arith.divf %19, %20 : vector<8x192xf32>
    %22 = vector.extract_strided_slice %15 {offsets = [0, 192], sizes = [8, 64], strides = [1, 1]} : vector<8x256xf32> to vector<8x64xf32>
    %23 = math.tanh %22 : vector<8x64xf32>
    %24 = vector.extract_strided_slice %21 {offsets = [0, 0], sizes = [8, 64], strides = [1, 1]} : vector<8x192xf32> to vector<8x64xf32>
    %25 = vector.extract_strided_slice %21 {offsets = [0, 64], sizes = [8, 64], strides = [1, 1]} : vector<8x192xf32> to vector<8x64xf32>
    %26 = vector.extract_strided_slice %21 {offsets = [0, 128], sizes = [8, 64], strides = [1, 1]} : vector<8x192xf32> to vector<8x64xf32>
    %27 = arith.mulf %25, %12 : vector<8x64xf32>
    %28 = arith.mulf %24, %23 : vector<8x64xf32>
    %29 = arith.addf %27, %28 : vector<8x64xf32>
    %30 = math.tanh %29 : vector<8x64xf32>
    %31 = arith.mulf %26, %30 : vector<8x64xf32>
    %cst_16 = arith.constant dense<0.000000e+00> : vector<8x256xf32>
    %32 = tpu.matmul %31, %1, %cst_16 {dimension_numbers = #tpu.dot_dimension_numbers<[1], [0], [0], [1], [0, 0, 1, 1], [], []>} : vector<8x64xf32>, vector<64x256xf32>, vector<8x256xf32> -> vector<8x256xf32>
    %cst_17 = arith.constant dense<0.000000e+00> : vector<8x256xf32>
    %33 = tpu.matmul %12, %2, %cst_17 {dimension_numbers = #tpu.dot_dimension_numbers<[1], [0], [0], [1], [0, 0, 1, 1], [], []>} : vector<8x64xf32>, vector<64x256xf32>, vector<8x256xf32> -> vector<8x256xf32>
    %34 = arith.addf %32, %33 : vector<8x256xf32>
    %35 = arith.addf %34, %5 : vector<8x256xf32>
    %36 = vector.extract_strided_slice %35 {offsets = [0, 0], sizes = [8, 192], strides = [1, 1]} : vector<8x256xf32> to vector<8x192xf32>
    %37 = arith.negf %36 : vector<8x192xf32>
    %38 = math.exp %37 : vector<8x192xf32>
    %cst_18 = arith.constant 1.000000e+00 : f32
    %39 = vector.broadcast %cst_18 : f32 to vector<8x192xf32>
    %40 = arith.addf %39, %38 : vector<8x192xf32>
    %41 = arith.divf %39, %40 : vector<8x192xf32>
    %42 = vector.extract_strided_slice %35 {offsets = [0, 192], sizes = [8, 64], strides = [1, 1]} : vector<8x256xf32> to vector<8x64xf32>
    %43 = math.tanh %42 : vector<8x64xf32>
    %44 = vector.extract_strided_slice %41 {offsets = [0, 0], sizes = [8, 64], strides = [1, 1]} : vector<8x192xf32> to vector<8x64xf32>
    %45 = vector.extract_strided_slice %41 {offsets = [0, 64], sizes = [8, 64], strides = [1, 1]} : vector<8x192xf32> to vector<8x64xf32>
    %46 = vector.extract_strided_slice %41 {offsets = [0, 128], sizes = [8, 64], strides = [1, 1]} : vector<8x192xf32> to vector<8x64xf32>
    %47 = arith.mulf %45, %12 : vector<8x64xf32>
    %48 = arith.mulf %44, %43 : vector<8x64xf32>
    %49 = arith.addf %47, %48 : vector<8x64xf32>
    %50 = math.tanh %49 : vector<8x64xf32>
    %51 = arith.mulf %46, %50 : vector<8x64xf32>
    %52 = vector.extract_strided_slice %11 {offsets = [8, 0], sizes = [8, 256], strides = [1, 1]} : vector<64x256xf32> to vector<8x256xf32>
    %cst_19 = arith.constant dense<0.000000e+00> : vector<8x256xf32>
    %53 = tpu.matmul %31, %0, %cst_19 {dimension_numbers = #tpu.dot_dimension_numbers<[1], [0], [0], [1], [0, 0, 1, 1], [], []>} : vector<8x64xf32>, vector<64x256xf32>, vector<8x256xf32> -> vector<8x256xf32>
    %54 = arith.addf %52, %53 : vector<8x256xf32>
    %55 = vector.extract_strided_slice %54 {offsets = [0, 0], sizes = [8, 192], strides = [1, 1]} : vector<8x256xf32> to vector<8x192xf32>
    %56 = arith.negf %55 : vector<8x192xf32>
    %57 = math.exp %56 : vector<8x192xf32>
    %cst_20 = arith.constant 1.000000e+00 : f32
    %58 = vector.broadcast %cst_20 : f32 to vector<8x192xf32>
    %59 = arith.addf %58, %57 : vector<8x192xf32>
    %60 = arith.divf %58, %59 : vector<8x192xf32>
    %61 = vector.extract_strided_slice %54 {offsets = [0, 192], sizes = [8, 64], strides = [1, 1]} : vector<8x256xf32> to vector<8x64xf32>
    %62 = math.tanh %61 : vector<8x64xf32>
    %63 = vector.extract_strided_slice %60 {offsets = [0, 0], sizes = [8, 64], strides = [1, 1]} : vector<8x192xf32> to vector<8x64xf32>
    %64 = vector.extract_strided_slice %60 {offsets = [0, 64], sizes = [8, 64], strides = [1, 1]} : vector<8x192xf32> to vector<8x64xf32>
    %65 = vector.extract_strided_slice %60 {offsets = [0, 128], sizes = [8, 64], strides = [1, 1]} : vector<8x192xf32> to vector<8x64xf32>
    %66 = arith.mulf %64, %29 : vector<8x64xf32>
    %67 = arith.mulf %63, %62 : vector<8x64xf32>
    %68 = arith.addf %66, %67 : vector<8x64xf32>
    %69 = math.tanh %68 : vector<8x64xf32>
    %70 = arith.mulf %65, %69 : vector<8x64xf32>
    %cst_21 = arith.constant dense<0.000000e+00> : vector<8x256xf32>
    %71 = tpu.matmul %70, %1, %cst_21 {dimension_numbers = #tpu.dot_dimension_numbers<[1], [0], [0], [1], [0, 0, 1, 1], [], []>} : vector<8x64xf32>, vector<64x256xf32>, vector<8x256xf32> -> vector<8x256xf32>
    %cst_22 = arith.constant dense<0.000000e+00> : vector<8x256xf32>
    %72 = tpu.matmul %51, %2, %cst_22 {dimension_numbers = #tpu.dot_dimension_numbers<[1], [0], [0], [1], [0, 0, 1, 1], [], []>} : vector<8x64xf32>, vector<64x256xf32>, vector<8x256xf32> -> vector<8x256xf32>
    %73 = arith.addf %71, %72 : vector<8x256xf32>
    %74 = arith.addf %73, %5 : vector<8x256xf32>
    %75 = vector.extract_strided_slice %74 {offsets = [0, 0], sizes = [8, 192], strides = [1, 1]} : vector<8x256xf32> to vector<8x192xf32>
    %76 = arith.negf %75 : vector<8x192xf32>
    %77 = math.exp %76 : vector<8x192xf32>
    %cst_23 = arith.constant 1.000000e+00 : f32
    %78 = vector.broadcast %cst_23 : f32 to vector<8x192xf32>
    %79 = arith.addf %78, %77 : vector<8x192xf32>
    %80 = arith.divf %78, %79 : vector<8x192xf32>
    %81 = vector.extract_strided_slice %74 {offsets = [0, 192], sizes = [8, 64], strides = [1, 1]} : vector<8x256xf32> to vector<8x64xf32>
    %82 = math.tanh %81 : vector<8x64xf32>
    %83 = vector.extract_strided_slice %80 {offsets = [0, 0], sizes = [8, 64], strides = [1, 1]} : vector<8x192xf32> to vector<8x64xf32>
    %84 = vector.extract_strided_slice %80 {offsets = [0, 64], sizes = [8, 64], strides = [1, 1]} : vector<8x192xf32> to vector<8x64xf32>
    %85 = vector.extract_strided_slice %80 {offsets = [0, 128], sizes = [8, 64], strides = [1, 1]} : vector<8x192xf32> to vector<8x64xf32>
    %86 = arith.mulf %84, %49 : vector<8x64xf32>
    %87 = arith.mulf %83, %82 : vector<8x64xf32>
    %88 = arith.addf %86, %87 : vector<8x64xf32>
    %89 = math.tanh %88 : vector<8x64xf32>
    %90 = arith.mulf %85, %89 : vector<8x64xf32>
    %91 = vector.extract_strided_slice %11 {offsets = [16, 0], sizes = [8, 256], strides = [1, 1]} : vector<64x256xf32> to vector<8x256xf32>
    %cst_24 = arith.constant dense<0.000000e+00> : vector<8x256xf32>
    %92 = tpu.matmul %70, %0, %cst_24 {dimension_numbers = #tpu.dot_dimension_numbers<[1], [0], [0], [1], [0, 0, 1, 1], [], []>} : vector<8x64xf32>, vector<64x256xf32>, vector<8x256xf32> -> vector<8x256xf32>
    %93 = arith.addf %91, %92 : vector<8x256xf32>
    %94 = vector.extract_strided_slice %93 {offsets = [0, 0], sizes = [8, 192], strides = [1, 1]} : vector<8x256xf32> to vector<8x192xf32>
    %95 = arith.negf %94 : vector<8x192xf32>
    %96 = math.exp %95 : vector<8x192xf32>
    %cst_25 = arith.constant 1.000000e+00 : f32
    %97 = vector.broadcast %cst_25 : f32 to vector<8x192xf32>
    %98 = arith.addf %97, %96 : vector<8x192xf32>
    %99 = arith.divf %97, %98 : vector<8x192xf32>
    %100 = vector.extract_strided_slice %93 {offsets = [0, 192], sizes = [8, 64], strides = [1, 1]} : vector<8x256xf32> to vector<8x64xf32>
    %101 = math.tanh %100 : vector<8x64xf32>
    %102 = vector.extract_strided_slice %99 {offsets = [0, 0], sizes = [8, 64], strides = [1, 1]} : vector<8x192xf32> to vector<8x64xf32>
    %103 = vector.extract_strided_slice %99 {offsets = [0, 64], sizes = [8, 64], strides = [1, 1]} : vector<8x192xf32> to vector<8x64xf32>
    %104 = vector.extract_strided_slice %99 {offsets = [0, 128], sizes = [8, 64], strides = [1, 1]} : vector<8x192xf32> to vector<8x64xf32>
    %105 = arith.mulf %103, %68 : vector<8x64xf32>
    %106 = arith.mulf %102, %101 : vector<8x64xf32>
    %107 = arith.addf %105, %106 : vector<8x64xf32>
    %108 = math.tanh %107 : vector<8x64xf32>
    %109 = arith.mulf %104, %108 : vector<8x64xf32>
    %cst_26 = arith.constant dense<0.000000e+00> : vector<8x256xf32>
    %110 = tpu.matmul %109, %1, %cst_26 {dimension_numbers = #tpu.dot_dimension_numbers<[1], [0], [0], [1], [0, 0, 1, 1], [], []>} : vector<8x64xf32>, vector<64x256xf32>, vector<8x256xf32> -> vector<8x256xf32>
    %cst_27 = arith.constant dense<0.000000e+00> : vector<8x256xf32>
    %111 = tpu.matmul %90, %2, %cst_27 {dimension_numbers = #tpu.dot_dimension_numbers<[1], [0], [0], [1], [0, 0, 1, 1], [], []>} : vector<8x64xf32>, vector<64x256xf32>, vector<8x256xf32> -> vector<8x256xf32>
    %112 = arith.addf %110, %111 : vector<8x256xf32>
    %113 = arith.addf %112, %5 : vector<8x256xf32>
    %114 = vector.extract_strided_slice %113 {offsets = [0, 0], sizes = [8, 192], strides = [1, 1]} : vector<8x256xf32> to vector<8x192xf32>
    %115 = arith.negf %114 : vector<8x192xf32>
    %116 = math.exp %115 : vector<8x192xf32>
    %cst_28 = arith.constant 1.000000e+00 : f32
    %117 = vector.broadcast %cst_28 : f32 to vector<8x192xf32>
    %118 = arith.addf %117, %116 : vector<8x192xf32>
    %119 = arith.divf %117, %118 : vector<8x192xf32>
    %120 = vector.extract_strided_slice %113 {offsets = [0, 192], sizes = [8, 64], strides = [1, 1]} : vector<8x256xf32> to vector<8x64xf32>
    %121 = math.tanh %120 : vector<8x64xf32>
    %122 = vector.extract_strided_slice %119 {offsets = [0, 0], sizes = [8, 64], strides = [1, 1]} : vector<8x192xf32> to vector<8x64xf32>
    %123 = vector.extract_strided_slice %119 {offsets = [0, 64], sizes = [8, 64], strides = [1, 1]} : vector<8x192xf32> to vector<8x64xf32>
    %124 = vector.extract_strided_slice %119 {offsets = [0, 128], sizes = [8, 64], strides = [1, 1]} : vector<8x192xf32> to vector<8x64xf32>
    %125 = arith.mulf %123, %88 : vector<8x64xf32>
    %126 = arith.mulf %122, %121 : vector<8x64xf32>
    %127 = arith.addf %125, %126 : vector<8x64xf32>
    %128 = math.tanh %127 : vector<8x64xf32>
    %129 = arith.mulf %124, %128 : vector<8x64xf32>
    %130 = vector.extract_strided_slice %11 {offsets = [24, 0], sizes = [8, 256], strides = [1, 1]} : vector<64x256xf32> to vector<8x256xf32>
    %cst_29 = arith.constant dense<0.000000e+00> : vector<8x256xf32>
    %131 = tpu.matmul %109, %0, %cst_29 {dimension_numbers = #tpu.dot_dimension_numbers<[1], [0], [0], [1], [0, 0, 1, 1], [], []>} : vector<8x64xf32>, vector<64x256xf32>, vector<8x256xf32> -> vector<8x256xf32>
    %132 = arith.addf %130, %131 : vector<8x256xf32>
    %133 = vector.extract_strided_slice %132 {offsets = [0, 0], sizes = [8, 192], strides = [1, 1]} : vector<8x256xf32> to vector<8x192xf32>
    %134 = arith.negf %133 : vector<8x192xf32>
    %135 = math.exp %134 : vector<8x192xf32>
    %cst_30 = arith.constant 1.000000e+00 : f32
    %136 = vector.broadcast %cst_30 : f32 to vector<8x192xf32>
    %137 = arith.addf %136, %135 : vector<8x192xf32>
    %138 = arith.divf %136, %137 : vector<8x192xf32>
    %139 = vector.extract_strided_slice %132 {offsets = [0, 192], sizes = [8, 64], strides = [1, 1]} : vector<8x256xf32> to vector<8x64xf32>
    %140 = math.tanh %139 : vector<8x64xf32>
    %141 = vector.extract_strided_slice %138 {offsets = [0, 0], sizes = [8, 64], strides = [1, 1]} : vector<8x192xf32> to vector<8x64xf32>
    %142 = vector.extract_strided_slice %138 {offsets = [0, 64], sizes = [8, 64], strides = [1, 1]} : vector<8x192xf32> to vector<8x64xf32>
    %143 = vector.extract_strided_slice %138 {offsets = [0, 128], sizes = [8, 64], strides = [1, 1]} : vector<8x192xf32> to vector<8x64xf32>
    %144 = arith.mulf %142, %107 : vector<8x64xf32>
    %145 = arith.mulf %141, %140 : vector<8x64xf32>
    %146 = arith.addf %144, %145 : vector<8x64xf32>
    %147 = math.tanh %146 : vector<8x64xf32>
    %148 = arith.mulf %143, %147 : vector<8x64xf32>
    %cst_31 = arith.constant dense<0.000000e+00> : vector<8x256xf32>
    %149 = tpu.matmul %148, %1, %cst_31 {dimension_numbers = #tpu.dot_dimension_numbers<[1], [0], [0], [1], [0, 0, 1, 1], [], []>} : vector<8x64xf32>, vector<64x256xf32>, vector<8x256xf32> -> vector<8x256xf32>
    %cst_32 = arith.constant dense<0.000000e+00> : vector<8x256xf32>
    %150 = tpu.matmul %129, %2, %cst_32 {dimension_numbers = #tpu.dot_dimension_numbers<[1], [0], [0], [1], [0, 0, 1, 1], [], []>} : vector<8x64xf32>, vector<64x256xf32>, vector<8x256xf32> -> vector<8x256xf32>
    %151 = arith.addf %149, %150 : vector<8x256xf32>
    %152 = arith.addf %151, %5 : vector<8x256xf32>
    %153 = vector.extract_strided_slice %152 {offsets = [0, 0], sizes = [8, 192], strides = [1, 1]} : vector<8x256xf32> to vector<8x192xf32>
    %154 = arith.negf %153 : vector<8x192xf32>
    %155 = math.exp %154 : vector<8x192xf32>
    %cst_33 = arith.constant 1.000000e+00 : f32
    %156 = vector.broadcast %cst_33 : f32 to vector<8x192xf32>
    %157 = arith.addf %156, %155 : vector<8x192xf32>
    %158 = arith.divf %156, %157 : vector<8x192xf32>
    %159 = vector.extract_strided_slice %152 {offsets = [0, 192], sizes = [8, 64], strides = [1, 1]} : vector<8x256xf32> to vector<8x64xf32>
    %160 = math.tanh %159 : vector<8x64xf32>
    %161 = vector.extract_strided_slice %158 {offsets = [0, 0], sizes = [8, 64], strides = [1, 1]} : vector<8x192xf32> to vector<8x64xf32>
    %162 = vector.extract_strided_slice %158 {offsets = [0, 64], sizes = [8, 64], strides = [1, 1]} : vector<8x192xf32> to vector<8x64xf32>
    %163 = vector.extract_strided_slice %158 {offsets = [0, 128], sizes = [8, 64], strides = [1, 1]} : vector<8x192xf32> to vector<8x64xf32>
    %164 = arith.mulf %162, %127 : vector<8x64xf32>
    %165 = arith.mulf %161, %160 : vector<8x64xf32>
    %166 = arith.addf %164, %165 : vector<8x64xf32>
    %167 = math.tanh %166 : vector<8x64xf32>
    %168 = arith.mulf %163, %167 : vector<8x64xf32>
    %169 = vector.extract_strided_slice %11 {offsets = [32, 0], sizes = [8, 256], strides = [1, 1]} : vector<64x256xf32> to vector<8x256xf32>
    %cst_34 = arith.constant dense<0.000000e+00> : vector<8x256xf32>
    %170 = tpu.matmul %148, %0, %cst_34 {dimension_numbers = #tpu.dot_dimension_numbers<[1], [0], [0], [1], [0, 0, 1, 1], [], []>} : vector<8x64xf32>, vector<64x256xf32>, vector<8x256xf32> -> vector<8x256xf32>
    %171 = arith.addf %169, %170 : vector<8x256xf32>
    %172 = vector.extract_strided_slice %171 {offsets = [0, 0], sizes = [8, 192], strides = [1, 1]} : vector<8x256xf32> to vector<8x192xf32>
    %173 = arith.negf %172 : vector<8x192xf32>
    %174 = math.exp %173 : vector<8x192xf32>
    %cst_35 = arith.constant 1.000000e+00 : f32
    %175 = vector.broadcast %cst_35 : f32 to vector<8x192xf32>
    %176 = arith.addf %175, %174 : vector<8x192xf32>
    %177 = arith.divf %175, %176 : vector<8x192xf32>
    %178 = vector.extract_strided_slice %171 {offsets = [0, 192], sizes = [8, 64], strides = [1, 1]} : vector<8x256xf32> to vector<8x64xf32>
    %179 = math.tanh %178 : vector<8x64xf32>
    %180 = vector.extract_strided_slice %177 {offsets = [0, 0], sizes = [8, 64], strides = [1, 1]} : vector<8x192xf32> to vector<8x64xf32>
    %181 = vector.extract_strided_slice %177 {offsets = [0, 64], sizes = [8, 64], strides = [1, 1]} : vector<8x192xf32> to vector<8x64xf32>
    %182 = vector.extract_strided_slice %177 {offsets = [0, 128], sizes = [8, 64], strides = [1, 1]} : vector<8x192xf32> to vector<8x64xf32>
    %183 = arith.mulf %181, %146 : vector<8x64xf32>
    %184 = arith.mulf %180, %179 : vector<8x64xf32>
    %185 = arith.addf %183, %184 : vector<8x64xf32>
    %186 = math.tanh %185 : vector<8x64xf32>
    %187 = arith.mulf %182, %186 : vector<8x64xf32>
    %cst_36 = arith.constant dense<0.000000e+00> : vector<8x256xf32>
    %188 = tpu.matmul %187, %1, %cst_36 {dimension_numbers = #tpu.dot_dimension_numbers<[1], [0], [0], [1], [0, 0, 1, 1], [], []>} : vector<8x64xf32>, vector<64x256xf32>, vector<8x256xf32> -> vector<8x256xf32>
    %cst_37 = arith.constant dense<0.000000e+00> : vector<8x256xf32>
    %189 = tpu.matmul %168, %2, %cst_37 {dimension_numbers = #tpu.dot_dimension_numbers<[1], [0], [0], [1], [0, 0, 1, 1], [], []>} : vector<8x64xf32>, vector<64x256xf32>, vector<8x256xf32> -> vector<8x256xf32>
    %190 = arith.addf %188, %189 : vector<8x256xf32>
    %191 = arith.addf %190, %5 : vector<8x256xf32>
    %192 = vector.extract_strided_slice %191 {offsets = [0, 0], sizes = [8, 192], strides = [1, 1]} : vector<8x256xf32> to vector<8x192xf32>
    %193 = arith.negf %192 : vector<8x192xf32>
    %194 = math.exp %193 : vector<8x192xf32>
    %cst_38 = arith.constant 1.000000e+00 : f32
    %195 = vector.broadcast %cst_38 : f32 to vector<8x192xf32>
    %196 = arith.addf %195, %194 : vector<8x192xf32>
    %197 = arith.divf %195, %196 : vector<8x192xf32>
    %198 = vector.extract_strided_slice %191 {offsets = [0, 192], sizes = [8, 64], strides = [1, 1]} : vector<8x256xf32> to vector<8x64xf32>
    %199 = math.tanh %198 : vector<8x64xf32>
    %200 = vector.extract_strided_slice %197 {offsets = [0, 0], sizes = [8, 64], strides = [1, 1]} : vector<8x192xf32> to vector<8x64xf32>
    %201 = vector.extract_strided_slice %197 {offsets = [0, 64], sizes = [8, 64], strides = [1, 1]} : vector<8x192xf32> to vector<8x64xf32>
    %202 = vector.extract_strided_slice %197 {offsets = [0, 128], sizes = [8, 64], strides = [1, 1]} : vector<8x192xf32> to vector<8x64xf32>
    %203 = arith.mulf %201, %166 : vector<8x64xf32>
    %204 = arith.mulf %200, %199 : vector<8x64xf32>
    %205 = arith.addf %203, %204 : vector<8x64xf32>
    %206 = math.tanh %205 : vector<8x64xf32>
    %207 = arith.mulf %202, %206 : vector<8x64xf32>
    %208 = vector.extract_strided_slice %11 {offsets = [40, 0], sizes = [8, 256], strides = [1, 1]} : vector<64x256xf32> to vector<8x256xf32>
    %cst_39 = arith.constant dense<0.000000e+00> : vector<8x256xf32>
    %209 = tpu.matmul %187, %0, %cst_39 {dimension_numbers = #tpu.dot_dimension_numbers<[1], [0], [0], [1], [0, 0, 1, 1], [], []>} : vector<8x64xf32>, vector<64x256xf32>, vector<8x256xf32> -> vector<8x256xf32>
    %210 = arith.addf %208, %209 : vector<8x256xf32>
    %211 = vector.extract_strided_slice %210 {offsets = [0, 0], sizes = [8, 192], strides = [1, 1]} : vector<8x256xf32> to vector<8x192xf32>
    %212 = arith.negf %211 : vector<8x192xf32>
    %213 = math.exp %212 : vector<8x192xf32>
    %cst_40 = arith.constant 1.000000e+00 : f32
    %214 = vector.broadcast %cst_40 : f32 to vector<8x192xf32>
    %215 = arith.addf %214, %213 : vector<8x192xf32>
    %216 = arith.divf %214, %215 : vector<8x192xf32>
    %217 = vector.extract_strided_slice %210 {offsets = [0, 192], sizes = [8, 64], strides = [1, 1]} : vector<8x256xf32> to vector<8x64xf32>
    %218 = math.tanh %217 : vector<8x64xf32>
    %219 = vector.extract_strided_slice %216 {offsets = [0, 0], sizes = [8, 64], strides = [1, 1]} : vector<8x192xf32> to vector<8x64xf32>
    %220 = vector.extract_strided_slice %216 {offsets = [0, 64], sizes = [8, 64], strides = [1, 1]} : vector<8x192xf32> to vector<8x64xf32>
    %221 = vector.extract_strided_slice %216 {offsets = [0, 128], sizes = [8, 64], strides = [1, 1]} : vector<8x192xf32> to vector<8x64xf32>
    %222 = arith.mulf %220, %185 : vector<8x64xf32>
    %223 = arith.mulf %219, %218 : vector<8x64xf32>
    %224 = arith.addf %222, %223 : vector<8x64xf32>
    %225 = math.tanh %224 : vector<8x64xf32>
    %226 = arith.mulf %221, %225 : vector<8x64xf32>
    %cst_41 = arith.constant dense<0.000000e+00> : vector<8x256xf32>
    %227 = tpu.matmul %226, %1, %cst_41 {dimension_numbers = #tpu.dot_dimension_numbers<[1], [0], [0], [1], [0, 0, 1, 1], [], []>} : vector<8x64xf32>, vector<64x256xf32>, vector<8x256xf32> -> vector<8x256xf32>
    %cst_42 = arith.constant dense<0.000000e+00> : vector<8x256xf32>
    %228 = tpu.matmul %207, %2, %cst_42 {dimension_numbers = #tpu.dot_dimension_numbers<[1], [0], [0], [1], [0, 0, 1, 1], [], []>} : vector<8x64xf32>, vector<64x256xf32>, vector<8x256xf32> -> vector<8x256xf32>
    %229 = arith.addf %227, %228 : vector<8x256xf32>
    %230 = arith.addf %229, %5 : vector<8x256xf32>
    %231 = vector.extract_strided_slice %230 {offsets = [0, 0], sizes = [8, 192], strides = [1, 1]} : vector<8x256xf32> to vector<8x192xf32>
    %232 = arith.negf %231 : vector<8x192xf32>
    %233 = math.exp %232 : vector<8x192xf32>
    %cst_43 = arith.constant 1.000000e+00 : f32
    %234 = vector.broadcast %cst_43 : f32 to vector<8x192xf32>
    %235 = arith.addf %234, %233 : vector<8x192xf32>
    %236 = arith.divf %234, %235 : vector<8x192xf32>
    %237 = vector.extract_strided_slice %230 {offsets = [0, 192], sizes = [8, 64], strides = [1, 1]} : vector<8x256xf32> to vector<8x64xf32>
    %238 = math.tanh %237 : vector<8x64xf32>
    %239 = vector.extract_strided_slice %236 {offsets = [0, 0], sizes = [8, 64], strides = [1, 1]} : vector<8x192xf32> to vector<8x64xf32>
    %240 = vector.extract_strided_slice %236 {offsets = [0, 64], sizes = [8, 64], strides = [1, 1]} : vector<8x192xf32> to vector<8x64xf32>
    %241 = vector.extract_strided_slice %236 {offsets = [0, 128], sizes = [8, 64], strides = [1, 1]} : vector<8x192xf32> to vector<8x64xf32>
    %242 = arith.mulf %240, %205 : vector<8x64xf32>
    %243 = arith.mulf %239, %238 : vector<8x64xf32>
    %244 = arith.addf %242, %243 : vector<8x64xf32>
    %245 = math.tanh %244 : vector<8x64xf32>
    %246 = arith.mulf %241, %245 : vector<8x64xf32>
    %247 = vector.extract_strided_slice %11 {offsets = [48, 0], sizes = [8, 256], strides = [1, 1]} : vector<64x256xf32> to vector<8x256xf32>
    %cst_44 = arith.constant dense<0.000000e+00> : vector<8x256xf32>
    %248 = tpu.matmul %226, %0, %cst_44 {dimension_numbers = #tpu.dot_dimension_numbers<[1], [0], [0], [1], [0, 0, 1, 1], [], []>} : vector<8x64xf32>, vector<64x256xf32>, vector<8x256xf32> -> vector<8x256xf32>
    %249 = arith.addf %247, %248 : vector<8x256xf32>
    %250 = vector.extract_strided_slice %249 {offsets = [0, 0], sizes = [8, 192], strides = [1, 1]} : vector<8x256xf32> to vector<8x192xf32>
    %251 = arith.negf %250 : vector<8x192xf32>
    %252 = math.exp %251 : vector<8x192xf32>
    %cst_45 = arith.constant 1.000000e+00 : f32
    %253 = vector.broadcast %cst_45 : f32 to vector<8x192xf32>
    %254 = arith.addf %253, %252 : vector<8x192xf32>
    %255 = arith.divf %253, %254 : vector<8x192xf32>
    %256 = vector.extract_strided_slice %249 {offsets = [0, 192], sizes = [8, 64], strides = [1, 1]} : vector<8x256xf32> to vector<8x64xf32>
    %257 = math.tanh %256 : vector<8x64xf32>
    %258 = vector.extract_strided_slice %255 {offsets = [0, 0], sizes = [8, 64], strides = [1, 1]} : vector<8x192xf32> to vector<8x64xf32>
    %259 = vector.extract_strided_slice %255 {offsets = [0, 64], sizes = [8, 64], strides = [1, 1]} : vector<8x192xf32> to vector<8x64xf32>
    %260 = vector.extract_strided_slice %255 {offsets = [0, 128], sizes = [8, 64], strides = [1, 1]} : vector<8x192xf32> to vector<8x64xf32>
    %261 = arith.mulf %259, %224 : vector<8x64xf32>
    %262 = arith.mulf %258, %257 : vector<8x64xf32>
    %263 = arith.addf %261, %262 : vector<8x64xf32>
    %264 = math.tanh %263 : vector<8x64xf32>
    %265 = arith.mulf %260, %264 : vector<8x64xf32>
    %cst_46 = arith.constant dense<0.000000e+00> : vector<8x256xf32>
    %266 = tpu.matmul %265, %1, %cst_46 {dimension_numbers = #tpu.dot_dimension_numbers<[1], [0], [0], [1], [0, 0, 1, 1], [], []>} : vector<8x64xf32>, vector<64x256xf32>, vector<8x256xf32> -> vector<8x256xf32>
    %cst_47 = arith.constant dense<0.000000e+00> : vector<8x256xf32>
    %267 = tpu.matmul %246, %2, %cst_47 {dimension_numbers = #tpu.dot_dimension_numbers<[1], [0], [0], [1], [0, 0, 1, 1], [], []>} : vector<8x64xf32>, vector<64x256xf32>, vector<8x256xf32> -> vector<8x256xf32>
    %268 = arith.addf %266, %267 : vector<8x256xf32>
    %269 = arith.addf %268, %5 : vector<8x256xf32>
    %270 = vector.extract_strided_slice %269 {offsets = [0, 0], sizes = [8, 192], strides = [1, 1]} : vector<8x256xf32> to vector<8x192xf32>
    %271 = arith.negf %270 : vector<8x192xf32>
    %272 = math.exp %271 : vector<8x192xf32>
    %cst_48 = arith.constant 1.000000e+00 : f32
    %273 = vector.broadcast %cst_48 : f32 to vector<8x192xf32>
    %274 = arith.addf %273, %272 : vector<8x192xf32>
    %275 = arith.divf %273, %274 : vector<8x192xf32>
    %276 = vector.extract_strided_slice %269 {offsets = [0, 192], sizes = [8, 64], strides = [1, 1]} : vector<8x256xf32> to vector<8x64xf32>
    %277 = math.tanh %276 : vector<8x64xf32>
    %278 = vector.extract_strided_slice %275 {offsets = [0, 0], sizes = [8, 64], strides = [1, 1]} : vector<8x192xf32> to vector<8x64xf32>
    %279 = vector.extract_strided_slice %275 {offsets = [0, 64], sizes = [8, 64], strides = [1, 1]} : vector<8x192xf32> to vector<8x64xf32>
    %280 = vector.extract_strided_slice %275 {offsets = [0, 128], sizes = [8, 64], strides = [1, 1]} : vector<8x192xf32> to vector<8x64xf32>
    %281 = arith.mulf %279, %244 : vector<8x64xf32>
    %282 = arith.mulf %278, %277 : vector<8x64xf32>
    %283 = arith.addf %281, %282 : vector<8x64xf32>
    %284 = math.tanh %283 : vector<8x64xf32>
    %285 = arith.mulf %280, %284 : vector<8x64xf32>
    %286 = vector.extract_strided_slice %11 {offsets = [56, 0], sizes = [8, 256], strides = [1, 1]} : vector<64x256xf32> to vector<8x256xf32>
    %cst_49 = arith.constant dense<0.000000e+00> : vector<8x256xf32>
    %287 = tpu.matmul %265, %0, %cst_49 {dimension_numbers = #tpu.dot_dimension_numbers<[1], [0], [0], [1], [0, 0, 1, 1], [], []>} : vector<8x64xf32>, vector<64x256xf32>, vector<8x256xf32> -> vector<8x256xf32>
    %288 = arith.addf %286, %287 : vector<8x256xf32>
    %289 = vector.extract_strided_slice %288 {offsets = [0, 0], sizes = [8, 192], strides = [1, 1]} : vector<8x256xf32> to vector<8x192xf32>
    %290 = arith.negf %289 : vector<8x192xf32>
    %291 = math.exp %290 : vector<8x192xf32>
    %cst_50 = arith.constant 1.000000e+00 : f32
    %292 = vector.broadcast %cst_50 : f32 to vector<8x192xf32>
    %293 = arith.addf %292, %291 : vector<8x192xf32>
    %294 = arith.divf %292, %293 : vector<8x192xf32>
    %295 = vector.extract_strided_slice %288 {offsets = [0, 192], sizes = [8, 64], strides = [1, 1]} : vector<8x256xf32> to vector<8x64xf32>
    %296 = math.tanh %295 : vector<8x64xf32>
    %297 = vector.extract_strided_slice %294 {offsets = [0, 0], sizes = [8, 64], strides = [1, 1]} : vector<8x192xf32> to vector<8x64xf32>
    %298 = vector.extract_strided_slice %294 {offsets = [0, 64], sizes = [8, 64], strides = [1, 1]} : vector<8x192xf32> to vector<8x64xf32>
    %299 = vector.extract_strided_slice %294 {offsets = [0, 128], sizes = [8, 64], strides = [1, 1]} : vector<8x192xf32> to vector<8x64xf32>
    %300 = arith.mulf %298, %263 : vector<8x64xf32>
    %301 = arith.mulf %297, %296 : vector<8x64xf32>
    %302 = arith.addf %300, %301 : vector<8x64xf32>
    %303 = math.tanh %302 : vector<8x64xf32>
    %304 = arith.mulf %299, %303 : vector<8x64xf32>
    %cst_51 = arith.constant dense<0.000000e+00> : vector<8x256xf32>
    %305 = tpu.matmul %304, %1, %cst_51 {dimension_numbers = #tpu.dot_dimension_numbers<[1], [0], [0], [1], [0, 0, 1, 1], [], []>} : vector<8x64xf32>, vector<64x256xf32>, vector<8x256xf32> -> vector<8x256xf32>
    %cst_52 = arith.constant dense<0.000000e+00> : vector<8x256xf32>
    %306 = tpu.matmul %285, %2, %cst_52 {dimension_numbers = #tpu.dot_dimension_numbers<[1], [0], [0], [1], [0, 0, 1, 1], [], []>} : vector<8x64xf32>, vector<64x256xf32>, vector<8x256xf32> -> vector<8x256xf32>
    %307 = arith.addf %305, %306 : vector<8x256xf32>
    %308 = arith.addf %307, %5 : vector<8x256xf32>
    %309 = vector.extract_strided_slice %308 {offsets = [0, 0], sizes = [8, 192], strides = [1, 1]} : vector<8x256xf32> to vector<8x192xf32>
    %310 = arith.negf %309 : vector<8x192xf32>
    %311 = math.exp %310 : vector<8x192xf32>
    %cst_53 = arith.constant 1.000000e+00 : f32
    %312 = vector.broadcast %cst_53 : f32 to vector<8x192xf32>
    %313 = arith.addf %312, %311 : vector<8x192xf32>
    %314 = arith.divf %312, %313 : vector<8x192xf32>
    %315 = vector.extract_strided_slice %308 {offsets = [0, 192], sizes = [8, 64], strides = [1, 1]} : vector<8x256xf32> to vector<8x64xf32>
    %316 = math.tanh %315 : vector<8x64xf32>
    %317 = vector.extract_strided_slice %314 {offsets = [0, 0], sizes = [8, 64], strides = [1, 1]} : vector<8x192xf32> to vector<8x64xf32>
    %318 = vector.extract_strided_slice %314 {offsets = [0, 64], sizes = [8, 64], strides = [1, 1]} : vector<8x192xf32> to vector<8x64xf32>
    %319 = vector.extract_strided_slice %314 {offsets = [0, 128], sizes = [8, 64], strides = [1, 1]} : vector<8x192xf32> to vector<8x64xf32>
    %320 = arith.mulf %318, %283 : vector<8x64xf32>
    %321 = arith.mulf %317, %316 : vector<8x64xf32>
    %322 = arith.addf %320, %321 : vector<8x64xf32>
    %323 = math.tanh %322 : vector<8x64xf32>
    %324 = arith.mulf %319, %323 : vector<8x64xf32>
    %c0_54 = arith.constant 0 : index
    %c0_55 = arith.constant 0 : index
    %325 = vector.load %arg7[%c0_54, %c0_55] : memref<64x1xf32, #tpu.memory_space<vmem>>, vector<64x1xf32>
    %cst_56 = arith.constant dense<0.000000e+00> : vector<8x1xf32>
    %326 = tpu.matmul %324, %325, %cst_56 {dimension_numbers = #tpu.dot_dimension_numbers<[1], [0], [0], [1], [0, 0, 1, 1], [], []>} : vector<8x64xf32>, vector<64x1xf32>, vector<8x1xf32> -> vector<8x1xf32>
    %c0_57 = arith.constant 0 : index
    %c0_58 = arith.constant 0 : index
    %327 = vector.load %arg8[%c0_57, %c0_58] : memref<1x1xf32, #tpu.memory_space<vmem>>, vector<1x1xf32>
    %328 = vector.broadcast %327 : vector<1x1xf32> to vector<8x1xf32>
    %329 = arith.addf %326, %328 : vector<8x1xf32>
    %c0_59 = arith.constant 0 : index
    %c0_60 = arith.constant 0 : index
    %330 = vector.load %arg9[%c0_59, %c0_60] : memref<8x1xf32, #tpu.memory_space<vmem>>, vector<8x1xf32>
    tpu.vector_store %arg9[%c0_59, %c0_60], %329 {strides = array<i32>} : memref<8x1xf32, #tpu.memory_space<vmem>>, vector<8x1xf32>,
    return
  }
}

</mosaic_0001>

<llo_original>
// kernel: tpu_custom_call.1
$region0: #{tpu_custom_call.1}
  #allocation0 [shape = 'u32[]', space=smem, size = 0x4, offset = 0x4, fixed_abs, tag = 'smem constant byte address 0x4 - core index']
  #allocation1 [shape = 'u32[144,128]{1,0:T(1,128)}', space=vmem, size = 0x12000, scoped, tag = 'internal scratch']
  #allocation2 [shape = 'f32[1,1]{1,0:T(1,128)S(1)}', space=vmem, size = 0x200, scoped, tag = 'scoped memory for tpu_custom_call.1']
  %s0 = inlined_call_operand.vmem [shape: f32[64,16], index: 0, kind: input, shape index: {}]
  %s1 = inlined_call_operand.hbm [shape: f32[16,256], index: 1, kind: input, shape index: {}]
  %s2 = inlined_call_operand.vmem [shape: f32[64,256], index: 2, kind: input, shape index: {}]
  %s3 = inlined_call_operand.vmem [shape: f32[1,256], index: 3, kind: input, shape index: {}]
  %s4 = inlined_call_operand.hbm [shape: f32[64,256], index: 4, kind: input, shape index: {}]
  %s5 = inlined_call_operand.hbm [shape: f32[64,256], index: 5, kind: input, shape index: {}]
  %s6 = inlined_call_operand.vmem [shape: f32[1,256], index: 6, kind: input, shape index: {}]
  %s7 = inlined_call_operand.vmem [shape: f32[64,1], index: 7, kind: input, shape index: {}]
  %s8 = inlined_call_operand.<no memory space> [shape: f32[1,1], index: 8, kind: input, shape index: {}]
  %s9 = inlined_call_operand.vmem [shape: f32[8,1], index: 9, kind: output, shape index: {}]
  %s10 = sld [smem:[#allocation0]]
  $region58: #{tpu_custom_call.1} parent=0
    _
  %s12 = ssub.s32 1, %s10
  %s13 = scalar_select 0, %s12, %s10
  %v14 = vstv %s8
  %15 = vst [vmem:[#allocation2] sm:$0x1] %v14
  $region1: #{tpu_custom_call.1} parent=0
    #allocation3 [shape = 'u8[16384]{0}', space=vmem, size = 0x4000, scoped, tag = 'input window, operand 1, single buffered']
    #allocation4 [shape = 's32[1]{0}', space=sflag, size = 0x4, scoped, tag = 'scoped memory for tpu_custom_call.1']
    #allocation5 [shape = 'u8[65536]{0}', space=vmem, size = 0x10000, scoped, tag = 'input window, operand 4, single buffered']
    #allocation6 [shape = 's32[1]{0}', space=sflag, size = 0x4, scoped, tag = 'scoped memory for tpu_custom_call.1']
    #allocation7 [shape = 'u8[65536]{0}', space=vmem, size = 0x10000, scoped, tag = 'input window, operand 5, single buffered']
    %16 = vsyncpa [#allocation4], 0
    %17 = vsyncpa [#allocation6], 0
    // Predicated region
    $region2: #{tpu_custom_call.1} parent=1 // pred_check
      _
    $region3: #{tpu_custom_call.1} parent=1 // pred_check_branch
      %19 = sbr.rel (0) target = $region5
    $region4: #{tpu_custom_call.1} parent=1 // pred_region
      _
    $region5: #{tpu_custom_call.1} parent=1 // pred_fallthru
      _
    // Predicated region
    $region6: #{tpu_custom_call.1} parent=1 // pred_check
      _
    $region7: #{tpu_custom_call.1} parent=1 // pred_check_branch
      %21 = sbr.rel (0) target = $region9
    $region8: #{tpu_custom_call.1} parent=1 // pred_region
      %s23 = ssub.s32 512, 512
      %24 = vsyncadd [#allocation4], %s23
      %s25 = sshll.u32 [#allocation3], 4
      %s26 = int_to_ptr.vmem [resolvable:$true] %s25
      %31 = dma.hbm_to_vmem [thread:$0]  %s1, 512, %s26, [#allocation4], 256, 256, 16
    $region9: #{tpu_custom_call.1} parent=1 // pred_fallthru
      _
    // Predicated region
    $region10: #{tpu_custom_call.1} parent=1 // pred_check
      _
    $region11: #{tpu_custom_call.1} parent=1 // pred_check_branch
      %33 = sbr.rel (0) target = $region13
    $region12: #{tpu_custom_call.1} parent=1 // pred_region
      _
    $region13: #{tpu_custom_call.1} parent=1 // pred_fallthru
      _
    // Predicated region
    $region14: #{tpu_custom_call.1} parent=1 // pred_check
      _
    $region15: #{tpu_custom_call.1} parent=1 // pred_check_branch
      %35 = sbr.rel (0) target = $region17
    $region16: #{tpu_custom_call.1} parent=1 // pred_region
      _
    $region17: #{tpu_custom_call.1} parent=1 // pred_fallthru
      _
    // Predicated region
    $region18: #{tpu_custom_call.1} parent=1 // pred_check
      _
    $region19: #{tpu_custom_call.1} parent=1 // pred_check_branch
      %37 = sbr.rel (0) target = $region21
    $region20: #{tpu_custom_call.1} parent=1 // pred_region
      %s39 = ssub.s32 2048, 2048
      %40 = vsyncadd [#allocation6], %s39
      %s41 = sshll.u32 [#allocation5], 4
      %s42 = int_to_ptr.vmem [resolvable:$true] %s41
      %47 = dma.hbm_to_vmem [thread:$0]  %s4, 2048, %s42, [#allocation6], 256, 256, 16
    $region21: #{tpu_custom_call.1} parent=1 // pred_fallthru
      _
    // Predicated region
    $region22: #{tpu_custom_call.1} parent=1 // pred_check
      _
    $region23: #{tpu_custom_call.1} parent=1 // pred_check_branch
      %49 = sbr.rel (0) target = $region25
    $region24: #{tpu_custom_call.1} parent=1 // pred_region
      %s51 = ssub.s32 2048, 2048
      %52 = vsyncadd [#allocation6], %s51
      %s53 = sshll.u32 [#allocation7], 4
      %s54 = int_to_ptr.vmem [resolvable:$true] %s53
      %59 = dma.hbm_to_vmem [thread:$0]  %s5, 2048, %s54, [#allocation6], 256, 256, 16
    $region25: #{tpu_custom_call.1} parent=1 // pred_fallthru
      _
    // Predicated region
    $region26: #{tpu_custom_call.1} parent=1 // pred_check
      _
    $region27: #{tpu_custom_call.1} parent=1 // pred_check_branch
      %61 = sbr.rel (0) target = $region29
    $region28: #{tpu_custom_call.1} parent=1 // pred_region
      _
    $region29: #{tpu_custom_call.1} parent=1 // pred_fallthru
      _
    // Predicated region
    $region30: #{tpu_custom_call.1} parent=1 // pred_check
      _
    $region31: #{tpu_custom_call.1} parent=1 // pred_check_branch
      %63 = sbr.rel (0) target = $region33
    $region32: #{tpu_custom_call.1} parent=1 // pred_region
      _
    $region33: #{tpu_custom_call.1} parent=1 // pred_fallthru
      _
    // Predicated region
    $region34: #{tpu_custom_call.1} parent=1 // pred_check
      _
    $region35: #{tpu_custom_call.1} parent=1 // pred_check_branch
      %65 = sbr.rel (0) target = $region37
    $region36: #{tpu_custom_call.1} parent=1 // pred_region
      _
    $region37: #{tpu_custom_call.1} parent=1 // pred_fallthru
      _
    // Predicated region
    $region38: #{tpu_custom_call.1} parent=1 // pred_check
      _
    $region39: #{tpu_custom_call.1} parent=1 // pred_check_branch
      %67 = sbr.rel (0) target = $region41
    $region40: #{tpu_custom_call.1} parent=1 // pred_region
      %68 = dma.done [#allocation4], 512
    $region41: #{tpu_custom_call.1} parent=1 // pred_fallthru
      _
    // Predicated region
    $region42: #{tpu_custom_call.1} parent=1 // pred_check
      _
    $region43: #{tpu_custom_call.1} parent=1 // pred_check_branch
      %70 = sbr.rel (0) target = $region45
    $region44: #{tpu_custom_call.1} parent=1 // pred_region
      %71 = dma.done [#allocation6], 2048
    $region45: #{tpu_custom_call.1} parent=1 // pred_fallthru
      _
    // Predicated region
    $region46: #{tpu_custom_call.1} parent=1 // pred_check
      _
    $region47: #{tpu_custom_call.1} parent=1 // pred_check_branch
      %73 = sbr.rel (0) target = $region49
    $region48: #{tpu_custom_call.1} parent=1 // pred_region
      %74 = dma.done [#allocation6], 2048
    $region49: #{tpu_custom_call.1} parent=1 // pred_fallthru
      _
    %v75 = vld [vmem:[%s2] sm:$0xff]
    %v76 = vld [vmem:[%s2 + $0x8] sm:$0xff]
    %v77 = vld [vmem:[%s2 + $0x10] sm:$0xff]
    %v78 = vld [vmem:[%s2 + $0x18] sm:$0xff]
    %v79 = vld [vmem:[%s2 + $0x20] sm:$0xff]
    %v80 = vld [vmem:[%s2 + $0x28] sm:$0xff]
    %v81 = vld [vmem:[%s2 + $0x30] sm:$0xff]
    %v82 = vld [vmem:[%s2 + $0x38] sm:$0xff]
    %v83 = vld [vmem:[%s2 + $0x40] sm:$0xff]
    %v84 = vld [vmem:[%s2 + $0x48] sm:$0xff]
    %v85 = vld [vmem:[%s2 + $0x50] sm:$0xff]
    %v86 = vld [vmem:[%s2 + $0x58] sm:$0xff]
    %v87 = vld [vmem:[%s2 + $0x60] sm:$0xff]
    %v88 = vld [vmem:[%s2 + $0x68] sm:$0xff]
    %v89 = vld [vmem:[%s2 + $0x70] sm:$0xff]
    %v90 = vld [vmem:[%s2 + $0x78] sm:$0xff]
    %v91 = vld [vmem:[#allocation5] sm:$0xff]
    %v92 = vld [vmem:[#allocation5 + $0x8] sm:$0xff]
    %v93 = vld [vmem:[#allocation5 + $0x10] sm:$0xff]
    %v94 = vld [vmem:[#allocation5 + $0x18] sm:$0xff]
    %v95 = vld [vmem:[#allocation5 + $0x20] sm:$0xff]
    %v96 = vld [vmem:[#allocation5 + $0x28] sm:$0xff]
    %v97 = vld [vmem:[#allocation5 + $0x30] sm:$0xff]
    %v98 = vld [vmem:[#allocation5 + $0x38] sm:$0xff]
    %v99 = vld [vmem:[#allocation5 + $0x40] sm:$0xff]
    %v100 = vld [vmem:[#allocation5 + $0x48] sm:$0xff]
    %v101 = vld [vmem:[#allocation5 + $0x50] sm:$0xff]
    %v102 = vld [vmem:[#allocation5 + $0x58] sm:$0xff]
    %v103 = vld [vmem:[#allocation5 + $0x60] sm:$0xff]
    %v104 = vld [vmem:[#allocation5 + $0x68] sm:$0xff]
    %v105 = vld [vmem:[#allocation5 + $0x70] sm:$0xff]
    %v106 = vld [vmem:[#allocation5 + $0x78] sm:$0xff]
    %v107 = vld [vmem:[#allocation7] sm:$0xff]
    %v108 = vld [vmem:[#allocation7 + $0x8] sm:$0xff]
    %v109 = vld [vmem:[#allocation7 + $0x10] sm:$0xff]
    %v110 = vld [vmem:[#allocation7 + $0x18] sm:$0xff]
    %v111 = vld [vmem:[#allocation7 + $0x20] sm:$0xff]
    %v112 = vld [vmem:[#allocation7 + $0x28] sm:$0xff]
    %v113 = vld [vmem:[#allocation7 + $0x30] sm:$0xff]
    %v114 = vld [vmem:[#allocation7 + $0x38] sm:$0xff]
    %v115 = vld [vmem:[#allocation7 + $0x40] sm:$0xff]
    %v116 = vld [vmem:[#allocation7 + $0x48] sm:$0xff]
    %v117 = vld [vmem:[#allocation7 + $0x50] sm:$0xff]
    %v118 = vld [vmem:[#allocation7 + $0x58] sm:$0xff]
    %v119 = vld [vmem:[#allocation7 + $0x60] sm:$0xff]
    %v120 = vld [vmem:[#allocation7 + $0x68] sm:$0xff]
    %v121 = vld [vmem:[#allocation7 + $0x70] sm:$0xff]
    %v122 = vld [vmem:[#allocation7 + $0x78] sm:$0xff]
    %v123 = vld [vmem:[%s6] sm:$0x3]
    %v125 = vlaneseq
    %v126 = vshrl.u32 %v125, 7
    %v127 = vsub.s32 0, %v126
    %v128 = vrot.slane %v123, %v127
    %v129 = vlaneseq
    %v130 = vshrl.u32 %v129, 7
    %v131 = vsub.s32 1, %v130
    %v132 = vrot.slane %v123, %v131
    %v135 = vld [vmem:[%s0] sm:$0xff]
    %v136 = vld [vmem:[%s0 + $0x8] sm:$0xff]
    %v137 = vld [vmem:[%s0 + $0x10] sm:$0xff]
    %v138 = vld [vmem:[%s0 + $0x18] sm:$0xff]
    %v139 = vld [vmem:[%s0 + $0x20] sm:$0xff]
    %v140 = vld [vmem:[%s0 + $0x28] sm:$0xff]
    %v141 = vld [vmem:[%s0 + $0x30] sm:$0xff]
    %v142 = vld [vmem:[%s0 + $0x38] sm:$0xff]
    %v143 = vld [vmem:[#allocation3] sm:$0xff]
    %v144 = vld [vmem:[#allocation3 + $0x8] sm:$0xff]
    %v145 = vld [vmem:[#allocation3 + $0x10] sm:$0xff]
    %v146 = vld [vmem:[#allocation3 + $0x18] sm:$0xff]
    %v147 = vld [vmem:[%s3] sm:$0x3]
    %v149 = vlaneseq
    %v150 = vshrl.u32 %v149, 7
    %v151 = vsub.s32 0, %v150
    %v152 = vrot.slane %v147, %v151
    %v153 = vlaneseq
    %v154 = vshrl.u32 %v153, 7
    %v155 = vsub.s32 1, %v154
    %v156 = vrot.slane %v147, %v155
    %vm159 = vcmask 130048
    %v161 = vsel %vm159, %v135, 0
    %v164 = vsel %vm159, %v136, 0
    %v167 = vsel %vm159, %v137, 0
    %v170 = vsel %vm159, %v138, 0
    %v173 = vsel %vm159, %v139, 0
    %v176 = vsel %vm159, %v140, 0
    %v179 = vsel %vm159, %v141, 0
    %v182 = vsel %vm159, %v142, 0
    %184 = vmatprep.subr.mxu0 0.0
    %185 = vmatpush1.msra.mxu0 0.0
    %186 = vmatprep.subr.mxu0 0.0
    %187 = vmatpush1.msra.mxu0 0.0
    %188 = vmatprep.subr.mxu0 0.0
    %189 = vmatpush1.msra.mxu0 0.0
    %190 = vmatprep.subr.mxu0 0.0
    %191 = vmatpush1.msra.mxu0 0.0
    %192 = vmatprep.subr.mxu0 0.0
    %193 = vmatpush1.msra.mxu0 0.0
    %194 = vmatprep.subr.mxu0 0.0
    %195 = vmatpush1.msra.mxu0 0.0
    %196 = vmatprep.subr.mxu0 0.0
    %197 = vmatpush1.msra.mxu0 0.0
    %198 = vmatprep.subr.mxu0 0.0
    %199 = vmatpush1.msra.mxu0 0.0
    %200 = vmatprep.subr.mxu0 0.0
    %201 = vmatpush1.msra.mxu0 0.0
    %202 = vmatprep.subr.mxu0 0.0
    %203 = vmatpush1.msra.mxu0 0.0
    %204 = vmatprep.subr.mxu0 0.0
    %205 = vmatpush1.msra.mxu0 0.0
    %206 = vmatprep.subr.mxu0 0.0
    %207 = vmatpush1.msra.mxu0 0.0
    %208 = vmatprep.subr.mxu0 0.0
    %209 = vmatpush1.msra.mxu0 0.0
    %210 = vmatprep.subr.mxu0 0.0
    %211 = vmatpush1.msra.mxu0 0.0
    %212 = vmatprep.subr.mxu0 %v146
    %213 = vmatpush1.msra.mxu0 %v145
    %214 = vmatprep.subr.mxu0 %v144
    %215 = vmatpush1.msra.mxu0 %v143
    %216 = vmatprep.subr.mxu0 0.0
    %217 = vmatpush2.msra.mxu0 0.0
    %218 = vmatprep.subr.mxu0 0.0
    %219 = vmatpush2.msra.mxu0 0.0
    %220 = vmatprep.subr.mxu0 0.0
    %221 = vmatpush2.msra.mxu0 0.0
    %222 = vmatprep.subr.mxu0 0.0
    %223 = vmatpush2.msra.mxu0 0.0
    %224 = vmatprep.subr.mxu0 0.0
    %225 = vmatpush2.msra.mxu0 0.0
    %226 = vmatprep.subr.mxu0 0.0
    %227 = vmatpush2.msra.mxu0 0.0
    %228 = vmatprep.subr.mxu0 0.0
    %229 = vmatpush2.msra.mxu0 0.0
    %230 = vmatprep.subr.mxu0 0.0
    %231 = vmatpush2.msra.mxu0 0.0
    %232 = vmatprep.subr.mxu0 0.0
    %233 = vmatpush2.msra.mxu0 0.0
    %234 = vmatprep.subr.mxu0 0.0
    %235 = vmatpush2.msra.mxu0 0.0
    %236 = vmatprep.subr.mxu0 0.0
    %237 = vmatpush2.msra.mxu0 0.0
    %238 = vmatprep.subr.mxu0 0.0
    %239 = vmatpush2.msra.mxu0 0.0
    %240 = vmatprep.subr.mxu0 0.0
    %241 = vmatpush2.msra.mxu0 0.0
    %242 = vmatprep.subr.mxu0 0.0
    %243 = vmatpush2.msra.mxu0 0.0
    %244 = vmatprep.subr.mxu0 0.0
    %245 = vmatpush2.msra.mxu0 0.0
    %246 = vmatprep.subr.mxu0 0.0
    %247 = vmatpush2.msra.mxu0 0.0
    %248 = vmatprep.mubr.f32.mxu0 0.0
    %249 = vmatmul.mubr.f32.gmra.mxu0 %v161
    %v250 = vpop.f32.mrf.mxu0
    %v251 = vadd.f32 %v152, %v250
    %v252 = vpop.f32.mrf.mxu0
    %v253 = vadd.f32 %v156, %v252
    %254 = vmatprep.mubr.f32.mxu0 0.0
    %255 = vmatmul.mubr.f32.gmra.mxu0 %v164
    %v256 = vpop.f32.mrf.mxu0
    %v257 = vadd.f32 %v152, %v256
    %v258 = vpop.f32.mrf.mxu0
    %v259 = vadd.f32 %v156, %v258
    %260 = vmatprep.mubr.f32.mxu0 0.0
    %261 = vmatmul.mubr.f32.gmra.mxu0 %v167
    %v262 = vpop.f32.mrf.mxu0
    %v263 = vadd.f32 %v152, %v262
    %v264 = vpop.f32.mrf.mxu0
    %v265 = vadd.f32 %v156, %v264
    %266 = vmatprep.mubr.f32.mxu0 0.0
    %267 = vmatmul.mubr.f32.gmra.mxu0 %v170
    %v268 = vpop.f32.mrf.mxu0
    %v269 = vadd.f32 %v152, %v268
    %v270 = vpop.f32.mrf.mxu0
    %v271 = vadd.f32 %v156, %v270
    %272 = vmatprep.mubr.f32.mxu0 0.0
    %273 = vmatmul.mubr.f32.gmra.mxu0 %v173
    %v274 = vpop.f32.mrf.mxu0
    %v275 = vadd.f32 %v152, %v274
    %v276 = vpop.f32.mrf.mxu0
    %v277 = vadd.f32 %v156, %v276
    %278 = vmatprep.mubr.f32.mxu0 0.0
    %279 = vmatmul.mubr.f32.gmra.mxu0 %v176
    %v280 = vpop.f32.mrf.mxu0
    %v281 = vadd.f32 %v152, %v280
    %v282 = vpop.f32.mrf.mxu0
    %v283 = vadd.f32 %v156, %v282
    %284 = vmatprep.mubr.f32.mxu0 0.0
    %285 = vmatmul.mubr.f32.gmra.mxu0 %v179
    %v286 = vpop.f32.mrf.mxu0
    %v287 = vadd.f32 %v152, %v286
    %v288 = vpop.f32.mrf.mxu0
    %v289 = vadd.f32 %v156, %v288
    %290 = vmatprep.mubr.f32.mxu0 0.0
    %291 = vmatmul.mubr.f32.gmra.mxu0 %v182
    %v292 = vpop.f32.mrf.mxu0
    %v293 = vadd.f32 %v152, %v292
    %v294 = vpop.f32.mrf.mxu0
    %v295 = vadd.f32 %v156, %v294
    %296 = vdwg.mxu0
    %vm297 = vcmask 523264
    %v299 = vsel %vm297, 0.0, 0
    %301 = vmatprep.subr.mxu0 0.0
    %302 = vmatpush1.msra.mxu0 0.0
    %303 = vmatprep.subr.mxu0 0.0
    %304 = vmatpush1.msra.mxu0 0.0
    %305 = vmatprep.subr.mxu0 0.0
    %306 = vmatpush1.msra.mxu0 0.0
    %307 = vmatprep.subr.mxu0 0.0
    %308 = vmatpush1.msra.mxu0 0.0
    %309 = vmatprep.subr.mxu0 0.0
    %310 = vmatpush1.msra.mxu0 0.0
    %311 = vmatprep.subr.mxu0 0.0
    %312 = vmatpush1.msra.mxu0 0.0
    %313 = vmatprep.subr.mxu0 0.0
    %314 = vmatpush1.msra.mxu0 0.0
    %315 = vmatprep.subr.mxu0 0.0
    %316 = vmatpush1.msra.mxu0 0.0
    %317 = vmatprep.subr.mxu0 %v90
    %318 = vmatpush1.msra.mxu0 %v89
    %319 = vmatprep.subr.mxu0 %v88
    %320 = vmatpush1.msra.mxu0 %v87
    %321 = vmatprep.subr.mxu0 %v86
    %322 = vmatpush1.msra.mxu0 %v85
    %323 = vmatprep.subr.mxu0 %v84
    %324 = vmatpush1.msra.mxu0 %v83
    %325 = vmatprep.subr.mxu0 %v82
    %326 = vmatpush1.msra.mxu0 %v81
    %327 = vmatprep.subr.mxu0 %v80
    %328 = vmatpush1.msra.mxu0 %v79
    %329 = vmatprep.subr.mxu0 %v78
    %330 = vmatpush1.msra.mxu0 %v77
    %331 = vmatprep.subr.mxu0 %v76
    %332 = vmatpush1.msra.mxu0 %v75
    %333 = vmatprep.subr.mxu0 0.0
    %334 = vmatpush2.msra.mxu0 0.0
    %335 = vmatprep.subr.mxu0 0.0
    %336 = vmatpush2.msra.mxu0 0.0
    %337 = vmatprep.subr.mxu0 0.0
    %338 = vmatpush2.msra.mxu0 0.0
    %339 = vmatprep.subr.mxu0 0.0
    %340 = vmatpush2.msra.mxu0 0.0
    %341 = vmatprep.subr.mxu0 0.0
    %342 = vmatpush2.msra.mxu0 0.0
    %343 = vmatprep.subr.mxu0 0.0
    %344 = vmatpush2.msra.mxu0 0.0
    %345 = vmatprep.subr.mxu0 0.0
    %346 = vmatpush2.msra.mxu0 0.0
    %347 = vmatprep.subr.mxu0 0.0
    %348 = vmatpush2.msra.mxu0 0.0
    %349 = vmatprep.subr.mxu0 0.0
    %350 = vmatpush2.msra.mxu0 0.0
    %351 = vmatprep.subr.mxu0 0.0
    %352 = vmatpush2.msra.mxu0 0.0
    %353 = vmatprep.subr.mxu0 0.0
    %354 = vmatpush2.msra.mxu0 0.0
    %355 = vmatprep.subr.mxu0 0.0
    %356 = vmatpush2.msra.mxu0 0.0
    %357 = vmatprep.subr.mxu0 0.0
    %358 = vmatpush2.msra.mxu0 0.0
    %359 = vmatprep.subr.mxu0 0.0
    %360 = vmatpush2.msra.mxu0 0.0
    %361 = vmatprep.subr.mxu0 0.0
    %362 = vmatpush2.msra.mxu0 0.0
    %363 = vmatprep.subr.mxu0 0.0
    %364 = vmatpush2.msra.mxu0 0.0
    %365 = vmatprep.mubr.f32.mxu0 0.0
    %366 = vmatmul.mubr.f32.gmra.mxu0 %v299
    %v367 = vpop.f32.mrf.mxu0
    %v368 = vadd.f32 0.0, %v367
    %v369 = vpop.f32.mrf.mxu0
    %v370 = vadd.f32 0.0, %v369
    %371 = vdwg.mxu0
    %v372 = vadd.f32 %v251, %v368
    %v373 = vadd.f32 %v253, %v370
    %v374 = vxor.u32 %v372, 2147483648
    %v375 = vxor.u32 %v373, 2147483648
    %v376 = vmul.f32 %v374, 1.442695
    %v377 = vpow.pop %v376
    %v378 = vmul.f32 %v375, 1.442695
    %v379 = vpow.pop %v378
    %v380 = vadd.f32 %v377, 1.0
    %v381 = vadd.f32 %v379, 1.0
    %v382 = vrcp.pop %v380
    %v383 = vmul.f32 1.0, %v382
    %v384 = vrcp.pop %v381
    %v385 = vmul.f32 1.0, %v384
    %v386 = vtanh.pop %v373
    %v387 = vmul.f32 %v383, 0.0
    %389 = vrot.lane.b32.xlu0 %v386, 64
    %v390 = vpop.permute.xlu0 %389
    %v392 = vmul.f32 %v383, %v390
    %394 = vrot.lane.b32.xlu0 %v392, 64
    %v395 = vpop.permute.xlu0 %394
    %v397 = vadd.f32 %v387, %v395
    %v398 = vtanh.pop %v397
    %400 = vrot.lane.b32.xlu0 %v398, 64
    %v401 = vpop.permute.xlu0 %400
    %v403 = vmul.f32 %v385, %v401
    %404 = vmatprep.subr.mxu0 0.0
    %405 = vmatpush1.msra.mxu0 0.0
    %406 = vmatprep.subr.mxu0 0.0
    %407 = vmatpush1.msra.mxu0 0.0
    %408 = vmatprep.subr.mxu0 0.0
    %409 = vmatpush1.msra.mxu0 0.0
    %410 = vmatprep.subr.mxu0 0.0
    %411 = vmatpush1.msra.mxu0 0.0
    %412 = vmatprep.subr.mxu0 0.0
    %413 = vmatpush1.msra.mxu0 0.0
    %414 = vmatprep.subr.mxu0 0.0
    %415 = vmatpush1.msra.mxu0 0.0
    %416 = vmatprep.subr.mxu0 0.0
    %417 = vmatpush1.msra.mxu0 0.0
    %418 = vmatprep.subr.mxu0 0.0
    %419 = vmatpush1.msra.mxu0 0.0
    %420 = vmatprep.subr.mxu0 %v122
    %421 = vmatpush1.msra.mxu0 %v121
    %422 = vmatprep.subr.mxu0 %v120
    %423 = vmatpush1.msra.mxu0 %v119
    %424 = vmatprep.subr.mxu0 %v118
    %425 = vmatpush1.msra.mxu0 %v117
    %426 = vmatprep.subr.mxu0 %v116
    %427 = vmatpush1.msra.mxu0 %v115
    %428 = vmatprep.subr.mxu0 %v114
    %429 = vmatpush1.msra.mxu0 %v113
    %430 = vmatprep.subr.mxu0 %v112
    %431 = vmatpush1.msra.mxu0 %v111
    %432 = vmatprep.subr.mxu0 %v110
    %433 = vmatpush1.msra.mxu0 %v109
    %434 = vmatprep.subr.mxu0 %v108
    %435 = vmatpush1.msra.mxu0 %v107
    %436 = vmatprep.subr.mxu0 0.0
    %437 = vmatpush2.msra.mxu0 0.0
    %438 = vmatprep.subr.mxu0 0.0
    %439 = vmatpush2.msra.mxu0 0.0
    %440 = vmatprep.subr.mxu0 0.0
    %441 = vmatpush2.msra.mxu0 0.0
    %442 = vmatprep.subr.mxu0 0.0
    %443 = vmatpush2.msra.mxu0 0.0
    %444 = vmatprep.subr.mxu0 0.0
    %445 = vmatpush2.msra.mxu0 0.0
    %446 = vmatprep.subr.mxu0 0.0
    %447 = vmatpush2.msra.mxu0 0.0
    %448 = vmatprep.subr.mxu0 0.0
    %449 = vmatpush2.msra.mxu0 0.0
    %450 = vmatprep.subr.mxu0 0.0
    %451 = vmatpush2.msra.mxu0 0.0
    %452 = vmatprep.subr.mxu0 0.0
    %453 = vmatpush2.msra.mxu0 0.0
    %454 = vmatprep.subr.mxu0 0.0
    %455 = vmatpush2.msra.mxu0 0.0
    %456 = vmatprep.subr.mxu0 0.0
    %457 = vmatpush2.msra.mxu0 0.0
    %458 = vmatprep.subr.mxu0 0.0
    %459 = vmatpush2.msra.mxu0 0.0
    %460 = vmatprep.subr.mxu0 0.0
    %461 = vmatpush2.msra.mxu0 0.0
    %462 = vmatprep.subr.mxu0 0.0
    %463 = vmatpush2.msra.mxu0 0.0
    %464 = vmatprep.subr.mxu0 0.0
    %465 = vmatpush2.msra.mxu0 0.0
    %466 = vmatprep.subr.mxu0 0.0
    %467 = vmatpush2.msra.mxu0 0.0
    %468 = vmatprep.mubr.f32.mxu0 0.0
    %469 = vmatmul.mubr.f32.gmra.mxu0 %v299
    %v470 = vpop.f32.mrf.mxu0
    %v471 = vadd.f32 0.0, %v470
    %v472 = vpop.f32.mrf.mxu0
    %v473 = vadd.f32 0.0, %v472
    %474 = vdwg.mxu0
    %v476 = vsel %vm297, %v403, 0
    %478 = vmatprep.subr.mxu0 0.0
    %479 = vmatpush1.msra.mxu0 0.0
    %480 = vmatprep.subr.mxu0 0.0
    %481 = vmatpush1.msra.mxu0 0.0
    %482 = vmatprep.subr.mxu0 0.0
    %483 = vmatpush1.msra.mxu0 0.0
    %484 = vmatprep.subr.mxu0 0.0
    %485 = vmatpush1.msra.mxu0 0.0
    %486 = vmatprep.subr.mxu0 0.0
    %487 = vmatpush1.msra.mxu0 0.0
    %488 = vmatprep.subr.mxu0 0.0
    %489 = vmatpush1.msra.mxu0 0.0
    %490 = vmatprep.subr.mxu0 0.0
    %491 = vmatpush1.msra.mxu0 0.0
    %492 = vmatprep.subr.mxu0 0.0
    %493 = vmatpush1.msra.mxu0 0.0
    %494 = vmatprep.subr.mxu0 %v106
    %495 = vmatpush1.msra.mxu0 %v105
    %496 = vmatprep.subr.mxu0 %v104
    %497 = vmatpush1.msra.mxu0 %v103
    %498 = vmatprep.subr.mxu0 %v102
    %499 = vmatpush1.msra.mxu0 %v101
    %500 = vmatprep.subr.mxu0 %v100
    %501 = vmatpush1.msra.mxu0 %v99
    %502 = vmatprep.subr.mxu0 %v98
    %503 = vmatpush1.msra.mxu0 %v97
    %504 = vmatprep.subr.mxu0 %v96
    %505 = vmatpush1.msra.mxu0 %v95
    %506 = vmatprep.subr.mxu0 %v94
    %507 = vmatpush1.msra.mxu0 %v93
    %508 = vmatprep.subr.mxu0 %v92
    %509 = vmatpush1.msra.mxu0 %v91
    %510 = vmatprep.subr.mxu0 0.0
    %511 = vmatpush2.msra.mxu0 0.0
    %512 = vmatprep.subr.mxu0 0.0
    %513 = vmatpush2.msra.mxu0 0.0
    %514 = vmatprep.subr.mxu0 0.0
    %515 = vmatpush2.msra.mxu0 0.0
    %516 = vmatprep.subr.mxu0 0.0
    %517 = vmatpush2.msra.mxu0 0.0
    %518 = vmatprep.subr.mxu0 0.0
    %519 = vmatpush2.msra.mxu0 0.0
    %520 = vmatprep.subr.mxu0 0.0
    %521 = vmatpush2.msra.mxu0 0.0
    %522 = vmatprep.subr.mxu0 0.0
    %523 = vmatpush2.msra.mxu0 0.0
    %524 = vmatprep.subr.mxu0 0.0
    %525 = vmatpush2.msra.mxu0 0.0
    %526 = vmatprep.subr.mxu0 0.0
    %527 = vmatpush2.msra.mxu0 0.0
    %528 = vmatprep.subr.mxu0 0.0
    %529 = vmatpush2.msra.mxu0 0.0
    %530 = vmatprep.subr.mxu0 0.0
    %531 = vmatpush2.msra.mxu0 0.0
    %532 = vmatprep.subr.mxu0 0.0
    %533 = vmatpush2.msra.mxu0 0.0
    %534 = vmatprep.subr.mxu0 0.0
    %535 = vmatpush2.msra.mxu0 0.0
    %536 = vmatprep.subr.mxu0 0.0
    %537 = vmatpush2.msra.mxu0 0.0
    %538 = vmatprep.subr.mxu0 0.0
    %539 = vmatpush2.msra.mxu0 0.0
    %540 = vmatprep.subr.mxu0 0.0
    %541 = vmatpush2.msra.mxu0 0.0
    %542 = vmatprep.mubr.f32.mxu0 0.0
    %543 = vmatmul.mubr.f32.gmra.mxu0 %v476
    %v544 = vpop.f32.mrf.mxu0
    %v545 = vadd.f32 %v471, %v544
    %v546 = vpop.f32.mrf.mxu0
    %v547 = vadd.f32 %v473, %v546
    %548 = vdwg.mxu0
    %v549 = vadd.f32 %v545, %v128
    %v550 = vadd.f32 %v547, %v132
    %v551 = vxor.u32 %v549, 2147483648
    %v552 = vxor.u32 %v550, 2147483648
    %v553 = vmul.f32 %v551, 1.442695
    %v554 = vpow.pop %v553
    %v555 = vmul.f32 %v552, 1.442695
    %v556 = vpow.pop %v555
    %v557 = vadd.f32 %v554, 1.0
    %v558 = vadd.f32 %v556, 1.0
    %v559 = vrcp.pop %v557
    %v560 = vmul.f32 1.0, %v559
    %v561 = vrcp.pop %v558
    %v562 = vmul.f32 1.0, %v561
    %v563 = vtanh.pop %v550
    %v564 = vmul.f32 %v560, 0.0
    %566 = vrot.lane.b32.xlu0 %v563, 64
    %v567 = vpop.permute.xlu0 %566
    %v569 = vmul.f32 %v560, %v567
    %571 = vrot.lane.b32.xlu0 %v569, 64
    %v572 = vpop.permute.xlu0 %571
    %v574 = vadd.f32 %v564, %v572
    %v575 = vtanh.pop %v574
    %577 = vrot.lane.b32.xlu0 %v575, 64
    %v578 = vpop.permute.xlu0 %577
    %v580 = vmul.f32 %v562, %v578
    %581 = vmatprep.subr.mxu0 0.0
    %582 = vmatpush1.msra.mxu0 0.0
    %583 = vmatprep.subr.mxu0 0.0
    %584 = vmatpush1.msra.mxu0 0.0
    %585 = vmatprep.subr.mxu0 0.0
    %586 = vmatpush1.msra.mxu0 0.0
    %587 = vmatprep.subr.mxu0 0.0
    %588 = vmatpush1.msra.mxu0 0.0
    %589 = vmatprep.subr.mxu0 0.0
    %590 = vmatpush1.msra.mxu0 0.0
    %591 = vmatprep.subr.mxu0 0.0
    %592 = vmatpush1.msra.mxu0 0.0
    %593 = vmatprep.subr.mxu0 0.0
    %594 = vmatpush1.msra.mxu0 0.0
    %595 = vmatprep.subr.mxu0 0.0
    %596 = vmatpush1.msra.mxu0 0.0
    %597 = vmatprep.subr.mxu0 %v90
    %598 = vmatpush1.msra.mxu0 %v89
    %599 = vmatprep.subr.mxu0 %v88
    %600 = vmatpush1.msra.mxu0 %v87
    %601 = vmatprep.subr.mxu0 %v86
    %602 = vmatpush1.msra.mxu0 %v85
    %603 = vmatprep.subr.mxu0 %v84
    %604 = vmatpush1.msra.mxu0 %v83
    %605 = vmatprep.subr.mxu0 %v82
    %606 = vmatpush1.msra.mxu0 %v81
    %607 = vmatprep.subr.mxu0 %v80
    %608 = vmatpush1.msra.mxu0 %v79
    %609 = vmatprep.subr.mxu0 %v78
    %610 = vmatpush1.msra.mxu0 %v77
    %611 = vmatprep.subr.mxu0 %v76
    %612 = vmatpush1.msra.mxu0 %v75
    %613 = vmatprep.subr.mxu0 0.0
    %614 = vmatpush2.msra.mxu0 0.0
    %615 = vmatprep.subr.mxu0 0.0
    %616 = vmatpush2.msra.mxu0 0.0
    %617 = vmatprep.subr.mxu0 0.0
    %618 = vmatpush2.msra.mxu0 0.0
    %619 = vmatprep.subr.mxu0 0.0
    %620 = vmatpush2.msra.mxu0 0.0
    %621 = vmatprep.subr.mxu0 0.0
    %622 = vmatpush2.msra.mxu0 0.0
    %623 = vmatprep.subr.mxu0 0.0
    %624 = vmatpush2.msra.mxu0 0.0
    %625 = vmatprep.subr.mxu0 0.0
    %626 = vmatpush2.msra.mxu0 0.0
    %627 = vmatprep.subr.mxu0 0.0
    %628 = vmatpush2.msra.mxu0 0.0
    %629 = vmatprep.subr.mxu0 0.0
    %630 = vmatpush2.msra.mxu0 0.0
    %631 = vmatprep.subr.mxu0 0.0
    %632 = vmatpush2.msra.mxu0 0.0
    %633 = vmatprep.subr.mxu0 0.0
    %634 = vmatpush2.msra.mxu0 0.0
    %635 = vmatprep.subr.mxu0 0.0
    %636 = vmatpush2.msra.mxu0 0.0
    %637 = vmatprep.subr.mxu0 0.0
    %638 = vmatpush2.msra.mxu0 0.0
    %639 = vmatprep.subr.mxu0 0.0
    %640 = vmatpush2.msra.mxu0 0.0
    %641 = vmatprep.subr.mxu0 0.0
    %642 = vmatpush2.msra.mxu0 0.0
    %643 = vmatprep.subr.mxu0 0.0
    %644 = vmatpush2.msra.mxu0 0.0
    %645 = vmatprep.mubr.f32.mxu0 0.0
    %646 = vmatmul.mubr.f32.gmra.mxu0 %v476
    %v647 = vpop.f32.mrf.mxu0
    %v648 = vadd.f32 0.0, %v647
    %v649 = vpop.f32.mrf.mxu0
    %v650 = vadd.f32 0.0, %v649
    %651 = vdwg.mxu0
    %v652 = vadd.f32 %v257, %v648
    %v653 = vadd.f32 %v259, %v650
    %v654 = vxor.u32 %v652, 2147483648
    %v655 = vxor.u32 %v653, 2147483648
    %v656 = vmul.f32 %v654, 1.442695
    %v657 = vpow.pop %v656
    %v658 = vmul.f32 %v655, 1.442695
    %v659 = vpow.pop %v658
    %v660 = vadd.f32 %v657, 1.0
    %v661 = vadd.f32 %v659, 1.0
    %v662 = vrcp.pop %v660
    %v663 = vmul.f32 1.0, %v662
    %v664 = vrcp.pop %v661
    %v665 = vmul.f32 1.0, %v664
    %v666 = vtanh.pop %v653
    %v667 = vmul.f32 %v663, %v397
    %669 = vrot.lane.b32.xlu0 %v666, 64
    %v670 = vpop.permute.xlu0 %669
    %v672 = vmul.f32 %v663, %v670
    %674 = vrot.lane.b32.xlu0 %v672, 64
    %v675 = vpop.permute.xlu0 %674
    %v677 = vadd.f32 %v667, %v675
    %v678 = vtanh.pop %v677
    %680 = vrot.lane.b32.xlu0 %v678, 64
    %v681 = vpop.permute.xlu0 %680
    %v683 = vmul.f32 %v665, %v681
    %v685 = vsel %vm297, %v580, 0
    %687 = vmatprep.subr.mxu0 0.0
    %688 = vmatpush1.msra.mxu0 0.0
    %689 = vmatprep.subr.mxu0 0.0
    %690 = vmatpush1.msra.mxu0 0.0
    %691 = vmatprep.subr.mxu0 0.0
    %692 = vmatpush1.msra.mxu0 0.0
    %693 = vmatprep.subr.mxu0 0.0
    %694 = vmatpush1.msra.mxu0 0.0
    %695 = vmatprep.subr.mxu0 0.0
    %696 = vmatpush1.msra.mxu0 0.0
    %697 = vmatprep.subr.mxu0 0.0
    %698 = vmatpush1.msra.mxu0 0.0
    %699 = vmatprep.subr.mxu0 0.0
    %700 = vmatpush1.msra.mxu0 0.0
    %701 = vmatprep.subr.mxu0 0.0
    %702 = vmatpush1.msra.mxu0 0.0
    %703 = vmatprep.subr.mxu0 %v122
    %704 = vmatpush1.msra.mxu0 %v121
    %705 = vmatprep.subr.mxu0 %v120
    %706 = vmatpush1.msra.mxu0 %v119
    %707 = vmatprep.subr.mxu0 %v118
    %708 = vmatpush1.msra.mxu0 %v117
    %709 = vmatprep.subr.mxu0 %v116
    %710 = vmatpush1.msra.mxu0 %v115
    %711 = vmatprep.subr.mxu0 %v114
    %712 = vmatpush1.msra.mxu0 %v113
    %713 = vmatprep.subr.mxu0 %v112
    %714 = vmatpush1.msra.mxu0 %v111
    %715 = vmatprep.subr.mxu0 %v110
    %716 = vmatpush1.msra.mxu0 %v109
    %717 = vmatprep.subr.mxu0 %v108
    %718 = vmatpush1.msra.mxu0 %v107
    %719 = vmatprep.subr.mxu0 0.0
    %720 = vmatpush2.msra.mxu0 0.0
    %721 = vmatprep.subr.mxu0 0.0
    %722 = vmatpush2.msra.mxu0 0.0
    %723 = vmatprep.subr.mxu0 0.0
    %724 = vmatpush2.msra.mxu0 0.0
    %725 = vmatprep.subr.mxu0 0.0
    %726 = vmatpush2.msra.mxu0 0.0
    %727 = vmatprep.subr.mxu0 0.0
    %728 = vmatpush2.msra.mxu0 0.0
    %729 = vmatprep.subr.mxu0 0.0
    %730 = vmatpush2.msra.mxu0 0.0
    %731 = vmatprep.subr.mxu0 0.0
    %732 = vmatpush2.msra.mxu0 0.0
    %733 = vmatprep.subr.mxu0 0.0
    %734 = vmatpush2.msra.mxu0 0.0
    %735 = vmatprep.subr.mxu0 0.0
    %736 = vmatpush2.msra.mxu0 0.0
    %737 = vmatprep.subr.mxu0 0.0
    %738 = vmatpush2.msra.mxu0 0.0
    %739 = vmatprep.subr.mxu0 0.0
    %740 = vmatpush2.msra.mxu0 0.0
    %741 = vmatprep.subr.mxu0 0.0
    %742 = vmatpush2.msra.mxu0 0.0
    %743 = vmatprep.subr.mxu0 0.0
    %744 = vmatpush2.msra.mxu0 0.0
    %745 = vmatprep.subr.mxu0 0.0
    %746 = vmatpush2.msra.mxu0 0.0
    %747 = vmatprep.subr.mxu0 0.0
    %748 = vmatpush2.msra.mxu0 0.0
    %749 = vmatprep.subr.mxu0 0.0
    %750 = vmatpush2.msra.mxu0 0.0
    %751 = vmatprep.mubr.f32.mxu0 0.0
    %752 = vmatmul.mubr.f32.gmra.mxu0 %v685
    %v753 = vpop.f32.mrf.mxu0
    %v754 = vadd.f32 0.0, %v753
    %v755 = vpop.f32.mrf.mxu0
    %v756 = vadd.f32 0.0, %v755
    %757 = vdwg.mxu0
    %v759 = vsel %vm297, %v683, 0
    %761 = vmatprep.subr.mxu0 0.0
    %762 = vmatpush1.msra.mxu0 0.0
    %763 = vmatprep.subr.mxu0 0.0
    %764 = vmatpush1.msra.mxu0 0.0
    %765 = vmatprep.subr.mxu0 0.0
    %766 = vmatpush1.msra.mxu0 0.0
    %767 = vmatprep.subr.mxu0 0.0
    %768 = vmatpush1.msra.mxu0 0.0
    %769 = vmatprep.subr.mxu0 0.0
    %770 = vmatpush1.msra.mxu0 0.0
    %771 = vmatprep.subr.mxu0 0.0
    %772 = vmatpush1.msra.mxu0 0.0
    %773 = vmatprep.subr.mxu0 0.0
    %774 = vmatpush1.msra.mxu0 0.0
    %775 = vmatprep.subr.mxu0 0.0
    %776 = vmatpush1.msra.mxu0 0.0
    %777 = vmatprep.subr.mxu0 %v106
    %778 = vmatpush1.msra.mxu0 %v105
    %779 = vmatprep.subr.mxu0 %v104
    %780 = vmatpush1.msra.mxu0 %v103
    %781 = vmatprep.subr.mxu0 %v102
    %782 = vmatpush1.msra.mxu0 %v101
    %783 = vmatprep.subr.mxu0 %v100
    %784 = vmatpush1.msra.mxu0 %v99
    %785 = vmatprep.subr.mxu0 %v98
    %786 = vmatpush1.msra.mxu0 %v97
    %787 = vmatprep.subr.mxu0 %v96
    %788 = vmatpush1.msra.mxu0 %v95
    %789 = vmatprep.subr.mxu0 %v94
    %790 = vmatpush1.msra.mxu0 %v93
    %791 = vmatprep.subr.mxu0 %v92
    %792 = vmatpush1.msra.mxu0 %v91
    %793 = vmatprep.subr.mxu0 0.0
    %794 = vmatpush2.msra.mxu0 0.0
    %795 = vmatprep.subr.mxu0 0.0
    %796 = vmatpush2.msra.mxu0 0.0
    %797 = vmatprep.subr.mxu0 0.0
    %798 = vmatpush2.msra.mxu0 0.0
    %799 = vmatprep.subr.mxu0 0.0
    %800 = vmatpush2.msra.mxu0 0.0
    %801 = vmatprep.subr.mxu0 0.0
    %802 = vmatpush2.msra.mxu0 0.0
    %803 = vmatprep.subr.mxu0 0.0
    %804 = vmatpush2.msra.mxu0 0.0
    %805 = vmatprep.subr.mxu0 0.0
    %806 = vmatpush2.msra.mxu0 0.0
    %807 = vmatprep.subr.mxu0 0.0
    %808 = vmatpush2.msra.mxu0 0.0
    %809 = vmatprep.subr.mxu0 0.0
    %810 = vmatpush2.msra.mxu0 0.0
    %811 = vmatprep.subr.mxu0 0.0
    %812 = vmatpush2.msra.mxu0 0.0
    %813 = vmatprep.subr.mxu0 0.0
    %814 = vmatpush2.msra.mxu0 0.0
    %815 = vmatprep.subr.mxu0 0.0
    %816 = vmatpush2.msra.mxu0 0.0
    %817 = vmatprep.subr.mxu0 0.0
    %818 = vmatpush2.msra.mxu0 0.0
    %819 = vmatprep.subr.mxu0 0.0
    %820 = vmatpush2.msra.mxu0 0.0
    %821 = vmatprep.subr.mxu0 0.0
    %822 = vmatpush2.msra.mxu0 0.0
    %823 = vmatprep.subr.mxu0 0.0
    %824 = vmatpush2.msra.mxu0 0.0
    %825 = vmatprep.mubr.f32.mxu0 0.0
    %826 = vmatmul.mubr.f32.gmra.mxu0 %v759
    %v827 = vpop.f32.mrf.mxu0
    %v828 = vadd.f32 %v754, %v827
    %v829 = vpop.f32.mrf.mxu0
    %v830 = vadd.f32 %v756, %v829
    %831 = vdwg.mxu0
    %v832 = vadd.f32 %v828, %v128
    %v833 = vadd.f32 %v830, %v132
    %v834 = vxor.u32 %v832, 2147483648
    %v835 = vxor.u32 %v833, 2147483648
    %v836 = vmul.f32 %v834, 1.442695
    %v837 = vpow.pop %v836
    %v838 = vmul.f32 %v835, 1.442695
    %v839 = vpow.pop %v838
    %v840 = vadd.f32 %v837, 1.0
    %v841 = vadd.f32 %v839, 1.0
    %v842 = vrcp.pop %v840
    %v843 = vmul.f32 1.0, %v842
    %v844 = vrcp.pop %v841
    %v845 = vmul.f32 1.0, %v844
    %v846 = vtanh.pop %v833
    %v847 = vmul.f32 %v843, %v574
    %849 = vrot.lane.b32.xlu0 %v846, 64
    %v850 = vpop.permute.xlu0 %849
    %v852 = vmul.f32 %v843, %v850
    %854 = vrot.lane.b32.xlu0 %v852, 64
    %v855 = vpop.permute.xlu0 %854
    %v857 = vadd.f32 %v847, %v855
    %v858 = vtanh.pop %v857
    %860 = vrot.lane.b32.xlu0 %v858, 64
    %v861 = vpop.permute.xlu0 %860
    %v863 = vmul.f32 %v845, %v861
    %864 = vmatprep.subr.mxu0 0.0
    %865 = vmatpush1.msra.mxu0 0.0
    %866 = vmatprep.subr.mxu0 0.0
    %867 = vmatpush1.msra.mxu0 0.0
    %868 = vmatprep.subr.mxu0 0.0
    %869 = vmatpush1.msra.mxu0 0.0
    %870 = vmatprep.subr.mxu0 0.0
    %871 = vmatpush1.msra.mxu0 0.0
    %872 = vmatprep.subr.mxu0 0.0
    %873 = vmatpush1.msra.mxu0 0.0
    %874 = vmatprep.subr.mxu0 0.0
    %875 = vmatpush1.msra.mxu0 0.0
    %876 = vmatprep.subr.mxu0 0.0
    %877 = vmatpush1.msra.mxu0 0.0
    %878 = vmatprep.subr.mxu0 0.0
    %879 = vmatpush1.msra.mxu0 0.0
    %880 = vmatprep.subr.mxu0 %v90
    %881 = vmatpush1.msra.mxu0 %v89
    %882 = vmatprep.subr.mxu0 %v88
    %883 = vmatpush1.msra.mxu0 %v87
    %884 = vmatprep.subr.mxu0 %v86
    %885 = vmatpush1.msra.mxu0 %v85
    %886 = vmatprep.subr.mxu0 %v84
    %887 = vmatpush1.msra.mxu0 %v83
    %888 = vmatprep.subr.mxu0 %v82
    %889 = vmatpush1.msra.mxu0 %v81
    %890 = vmatprep.subr.mxu0 %v80
    %891 = vmatpush1.msra.mxu0 %v79
    %892 = vmatprep.subr.mxu0 %v78
    %893 = vmatpush1.msra.mxu0 %v77
    %894 = vmatprep.subr.mxu0 %v76
    %895 = vmatpush1.msra.mxu0 %v75
    %896 = vmatprep.subr.mxu0 0.0
    %897 = vmatpush2.msra.mxu0 0.0
    %898 = vmatprep.subr.mxu0 0.0
    %899 = vmatpush2.msra.mxu0 0.0
    %900 = vmatprep.subr.mxu0 0.0
    %901 = vmatpush2.msra.mxu0 0.0
    %902 = vmatprep.subr.mxu0 0.0
    %903 = vmatpush2.msra.mxu0 0.0
    %904 = vmatprep.subr.mxu0 0.0
    %905 = vmatpush2.msra.mxu0 0.0
    %906 = vmatprep.subr.mxu0 0.0
    %907 = vmatpush2.msra.mxu0 0.0
    %908 = vmatprep.subr.mxu0 0.0
    %909 = vmatpush2.msra.mxu0 0.0
    %910 = vmatprep.subr.mxu0 0.0
    %911 = vmatpush2.msra.mxu0 0.0
    %912 = vmatprep.subr.mxu0 0.0
    %913 = vmatpush2.msra.mxu0 0.0
    %914 = vmatprep.subr.mxu0 0.0
    %915 = vmatpush2.msra.mxu0 0.0
    %916 = vmatprep.subr.mxu0 0.0
    %917 = vmatpush2.msra.mxu0 0.0
    %918 = vmatprep.subr.mxu0 0.0
    %919 = vmatpush2.msra.mxu0 0.0
    %920 = vmatprep.subr.mxu0 0.0
    %921 = vmatpush2.msra.mxu0 0.0
    %922 = vmatprep.subr.mxu0 0.0
    %923 = vmatpush2.msra.mxu0 0.0
    %924 = vmatprep.subr.mxu0 0.0
    %925 = vmatpush2.msra.mxu0 0.0
    %926 = vmatprep.subr.mxu0 0.0
    %927 = vmatpush2.msra.mxu0 0.0
    %928 = vmatprep.mubr.f32.mxu0 0.0
    %929 = vmatmul.mubr.f32.gmra.mxu0 %v759
    %v930 = vpop.f32.mrf.mxu0
    %v931 = vadd.f32 0.0, %v930
    %v932 = vpop.f32.mrf.mxu0
    %v933 = vadd.f32 0.0, %v932
    %934 = vdwg.mxu0
    %v935 = vadd.f32 %v263, %v931
    %v936 = vadd.f32 %v265, %v933
    %v937 = vxor.u32 %v935, 2147483648
    %v938 = vxor.u32 %v936, 2147483648
    %v939 = vmul.f32 %v937, 1.442695
    %v940 = vpow.pop %v939
    %v941 = vmul.f32 %v938, 1.442695
    %v942 = vpow.pop %v941
    %v943 = vadd.f32 %v940, 1.0
    %v944 = vadd.f32 %v942, 1.0
    %v945 = vrcp.pop %v943
    %v946 = vmul.f32 1.0, %v945
    %v947 = vrcp.pop %v944
    %v948 = vmul.f32 1.0, %v947
    %v949 = vtanh.pop %v936
    %v950 = vmul.f32 %v946, %v677
    %952 = vrot.lane.b32.xlu0 %v949, 64
    %v953 = vpop.permute.xlu0 %952
    %v955 = vmul.f32 %v946, %v953
    %957 = vrot.lane.b32.xlu0 %v955, 64
    %v958 = vpop.permute.xlu0 %957
    %v960 = vadd.f32 %v950, %v958
    %v961 = vtanh.pop %v960
    %963 = vrot.lane.b32.xlu0 %v961, 64
    %v964 = vpop.permute.xlu0 %963
    %v966 = vmul.f32 %v948, %v964
    %v968 = vsel %vm297, %v863, 0
    %970 = vmatprep.subr.mxu0 0.0
    %971 = vmatpush1.msra.mxu0 0.0
    %972 = vmatprep.subr.mxu0 0.0
    %973 = vmatpush1.msra.mxu0 0.0
    %974 = vmatprep.subr.mxu0 0.0
    %975 = vmatpush1.msra.mxu0 0.0
    %976 = vmatprep.subr.mxu0 0.0
    %977 = vmatpush1.msra.mxu0 0.0
    %978 = vmatprep.subr.mxu0 0.0
    %979 = vmatpush1.msra.mxu0 0.0
    %980 = vmatprep.subr.mxu0 0.0
    %981 = vmatpush1.msra.mxu0 0.0
    %982 = vmatprep.subr.mxu0 0.0
    %983 = vmatpush1.msra.mxu0 0.0
    %984 = vmatprep.subr.mxu0 0.0
    %985 = vmatpush1.msra.mxu0 0.0
    %986 = vmatprep.subr.mxu0 %v122
    %987 = vmatpush1.msra.mxu0 %v121
    %988 = vmatprep.subr.mxu0 %v120
    %989 = vmatpush1.msra.mxu0 %v119
    %990 = vmatprep.subr.mxu0 %v118
    %991 = vmatpush1.msra.mxu0 %v117
    %992 = vmatprep.subr.mxu0 %v116
    %993 = vmatpush1.msra.mxu0 %v115
    %994 = vmatprep.subr.mxu0 %v114
    %995 = vmatpush1.msra.mxu0 %v113
    %996 = vmatprep.subr.mxu0 %v112
    %997 = vmatpush1.msra.mxu0 %v111
    %998 = vmatprep.subr.mxu0 %v110
    %999 = vmatpush1.msra.mxu0 %v109
    %1000 = vmatprep.subr.mxu0 %v108
    %1001 = vmatpush1.msra.mxu0 %v107
    %1002 = vmatprep.subr.mxu0 0.0
    %1003 = vmatpush2.msra.mxu0 0.0
    %1004 = vmatprep.subr.mxu0 0.0
    %1005 = vmatpush2.msra.mxu0 0.0
    %1006 = vmatprep.subr.mxu0 0.0
    %1007 = vmatpush2.msra.mxu0 0.0
    %1008 = vmatprep.subr.mxu0 0.0
    %1009 = vmatpush2.msra.mxu0 0.0
    %1010 = vmatprep.subr.mxu0 0.0
    %1011 = vmatpush2.msra.mxu0 0.0
    %1012 = vmatprep.subr.mxu0 0.0
    %1013 = vmatpush2.msra.mxu0 0.0
    %1014 = vmatprep.subr.mxu0 0.0
    %1015 = vmatpush2.msra.mxu0 0.0
    %1016 = vmatprep.subr.mxu0 0.0
    %1017 = vmatpush2.msra.mxu0 0.0
    %1018 = vmatprep.subr.mxu0 0.0
    %1019 = vmatpush2.msra.mxu0 0.0
    %1020 = vmatprep.subr.mxu0 0.0
    %1021 = vmatpush2.msra.mxu0 0.0
    %1022 = vmatprep.subr.mxu0 0.0
    %1023 = vmatpush2.msra.mxu0 0.0
    %1024 = vmatprep.subr.mxu0 0.0
    %1025 = vmatpush2.msra.mxu0 0.0
    %1026 = vmatprep.subr.mxu0 0.0
    %1027 = vmatpush2.msra.mxu0 0.0
    %1028 = vmatprep.subr.mxu0 0.0
    %1029 = vmatpush2.msra.mxu0 0.0
    %1030 = vmatprep.subr.mxu0 0.0
    %1031 = vmatpush2.msra.mxu0 0.0
    %1032 = vmatprep.subr.mxu0 0.0
    %1033 = vmatpush2.msra.mxu0 0.0
    %1034 = vmatprep.mubr.f32.mxu0 0.0
    %1035 = vmatmul.mubr.f32.gmra.mxu0 %v968
    %v1036 = vpop.f32.mrf.mxu0
    %v1037 = vadd.f32 0.0, %v1036
    %v1038 = vpop.f32.mrf.mxu0
    %v1039 = vadd.f32 0.0, %v1038
    %1040 = vdwg.mxu0
    %v1042 = vsel %vm297, %v966, 0
    %1044 = vmatprep.subr.mxu0 0.0
    %1045 = vmatpush1.msra.mxu0 0.0
    %1046 = vmatprep.subr.mxu0 0.0
    %1047 = vmatpush1.msra.mxu0 0.0
    %1048 = vmatprep.subr.mxu0 0.0
    %1049 = vmatpush1.msra.mxu0 0.0
    %1050 = vmatprep.subr.mxu0 0.0
    %1051 = vmatpush1.msra.mxu0 0.0
    %1052 = vmatprep.subr.mxu0 0.0
    %1053 = vmatpush1.msra.mxu0 0.0
    %1054 = vmatprep.subr.mxu0 0.0
    %1055 = vmatpush1.msra.mxu0 0.0
    %1056 = vmatprep.subr.mxu0 0.0
    %1057 = vmatpush1.msra.mxu0 0.0
    %1058 = vmatprep.subr.mxu0 0.0
    %1059 = vmatpush1.msra.mxu0 0.0
    %1060 = vmatprep.subr.mxu0 %v106
    %1061 = vmatpush1.msra.mxu0 %v105
    %1062 = vmatprep.subr.mxu0 %v104
    %1063 = vmatpush1.msra.mxu0 %v103
    %1064 = vmatprep.subr.mxu0 %v102
    %1065 = vmatpush1.msra.mxu0 %v101
    %1066 = vmatprep.subr.mxu0 %v100
    %1067 = vmatpush1.msra.mxu0 %v99
    %1068 = vmatprep.subr.mxu0 %v98
    %1069 = vmatpush1.msra.mxu0 %v97
    %1070 = vmatprep.subr.mxu0 %v96
    %1071 = vmatpush1.msra.mxu0 %v95
    %1072 = vmatprep.subr.mxu0 %v94
    %1073 = vmatpush1.msra.mxu0 %v93
    %1074 = vmatprep.subr.mxu0 %v92
    %1075 = vmatpush1.msra.mxu0 %v91
    %1076 = vmatprep.subr.mxu0 0.0
    %1077 = vmatpush2.msra.mxu0 0.0
    %1078 = vmatprep.subr.mxu0 0.0
    %1079 = vmatpush2.msra.mxu0 0.0
    %1080 = vmatprep.subr.mxu0 0.0
    %1081 = vmatpush2.msra.mxu0 0.0
    %1082 = vmatprep.subr.mxu0 0.0
    %1083 = vmatpush2.msra.mxu0 0.0
    %1084 = vmatprep.subr.mxu0 0.0
    %1085 = vmatpush2.msra.mxu0 0.0
    %1086 = vmatprep.subr.mxu0 0.0
    %1087 = vmatpush2.msra.mxu0 0.0
    %1088 = vmatprep.subr.mxu0 0.0
    %1089 = vmatpush2.msra.mxu0 0.0
    %1090 = vmatprep.subr.mxu0 0.0
    %1091 = vmatpush2.msra.mxu0 0.0
    %1092 = vmatprep.subr.mxu0 0.0
    %1093 = vmatpush2.msra.mxu0 0.0
    %1094 = vmatprep.subr.mxu0 0.0
    %1095 = vmatpush2.msra.mxu0 0.0
    %1096 = vmatprep.subr.mxu0 0.0
    %1097 = vmatpush2.msra.mxu0 0.0
    %1098 = vmatprep.subr.mxu0 0.0
    %1099 = vmatpush2.msra.mxu0 0.0
    %1100 = vmatprep.subr.mxu0 0.0
    %1101 = vmatpush2.msra.mxu0 0.0
    %1102 = vmatprep.subr.mxu0 0.0
    %1103 = vmatpush2.msra.mxu0 0.0
    %1104 = vmatprep.subr.mxu0 0.0
    %1105 = vmatpush2.msra.mxu0 0.0
    %1106 = vmatprep.subr.mxu0 0.0
    %1107 = vmatpush2.msra.mxu0 0.0
    %1108 = vmatprep.mubr.f32.mxu0 0.0
    %1109 = vmatmul.mubr.f32.gmra.mxu0 %v1042
    %v1110 = vpop.f32.mrf.mxu0
    %v1111 = vadd.f32 %v1037, %v1110
    %v1112 = vpop.f32.mrf.mxu0
    %v1113 = vadd.f32 %v1039, %v1112
    %1114 = vdwg.mxu0
    %v1115 = vadd.f32 %v1111, %v128
    %v1116 = vadd.f32 %v1113, %v132
    %v1117 = vxor.u32 %v1115, 2147483648
    %v1118 = vxor.u32 %v1116, 2147483648
    %v1119 = vmul.f32 %v1117, 1.442695
    %v1120 = vpow.pop %v1119
    %v1121 = vmul.f32 %v1118, 1.442695
    %v1122 = vpow.pop %v1121
    %v1123 = vadd.f32 %v1120, 1.0
    %v1124 = vadd.f32 %v1122, 1.0
    %v1125 = vrcp.pop %v1123
    %v1126 = vmul.f32 1.0, %v1125
    %v1127 = vrcp.pop %v1124
    %v1128 = vmul.f32 1.0, %v1127
    %v1129 = vtanh.pop %v1116
    %v1130 = vmul.f32 %v1126, %v857
    %1132 = vrot.lane.b32.xlu0 %v1129, 64
    %v1133 = vpop.permute.xlu0 %1132
    %v1135 = vmul.f32 %v1126, %v1133
    %1137 = vrot.lane.b32.xlu0 %v1135, 64
    %v1138 = vpop.permute.xlu0 %1137
    %v1140 = vadd.f32 %v1130, %v1138
    %v1141 = vtanh.pop %v1140
    %1143 = vrot.lane.b32.xlu0 %v1141, 64
    %v1144 = vpop.permute.xlu0 %1143
    %v1146 = vmul.f32 %v1128, %v1144
    %1147 = vmatprep.subr.mxu0 0.0
    %1148 = vmatpush1.msra.mxu0 0.0
    %1149 = vmatprep.subr.mxu0 0.0
    %1150 = vmatpush1.msra.mxu0 0.0
    %1151 = vmatprep.subr.mxu0 0.0
    %1152 = vmatpush1.msra.mxu0 0.0
    %1153 = vmatprep.subr.mxu0 0.0
    %1154 = vmatpush1.msra.mxu0 0.0
    %1155 = vmatprep.subr.mxu0 0.0
    %1156 = vmatpush1.msra.mxu0 0.0
    %1157 = vmatprep.subr.mxu0 0.0
    %1158 = vmatpush1.msra.mxu0 0.0
    %1159 = vmatprep.subr.mxu0 0.0
    %1160 = vmatpush1.msra.mxu0 0.0
    %1161 = vmatprep.subr.mxu0 0.0
    %1162 = vmatpush1.msra.mxu0 0.0
    %1163 = vmatprep.subr.mxu0 %v90
    %1164 = vmatpush1.msra.mxu0 %v89
    %1165 = vmatprep.subr.mxu0 %v88
    %1166 = vmatpush1.msra.mxu0 %v87
    %1167 = vmatprep.subr.mxu0 %v86
    %1168 = vmatpush1.msra.mxu0 %v85
    %1169 = vmatprep.subr.mxu0 %v84
    %1170 = vmatpush1.msra.mxu0 %v83
    %1171 = vmatprep.subr.mxu0 %v82
    %1172 = vmatpush1.msra.mxu0 %v81
    %1173 = vmatprep.subr.mxu0 %v80
    %1174 = vmatpush1.msra.mxu0 %v79
    %1175 = vmatprep.subr.mxu0 %v78
    %1176 = vmatpush1.msra.mxu0 %v77
    %1177 = vmatprep.subr.mxu0 %v76
    %1178 = vmatpush1.msra.mxu0 %v75
    %1179 = vmatprep.subr.mxu0 0.0
    %1180 = vmatpush2.msra.mxu0 0.0
    %1181 = vmatprep.subr.mxu0 0.0
    %1182 = vmatpush2.msra.mxu0 0.0
    %1183 = vmatprep.subr.mxu0 0.0
    %1184 = vmatpush2.msra.mxu0 0.0
    %1185 = vmatprep.subr.mxu0 0.0
    %1186 = vmatpush2.msra.mxu0 0.0
    %1187 = vmatprep.subr.mxu0 0.0
    %1188 = vmatpush2.msra.mxu0 0.0
    %1189 = vmatprep.subr.mxu0 0.0
    %1190 = vmatpush2.msra.mxu0 0.0
    %1191 = vmatprep.subr.mxu0 0.0
    %1192 = vmatpush2.msra.mxu0 0.0
    %1193 = vmatprep.subr.mxu0 0.0
    %1194 = vmatpush2.msra.mxu0 0.0
    %1195 = vmatprep.subr.mxu0 0.0
    %1196 = vmatpush2.msra.mxu0 0.0
    %1197 = vmatprep.subr.mxu0 0.0
    %1198 = vmatpush2.msra.mxu0 0.0
    %1199 = vmatprep.subr.mxu0 0.0
    %1200 = vmatpush2.msra.mxu0 0.0
    %1201 = vmatprep.subr.mxu0 0.0
    %1202 = vmatpush2.msra.mxu0 0.0
    %1203 = vmatprep.subr.mxu0 0.0
    %1204 = vmatpush2.msra.mxu0 0.0
    %1205 = vmatprep.subr.mxu0 0.0
    %1206 = vmatpush2.msra.mxu0 0.0
    %1207 = vmatprep.subr.mxu0 0.0
    %1208 = vmatpush2.msra.mxu0 0.0
    %1209 = vmatprep.subr.mxu0 0.0
    %1210 = vmatpush2.msra.mxu0 0.0
    %1211 = vmatprep.mubr.f32.mxu0 0.0
    %1212 = vmatmul.mubr.f32.gmra.mxu0 %v1042
    %v1213 = vpop.f32.mrf.mxu0
    %v1214 = vadd.f32 0.0, %v1213
    %v1215 = vpop.f32.mrf.mxu0
    %v1216 = vadd.f32 0.0, %v1215
    %1217 = vdwg.mxu0
    %v1218 = vadd.f32 %v269, %v1214
    %v1219 = vadd.f32 %v271, %v1216
    %v1220 = vxor.u32 %v1218, 2147483648
    %v1221 = vxor.u32 %v1219, 2147483648
    %v1222 = vmul.f32 %v1220, 1.442695
    %v1223 = vpow.pop %v1222
    %v1224 = vmul.f32 %v1221, 1.442695
    %v1225 = vpow.pop %v1224
    %v1226 = vadd.f32 %v1223, 1.0
    %v1227 = vadd.f32 %v1225, 1.0
    %v1228 = vrcp.pop %v1226
    %v1229 = vmul.f32 1.0, %v1228
    %v1230 = vrcp.pop %v1227
    %v1231 = vmul.f32 1.0, %v1230
    %v1232 = vtanh.pop %v1219
    %v1233 = vmul.f32 %v1229, %v960
    %1235 = vrot.lane.b32.xlu0 %v1232, 64
    %v1236 = vpop.permute.xlu0 %1235
    %v1238 = vmul.f32 %v1229, %v1236
    %1240 = vrot.lane.b32.xlu0 %v1238, 64
    %v1241 = vpop.permute.xlu0 %1240
    %v1243 = vadd.f32 %v1233, %v1241
    %v1244 = vtanh.pop %v1243
    %1246 = vrot.lane.b32.xlu0 %v1244, 64
    %v1247 = vpop.permute.xlu0 %1246
    %v1249 = vmul.f32 %v1231, %v1247
    %v1251 = vsel %vm297, %v1146, 0
    %1253 = vmatprep.subr.mxu0 0.0
    %1254 = vmatpush1.msra.mxu0 0.0
    %1255 = vmatprep.subr.mxu0 0.0
    %1256 = vmatpush1.msra.mxu0 0.0
    %1257 = vmatprep.subr.mxu0 0.0
    %1258 = vmatpush1.msra.mxu0 0.0
    %1259 = vmatprep.subr.mxu0 0.0
    %1260 = vmatpush1.msra.mxu0 0.0
    %1261 = vmatprep.subr.mxu0 0.0
    %1262 = vmatpush1.msra.mxu0 0.0
    %1263 = vmatprep.subr.mxu0 0.0
    %1264 = vmatpush1.msra.mxu0 0.0
    %1265 = vmatprep.subr.mxu0 0.0
    %1266 = vmatpush1.msra.mxu0 0.0
    %1267 = vmatprep.subr.mxu0 0.0
    %1268 = vmatpush1.msra.mxu0 0.0
    %1269 = vmatprep.subr.mxu0 %v122
    %1270 = vmatpush1.msra.mxu0 %v121
    %1271 = vmatprep.subr.mxu0 %v120
    %1272 = vmatpush1.msra.mxu0 %v119
    %1273 = vmatprep.subr.mxu0 %v118
    %1274 = vmatpush1.msra.mxu0 %v117
    %1275 = vmatprep.subr.mxu0 %v116
    %1276 = vmatpush1.msra.mxu0 %v115
    %1277 = vmatprep.subr.mxu0 %v114
    %1278 = vmatpush1.msra.mxu0 %v113
    %1279 = vmatprep.subr.mxu0 %v112
    %1280 = vmatpush1.msra.mxu0 %v111
    %1281 = vmatprep.subr.mxu0 %v110
    %1282 = vmatpush1.msra.mxu0 %v109
    %1283 = vmatprep.subr.mxu0 %v108
    %1284 = vmatpush1.msra.mxu0 %v107
    %1285 = vmatprep.subr.mxu0 0.0
    %1286 = vmatpush2.msra.mxu0 0.0
    %1287 = vmatprep.subr.mxu0 0.0
    %1288 = vmatpush2.msra.mxu0 0.0
    %1289 = vmatprep.subr.mxu0 0.0
    %1290 = vmatpush2.msra.mxu0 0.0
    %1291 = vmatprep.subr.mxu0 0.0
    %1292 = vmatpush2.msra.mxu0 0.0
    %1293 = vmatprep.subr.mxu0 0.0
    %1294 = vmatpush2.msra.mxu0 0.0
    %1295 = vmatprep.subr.mxu0 0.0
    %1296 = vmatpush2.msra.mxu0 0.0
    %1297 = vmatprep.subr.mxu0 0.0
    %1298 = vmatpush2.msra.mxu0 0.0
    %1299 = vmatprep.subr.mxu0 0.0
    %1300 = vmatpush2.msra.mxu0 0.0
    %1301 = vmatprep.subr.mxu0 0.0
    %1302 = vmatpush2.msra.mxu0 0.0
    %1303 = vmatprep.subr.mxu0 0.0
    %1304 = vmatpush2.msra.mxu0 0.0
    %1305 = vmatprep.subr.mxu0 0.0
    %1306 = vmatpush2.msra.mxu0 0.0
    %1307 = vmatprep.subr.mxu0 0.0
    %1308 = vmatpush2.msra.mxu0 0.0
    %1309 = vmatprep.subr.mxu0 0.0
    %1310 = vmatpush2.msra.mxu0 0.0
    %1311 = vmatprep.subr.mxu0 0.0
    %1312 = vmatpush2.msra.mxu0 0.0
    %1313 = vmatprep.subr.mxu0 0.0
    %1314 = vmatpush2.msra.mxu0 0.0
    %1315 = vmatprep.subr.mxu0 0.0
    %1316 = vmatpush2.msra.mxu0 0.0
    %1317 = vmatprep.mubr.f32.mxu0 0.0
    %1318 = vmatmul.mubr.f32.gmra.mxu0 %v1251
    %v1319 = vpop.f32.mrf.mxu0
    %v1320 = vadd.f32 0.0, %v1319
    %v1321 = vpop.f32.mrf.mxu0
    %v1322 = vadd.f32 0.0, %v1321
    %1323 = vdwg.mxu0
    %v1325 = vsel %vm297, %v1249, 0
    %1327 = vmatprep.subr.mxu0 0.0
    %1328 = vmatpush1.msra.mxu0 0.0
    %1329 = vmatprep.subr.mxu0 0.0
    %1330 = vmatpush1.msra.mxu0 0.0
    %1331 = vmatprep.subr.mxu0 0.0
    %1332 = vmatpush1.msra.mxu0 0.0
    %1333 = vmatprep.subr.mxu0 0.0
    %1334 = vmatpush1.msra.mxu0 0.0
    %1335 = vmatprep.subr.mxu0 0.0
    %1336 = vmatpush1.msra.mxu0 0.0
    %1337 = vmatprep.subr.mxu0 0.0
    %1338 = vmatpush1.msra.mxu0 0.0
    %1339 = vmatprep.subr.mxu0 0.0
    %1340 = vmatpush1.msra.mxu0 0.0
    %1341 = vmatprep.subr.mxu0 0.0
    %1342 = vmatpush1.msra.mxu0 0.0
    %1343 = vmatprep.subr.mxu0 %v106
    %1344 = vmatpush1.msra.mxu0 %v105
    %1345 = vmatprep.subr.mxu0 %v104
    %1346 = vmatpush1.msra.mxu0 %v103
    %1347 = vmatprep.subr.mxu0 %v102
    %1348 = vmatpush1.msra.mxu0 %v101
    %1349 = vmatprep.subr.mxu0 %v100
    %1350 = vmatpush1.msra.mxu0 %v99
    %1351 = vmatprep.subr.mxu0 %v98
    %1352 = vmatpush1.msra.mxu0 %v97
    %1353 = vmatprep.subr.mxu0 %v96
    %1354 = vmatpush1.msra.mxu0 %v95
    %1355 = vmatprep.subr.mxu0 %v94
    %1356 = vmatpush1.msra.mxu0 %v93
    %1357 = vmatprep.subr.mxu0 %v92
    %1358 = vmatpush1.msra.mxu0 %v91
    %1359 = vmatprep.subr.mxu0 0.0
    %1360 = vmatpush2.msra.mxu0 0.0
    %1361 = vmatprep.subr.mxu0 0.0
    %1362 = vmatpush2.msra.mxu0 0.0
    %1363 = vmatprep.subr.mxu0 0.0
    %1364 = vmatpush2.msra.mxu0 0.0
    %1365 = vmatprep.subr.mxu0 0.0
    %1366 = vmatpush2.msra.mxu0 0.0
    %1367 = vmatprep.subr.mxu0 0.0
    %1368 = vmatpush2.msra.mxu0 0.0
    %1369 = vmatprep.subr.mxu0 0.0
    %1370 = vmatpush2.msra.mxu0 0.0
    %1371 = vmatprep.subr.mxu0 0.0
    %1372 = vmatpush2.msra.mxu0 0.0
    %1373 = vmatprep.subr.mxu0 0.0
    %1374 = vmatpush2.msra.mxu0 0.0
    %1375 = vmatprep.subr.mxu0 0.0
    %1376 = vmatpush2.msra.mxu0 0.0
    %1377 = vmatprep.subr.mxu0 0.0
    %1378 = vmatpush2.msra.mxu0 0.0
    %1379 = vmatprep.subr.mxu0 0.0
    %1380 = vmatpush2.msra.mxu0 0.0
    %1381 = vmatprep.subr.mxu0 0.0
    %1382 = vmatpush2.msra.mxu0 0.0
    %1383 = vmatprep.subr.mxu0 0.0
    %1384 = vmatpush2.msra.mxu0 0.0
    %1385 = vmatprep.subr.mxu0 0.0
    %1386 = vmatpush2.msra.mxu0 0.0
    %1387 = vmatprep.subr.mxu0 0.0
    %1388 = vmatpush2.msra.mxu0 0.0
    %1389 = vmatprep.subr.mxu0 0.0
    %1390 = vmatpush2.msra.mxu0 0.0
    %1391 = vmatprep.mubr.f32.mxu0 0.0
    %1392 = vmatmul.mubr.f32.gmra.mxu0 %v1325
    %v1393 = vpop.f32.mrf.mxu0
    %v1394 = vadd.f32 %v1320, %v1393
    %v1395 = vpop.f32.mrf.mxu0
    %v1396 = vadd.f32 %v1322, %v1395
    %1397 = vdwg.mxu0
    %v1398 = vadd.f32 %v1394, %v128
    %v1399 = vadd.f32 %v1396, %v132
    %v1400 = vxor.u32 %v1398, 2147483648
    %v1401 = vxor.u32 %v1399, 2147483648
    %v1402 = vmul.f32 %v1400, 1.442695
    %v1403 = vpow.pop %v1402
    %v1404 = vmul.f32 %v1401, 1.442695
    %v1405 = vpow.pop %v1404
    %v1406 = vadd.f32 %v1403, 1.0
    %v1407 = vadd.f32 %v1405, 1.0
    %v1408 = vrcp.pop %v1406
    %v1409 = vmul.f32 1.0, %v1408
    %v1410 = vrcp.pop %v1407
    %v1411 = vmul.f32 1.0, %v1410
    %v1412 = vtanh.pop %v1399
    %v1413 = vmul.f32 %v1409, %v1140
    %1415 = vrot.lane.b32.xlu0 %v1412, 64
    %v1416 = vpop.permute.xlu0 %1415
    %v1418 = vmul.f32 %v1409, %v1416
    %1420 = vrot.lane.b32.xlu0 %v1418, 64
    %v1421 = vpop.permute.xlu0 %1420
    %v1423 = vadd.f32 %v1413, %v1421
    %v1424 = vtanh.pop %v1423
    %1426 = vrot.lane.b32.xlu0 %v1424, 64
    %v1427 = vpop.permute.xlu0 %1426
    %v1429 = vmul.f32 %v1411, %v1427
    %1430 = vmatprep.subr.mxu0 0.0
    %1431 = vmatpush1.msra.mxu0 0.0
    %1432 = vmatprep.subr.mxu0 0.0
    %1433 = vmatpush1.msra.mxu0 0.0
    %1434 = vmatprep.subr.mxu0 0.0
    %1435 = vmatpush1.msra.mxu0 0.0
    %1436 = vmatprep.subr.mxu0 0.0
    %1437 = vmatpush1.msra.mxu0 0.0
    %1438 = vmatprep.subr.mxu0 0.0
    %1439 = vmatpush1.msra.mxu0 0.0
    %1440 = vmatprep.subr.mxu0 0.0
    %1441 = vmatpush1.msra.mxu0 0.0
    %1442 = vmatprep.subr.mxu0 0.0
    %1443 = vmatpush1.msra.mxu0 0.0
    %1444 = vmatprep.subr.mxu0 0.0
    %1445 = vmatpush1.msra.mxu0 0.0
    %1446 = vmatprep.subr.mxu0 %v90
    %1447 = vmatpush1.msra.mxu0 %v89
    %1448 = vmatprep.subr.mxu0 %v88
    %1449 = vmatpush1.msra.mxu0 %v87
    %1450 = vmatprep.subr.mxu0 %v86
    %1451 = vmatpush1.msra.mxu0 %v85
    %1452 = vmatprep.subr.mxu0 %v84
    %1453 = vmatpush1.msra.mxu0 %v83
    %1454 = vmatprep.subr.mxu0 %v82
    %1455 = vmatpush1.msra.mxu0 %v81
    %1456 = vmatprep.subr.mxu0 %v80
    %1457 = vmatpush1.msra.mxu0 %v79
    %1458 = vmatprep.subr.mxu0 %v78
    %1459 = vmatpush1.msra.mxu0 %v77
    %1460 = vmatprep.subr.mxu0 %v76
    %1461 = vmatpush1.msra.mxu0 %v75
    %1462 = vmatprep.subr.mxu0 0.0
    %1463 = vmatpush2.msra.mxu0 0.0
    %1464 = vmatprep.subr.mxu0 0.0
    %1465 = vmatpush2.msra.mxu0 0.0
    %1466 = vmatprep.subr.mxu0 0.0
    %1467 = vmatpush2.msra.mxu0 0.0
    %1468 = vmatprep.subr.mxu0 0.0
    %1469 = vmatpush2.msra.mxu0 0.0
    %1470 = vmatprep.subr.mxu0 0.0
    %1471 = vmatpush2.msra.mxu0 0.0
    %1472 = vmatprep.subr.mxu0 0.0
    %1473 = vmatpush2.msra.mxu0 0.0
    %1474 = vmatprep.subr.mxu0 0.0
    %1475 = vmatpush2.msra.mxu0 0.0
    %1476 = vmatprep.subr.mxu0 0.0
    %1477 = vmatpush2.msra.mxu0 0.0
    %1478 = vmatprep.subr.mxu0 0.0
    %1479 = vmatpush2.msra.mxu0 0.0
    %1480 = vmatprep.subr.mxu0 0.0
    %1481 = vmatpush2.msra.mxu0 0.0
    %1482 = vmatprep.subr.mxu0 0.0
    %1483 = vmatpush2.msra.mxu0 0.0
    %1484 = vmatprep.subr.mxu0 0.0
    %1485 = vmatpush2.msra.mxu0 0.0
    %1486 = vmatprep.subr.mxu0 0.0
    %1487 = vmatpush2.msra.mxu0 0.0
    %1488 = vmatprep.subr.mxu0 0.0
    %1489 = vmatpush2.msra.mxu0 0.0
    %1490 = vmatprep.subr.mxu0 0.0
    %1491 = vmatpush2.msra.mxu0 0.0
    %1492 = vmatprep.subr.mxu0 0.0
    %1493 = vmatpush2.msra.mxu0 0.0
    %1494 = vmatprep.mubr.f32.mxu0 0.0
    %1495 = vmatmul.mubr.f32.gmra.mxu0 %v1325
    %v1496 = vpop.f32.mrf.mxu0
    %v1497 = vadd.f32 0.0, %v1496
    %v1498 = vpop.f32.mrf.mxu0
    %v1499 = vadd.f32 0.0, %v1498
    %1500 = vdwg.mxu0
    %v1501 = vadd.f32 %v275, %v1497
    %v1502 = vadd.f32 %v277, %v1499
    %v1503 = vxor.u32 %v1501, 2147483648
    %v1504 = vxor.u32 %v1502, 2147483648
    %v1505 = vmul.f32 %v1503, 1.442695
    %v1506 = vpow.pop %v1505
    %v1507 = vmul.f32 %v1504, 1.442695
    %v1508 = vpow.pop %v1507
    %v1509 = vadd.f32 %v1506, 1.0
    %v1510 = vadd.f32 %v1508, 1.0
    %v1511 = vrcp.pop %v1509
    %v1512 = vmul.f32 1.0, %v1511
    %v1513 = vrcp.pop %v1510
    %v1514 = vmul.f32 1.0, %v1513
    %v1515 = vtanh.pop %v1502
    %v1516 = vmul.f32 %v1512, %v1243
    %1518 = vrot.lane.b32.xlu0 %v1515, 64
    %v1519 = vpop.permute.xlu0 %1518
    %v1521 = vmul.f32 %v1512, %v1519
    %1523 = vrot.lane.b32.xlu0 %v1521, 64
    %v1524 = vpop.permute.xlu0 %1523
    %v1526 = vadd.f32 %v1516, %v1524
    %v1527 = vtanh.pop %v1526
    %1529 = vrot.lane.b32.xlu0 %v1527, 64
    %v1530 = vpop.permute.xlu0 %1529
    %v1532 = vmul.f32 %v1514, %v1530
    %v1534 = vsel %vm297, %v1429, 0
    %1536 = vmatprep.subr.mxu0 0.0
    %1537 = vmatpush1.msra.mxu0 0.0
    %1538 = vmatprep.subr.mxu0 0.0
    %1539 = vmatpush1.msra.mxu0 0.0
    %1540 = vmatprep.subr.mxu0 0.0
    %1541 = vmatpush1.msra.mxu0 0.0
    %1542 = vmatprep.subr.mxu0 0.0
    %1543 = vmatpush1.msra.mxu0 0.0
    %1544 = vmatprep.subr.mxu0 0.0
    %1545 = vmatpush1.msra.mxu0 0.0
    %1546 = vmatprep.subr.mxu0 0.0
    %1547 = vmatpush1.msra.mxu0 0.0
    %1548 = vmatprep.subr.mxu0 0.0
    %1549 = vmatpush1.msra.mxu0 0.0
    %1550 = vmatprep.subr.mxu0 0.0
    %1551 = vmatpush1.msra.mxu0 0.0
    %1552 = vmatprep.subr.mxu0 %v122
    %1553 = vmatpush1.msra.mxu0 %v121
    %1554 = vmatprep.subr.mxu0 %v120
    %1555 = vmatpush1.msra.mxu0 %v119
    %1556 = vmatprep.subr.mxu0 %v118
    %1557 = vmatpush1.msra.mxu0 %v117
    %1558 = vmatprep.subr.mxu0 %v116
    %1559 = vmatpush1.msra.mxu0 %v115
    %1560 = vmatprep.subr.mxu0 %v114
    %1561 = vmatpush1.msra.mxu0 %v113
    %1562 = vmatprep.subr.mxu0 %v112
    %1563 = vmatpush1.msra.mxu0 %v111
    %1564 = vmatprep.subr.mxu0 %v110
    %1565 = vmatpush1.msra.mxu0 %v109
    %1566 = vmatprep.subr.mxu0 %v108
    %1567 = vmatpush1.msra.mxu0 %v107
    %1568 = vmatprep.subr.mxu0 0.0
    %1569 = vmatpush2.msra.mxu0 0.0
    %1570 = vmatprep.subr.mxu0 0.0
    %1571 = vmatpush2.msra.mxu0 0.0
    %1572 = vmatprep.subr.mxu0 0.0
    %1573 = vmatpush2.msra.mxu0 0.0
    %1574 = vmatprep.subr.mxu0 0.0
    %1575 = vmatpush2.msra.mxu0 0.0
    %1576 = vmatprep.subr.mxu0 0.0
    %1577 = vmatpush2.msra.mxu0 0.0
    %1578 = vmatprep.subr.mxu0 0.0
    %1579 = vmatpush2.msra.mxu0 0.0
    %1580 = vmatprep.subr.mxu0 0.0
    %1581 = vmatpush2.msra.mxu0 0.0
    %1582 = vmatprep.subr.mxu0 0.0
    %1583 = vmatpush2.msra.mxu0 0.0
    %1584 = vmatprep.subr.mxu0 0.0
    %1585 = vmatpush2.msra.mxu0 0.0
    %1586 = vmatprep.subr.mxu0 0.0
    %1587 = vmatpush2.msra.mxu0 0.0
    %1588 = vmatprep.subr.mxu0 0.0
    %1589 = vmatpush2.msra.mxu0 0.0
    %1590 = vmatprep.subr.mxu0 0.0
    %1591 = vmatpush2.msra.mxu0 0.0
    %1592 = vmatprep.subr.mxu0 0.0
    %1593 = vmatpush2.msra.mxu0 0.0
    %1594 = vmatprep.subr.mxu0 0.0
    %1595 = vmatpush2.msra.mxu0 0.0
    %1596 = vmatprep.subr.mxu0 0.0
    %1597 = vmatpush2.msra.mxu0 0.0
    %1598 = vmatprep.subr.mxu0 0.0
    %1599 = vmatpush2.msra.mxu0 0.0
    %1600 = vmatprep.mubr.f32.mxu0 0.0
    %1601 = vmatmul.mubr.f32.gmra.mxu0 %v1534
    %v1602 = vpop.f32.mrf.mxu0
    %v1603 = vadd.f32 0.0, %v1602
    %v1604 = vpop.f32.mrf.mxu0
    %v1605 = vadd.f32 0.0, %v1604
    %1606 = vdwg.mxu0
    %v1608 = vsel %vm297, %v1532, 0
    %1610 = vmatprep.subr.mxu0 0.0
    %1611 = vmatpush1.msra.mxu0 0.0
    %1612 = vmatprep.subr.mxu0 0.0
    %1613 = vmatpush1.msra.mxu0 0.0
    %1614 = vmatprep.subr.mxu0 0.0
    %1615 = vmatpush1.msra.mxu0 0.0
    %1616 = vmatprep.subr.mxu0 0.0
    %1617 = vmatpush1.msra.mxu0 0.0
    %1618 = vmatprep.subr.mxu0 0.0
    %1619 = vmatpush1.msra.mxu0 0.0
    %1620 = vmatprep.subr.mxu0 0.0
    %1621 = vmatpush1.msra.mxu0 0.0
    %1622 = vmatprep.subr.mxu0 0.0
    %1623 = vmatpush1.msra.mxu0 0.0
    %1624 = vmatprep.subr.mxu0 0.0
    %1625 = vmatpush1.msra.mxu0 0.0
    %1626 = vmatprep.subr.mxu0 %v106
    %1627 = vmatpush1.msra.mxu0 %v105
    %1628 = vmatprep.subr.mxu0 %v104
    %1629 = vmatpush1.msra.mxu0 %v103
    %1630 = vmatprep.subr.mxu0 %v102
    %1631 = vmatpush1.msra.mxu0 %v101
    %1632 = vmatprep.subr.mxu0 %v100
    %1633 = vmatpush1.msra.mxu0 %v99
    %1634 = vmatprep.subr.mxu0 %v98
    %1635 = vmatpush1.msra.mxu0 %v97
    %1636 = vmatprep.subr.mxu0 %v96
    %1637 = vmatpush1.msra.mxu0 %v95
    %1638 = vmatprep.subr.mxu0 %v94
    %1639 = vmatpush1.msra.mxu0 %v93
    %1640 = vmatprep.subr.mxu0 %v92
    %1641 = vmatpush1.msra.mxu0 %v91
    %1642 = vmatprep.subr.mxu0 0.0
    %1643 = vmatpush2.msra.mxu0 0.0
    %1644 = vmatprep.subr.mxu0 0.0
    %1645 = vmatpush2.msra.mxu0 0.0
    %1646 = vmatprep.subr.mxu0 0.0
    %1647 = vmatpush2.msra.mxu0 0.0
    %1648 = vmatprep.subr.mxu0 0.0
    %1649 = vmatpush2.msra.mxu0 0.0
    %1650 = vmatprep.subr.mxu0 0.0
    %1651 = vmatpush2.msra.mxu0 0.0
    %1652 = vmatprep.subr.mxu0 0.0
    %1653 = vmatpush2.msra.mxu0 0.0
    %1654 = vmatprep.subr.mxu0 0.0
    %1655 = vmatpush2.msra.mxu0 0.0
    %1656 = vmatprep.subr.mxu0 0.0
    %1657 = vmatpush2.msra.mxu0 0.0
    %1658 = vmatprep.subr.mxu0 0.0
    %1659 = vmatpush2.msra.mxu0 0.0
    %1660 = vmatprep.subr.mxu0 0.0
    %1661 = vmatpush2.msra.mxu0 0.0
    %1662 = vmatprep.subr.mxu0 0.0
    %1663 = vmatpush2.msra.mxu0 0.0
    %1664 = vmatprep.subr.mxu0 0.0
    %1665 = vmatpush2.msra.mxu0 0.0
    %1666 = vmatprep.subr.mxu0 0.0
    %1667 = vmatpush2.msra.mxu0 0.0
    %1668 = vmatprep.subr.mxu0 0.0
    %1669 = vmatpush2.msra.mxu0 0.0
    %1670 = vmatprep.subr.mxu0 0.0
    %1671 = vmatpush2.msra.mxu0 0.0
    %1672 = vmatprep.subr.mxu0 0.0
    %1673 = vmatpush2.msra.mxu0 0.0
    %1674 = vmatprep.mubr.f32.mxu0 0.0
    %1675 = vmatmul.mubr.f32.gmra.mxu0 %v1608
    %v1676 = vpop.f32.mrf.mxu0
    %v1677 = vadd.f32 %v1603, %v1676
    %v1678 = vpop.f32.mrf.mxu0
    %v1679 = vadd.f32 %v1605, %v1678
    %1680 = vdwg.mxu0
    %v1681 = vadd.f32 %v1677, %v128
    %v1682 = vadd.f32 %v1679, %v132
    %v1683 = vxor.u32 %v1681, 2147483648
    %v1684 = vxor.u32 %v1682, 2147483648
    %v1685 = vmul.f32 %v1683, 1.442695
    %v1686 = vpow.pop %v1685
    %v1687 = vmul.f32 %v1684, 1.442695
    %v1688 = vpow.pop %v1687
    %v1689 = vadd.f32 %v1686, 1.0
    %v1690 = vadd.f32 %v1688, 1.0
    %v1691 = vrcp.pop %v1689
    %v1692 = vmul.f32 1.0, %v1691
    %v1693 = vrcp.pop %v1690
    %v1694 = vmul.f32 1.0, %v1693
    %v1695 = vtanh.pop %v1682
    %v1696 = vmul.f32 %v1692, %v1423
    %1698 = vrot.lane.b32.xlu0 %v1695, 64
    %v1699 = vpop.permute.xlu0 %1698
    %v1701 = vmul.f32 %v1692, %v1699
    %1703 = vrot.lane.b32.xlu0 %v1701, 64
    %v1704 = vpop.permute.xlu0 %1703
    %v1706 = vadd.f32 %v1696, %v1704
    %v1707 = vtanh.pop %v1706
    %1709 = vrot.lane.b32.xlu0 %v1707, 64
    %v1710 = vpop.permute.xlu0 %1709
    %v1712 = vmul.f32 %v1694, %v1710
    %1713 = vmatprep.subr.mxu0 0.0
    %1714 = vmatpush1.msra.mxu0 0.0
    %1715 = vmatprep.subr.mxu0 0.0
    %1716 = vmatpush1.msra.mxu0 0.0
    %1717 = vmatprep.subr.mxu0 0.0
    %1718 = vmatpush1.msra.mxu0 0.0
    %1719 = vmatprep.subr.mxu0 0.0
    %1720 = vmatpush1.msra.mxu0 0.0
    %1721 = vmatprep.subr.mxu0 0.0
    %1722 = vmatpush1.msra.mxu0 0.0
    %1723 = vmatprep.subr.mxu0 0.0
    %1724 = vmatpush1.msra.mxu0 0.0
    %1725 = vmatprep.subr.mxu0 0.0
    %1726 = vmatpush1.msra.mxu0 0.0
    %1727 = vmatprep.subr.mxu0 0.0
    %1728 = vmatpush1.msra.mxu0 0.0
    %1729 = vmatprep.subr.mxu0 %v90
    %1730 = vmatpush1.msra.mxu0 %v89
    %1731 = vmatprep.subr.mxu0 %v88
    %1732 = vmatpush1.msra.mxu0 %v87
    %1733 = vmatprep.subr.mxu0 %v86
    %1734 = vmatpush1.msra.mxu0 %v85
    %1735 = vmatprep.subr.mxu0 %v84
    %1736 = vmatpush1.msra.mxu0 %v83
    %1737 = vmatprep.subr.mxu0 %v82
    %1738 = vmatpush1.msra.mxu0 %v81
    %1739 = vmatprep.subr.mxu0 %v80
    %1740 = vmatpush1.msra.mxu0 %v79
    %1741 = vmatprep.subr.mxu0 %v78
    %1742 = vmatpush1.msra.mxu0 %v77
    %1743 = vmatprep.subr.mxu0 %v76
    %1744 = vmatpush1.msra.mxu0 %v75
    %1745 = vmatprep.subr.mxu0 0.0
    %1746 = vmatpush2.msra.mxu0 0.0
    %1747 = vmatprep.subr.mxu0 0.0
    %1748 = vmatpush2.msra.mxu0 0.0
    %1749 = vmatprep.subr.mxu0 0.0
    %1750 = vmatpush2.msra.mxu0 0.0
    %1751 = vmatprep.subr.mxu0 0.0
    %1752 = vmatpush2.msra.mxu0 0.0
    %1753 = vmatprep.subr.mxu0 0.0
    %1754 = vmatpush2.msra.mxu0 0.0
    %1755 = vmatprep.subr.mxu0 0.0
    %1756 = vmatpush2.msra.mxu0 0.0
    %1757 = vmatprep.subr.mxu0 0.0
    %1758 = vmatpush2.msra.mxu0 0.0
    %1759 = vmatprep.subr.mxu0 0.0
    %1760 = vmatpush2.msra.mxu0 0.0
    %1761 = vmatprep.subr.mxu0 0.0
    %1762 = vmatpush2.msra.mxu0 0.0
    %1763 = vmatprep.subr.mxu0 0.0
    %1764 = vmatpush2.msra.mxu0 0.0
    %1765 = vmatprep.subr.mxu0 0.0
    %1766 = vmatpush2.msra.mxu0 0.0
    %1767 = vmatprep.subr.mxu0 0.0
    %1768 = vmatpush2.msra.mxu0 0.0
    %1769 = vmatprep.subr.mxu0 0.0
    %1770 = vmatpush2.msra.mxu0 0.0
    %1771 = vmatprep.subr.mxu0 0.0
    %1772 = vmatpush2.msra.mxu0 0.0
    %1773 = vmatprep.subr.mxu0 0.0
    %1774 = vmatpush2.msra.mxu0 0.0
    %1775 = vmatprep.subr.mxu0 0.0
    %1776 = vmatpush2.msra.mxu0 0.0
    %1777 = vmatprep.mubr.f32.mxu0 0.0
    %1778 = vmatmul.mubr.f32.gmra.mxu0 %v1608
    %v1779 = vpop.f32.mrf.mxu0
    %v1780 = vadd.f32 0.0, %v1779
    %v1781 = vpop.f32.mrf.mxu0
    %v1782 = vadd.f32 0.0, %v1781
    %1783 = vdwg.mxu0
    %v1784 = vadd.f32 %v281, %v1780
    %v1785 = vadd.f32 %v283, %v1782
    %v1786 = vxor.u32 %v1784, 2147483648
    %v1787 = vxor.u32 %v1785, 2147483648
    %v1788 = vmul.f32 %v1786, 1.442695
    %v1789 = vpow.pop %v1788
    %v1790 = vmul.f32 %v1787, 1.442695
    %v1791 = vpow.pop %v1790
    %v1792 = vadd.f32 %v1789, 1.0
    %v1793 = vadd.f32 %v1791, 1.0
    %v1794 = vrcp.pop %v1792
    %v1795 = vmul.f32 1.0, %v1794
    %v1796 = vrcp.pop %v1793
    %v1797 = vmul.f32 1.0, %v1796
    %v1798 = vtanh.pop %v1785
    %v1799 = vmul.f32 %v1795, %v1526
    %1801 = vrot.lane.b32.xlu0 %v1798, 64
    %v1802 = vpop.permute.xlu0 %1801
    %v1804 = vmul.f32 %v1795, %v1802
    %1806 = vrot.lane.b32.xlu0 %v1804, 64
    %v1807 = vpop.permute.xlu0 %1806
    %v1809 = vadd.f32 %v1799, %v1807
    %v1810 = vtanh.pop %v1809
    %1812 = vrot.lane.b32.xlu0 %v1810, 64
    %v1813 = vpop.permute.xlu0 %1812
    %v1815 = vmul.f32 %v1797, %v1813
    %v1817 = vsel %vm297, %v1712, 0
    %1819 = vmatprep.subr.mxu0 0.0
    %1820 = vmatpush1.msra.mxu0 0.0
    %1821 = vmatprep.subr.mxu0 0.0
    %1822 = vmatpush1.msra.mxu0 0.0
    %1823 = vmatprep.subr.mxu0 0.0
    %1824 = vmatpush1.msra.mxu0 0.0
    %1825 = vmatprep.subr.mxu0 0.0
    %1826 = vmatpush1.msra.mxu0 0.0
    %1827 = vmatprep.subr.mxu0 0.0
    %1828 = vmatpush1.msra.mxu0 0.0
    %1829 = vmatprep.subr.mxu0 0.0
    %1830 = vmatpush1.msra.mxu0 0.0
    %1831 = vmatprep.subr.mxu0 0.0
    %1832 = vmatpush1.msra.mxu0 0.0
    %1833 = vmatprep.subr.mxu0 0.0
    %1834 = vmatpush1.msra.mxu0 0.0
    %1835 = vmatprep.subr.mxu0 %v122
    %1836 = vmatpush1.msra.mxu0 %v121
    %1837 = vmatprep.subr.mxu0 %v120
    %1838 = vmatpush1.msra.mxu0 %v119
    %1839 = vmatprep.subr.mxu0 %v118
    %1840 = vmatpush1.msra.mxu0 %v117
    %1841 = vmatprep.subr.mxu0 %v116
    %1842 = vmatpush1.msra.mxu0 %v115
    %1843 = vmatprep.subr.mxu0 %v114
    %1844 = vmatpush1.msra.mxu0 %v113
    %1845 = vmatprep.subr.mxu0 %v112
    %1846 = vmatpush1.msra.mxu0 %v111
    %1847 = vmatprep.subr.mxu0 %v110
    %1848 = vmatpush1.msra.mxu0 %v109
    %1849 = vmatprep.subr.mxu0 %v108
    %1850 = vmatpush1.msra.mxu0 %v107
    %1851 = vmatprep.subr.mxu0 0.0
    %1852 = vmatpush2.msra.mxu0 0.0
    %1853 = vmatprep.subr.mxu0 0.0
    %1854 = vmatpush2.msra.mxu0 0.0
    %1855 = vmatprep.subr.mxu0 0.0
    %1856 = vmatpush2.msra.mxu0 0.0
    %1857 = vmatprep.subr.mxu0 0.0
    %1858 = vmatpush2.msra.mxu0 0.0
    %1859 = vmatprep.subr.mxu0 0.0
    %1860 = vmatpush2.msra.mxu0 0.0
    %1861 = vmatprep.subr.mxu0 0.0
    %1862 = vmatpush2.msra.mxu0 0.0
    %1863 = vmatprep.subr.mxu0 0.0
    %1864 = vmatpush2.msra.mxu0 0.0
    %1865 = vmatprep.subr.mxu0 0.0
    %1866 = vmatpush2.msra.mxu0 0.0
    %1867 = vmatprep.subr.mxu0 0.0
    %1868 = vmatpush2.msra.mxu0 0.0
    %1869 = vmatprep.subr.mxu0 0.0
    %1870 = vmatpush2.msra.mxu0 0.0
    %1871 = vmatprep.subr.mxu0 0.0
    %1872 = vmatpush2.msra.mxu0 0.0
    %1873 = vmatprep.subr.mxu0 0.0
    %1874 = vmatpush2.msra.mxu0 0.0
    %1875 = vmatprep.subr.mxu0 0.0
    %1876 = vmatpush2.msra.mxu0 0.0
    %1877 = vmatprep.subr.mxu0 0.0
    %1878 = vmatpush2.msra.mxu0 0.0
    %1879 = vmatprep.subr.mxu0 0.0
    %1880 = vmatpush2.msra.mxu0 0.0
    %1881 = vmatprep.subr.mxu0 0.0
    %1882 = vmatpush2.msra.mxu0 0.0
    %1883 = vmatprep.mubr.f32.mxu0 0.0
    %1884 = vmatmul.mubr.f32.gmra.mxu0 %v1817
    %v1885 = vpop.f32.mrf.mxu0
    %v1886 = vadd.f32 0.0, %v1885
    %v1887 = vpop.f32.mrf.mxu0
    %v1888 = vadd.f32 0.0, %v1887
    %1889 = vdwg.mxu0
    %v1891 = vsel %vm297, %v1815, 0
    %1893 = vmatprep.subr.mxu0 0.0
    %1894 = vmatpush1.msra.mxu0 0.0
    %1895 = vmatprep.subr.mxu0 0.0
    %1896 = vmatpush1.msra.mxu0 0.0
    %1897 = vmatprep.subr.mxu0 0.0
    %1898 = vmatpush1.msra.mxu0 0.0
    %1899 = vmatprep.subr.mxu0 0.0
    %1900 = vmatpush1.msra.mxu0 0.0
    %1901 = vmatprep.subr.mxu0 0.0
    %1902 = vmatpush1.msra.mxu0 0.0
    %1903 = vmatprep.subr.mxu0 0.0
    %1904 = vmatpush1.msra.mxu0 0.0
    %1905 = vmatprep.subr.mxu0 0.0
    %1906 = vmatpush1.msra.mxu0 0.0
    %1907 = vmatprep.subr.mxu0 0.0
    %1908 = vmatpush1.msra.mxu0 0.0
    %1909 = vmatprep.subr.mxu0 %v106
    %1910 = vmatpush1.msra.mxu0 %v105
    %1911 = vmatprep.subr.mxu0 %v104
    %1912 = vmatpush1.msra.mxu0 %v103
    %1913 = vmatprep.subr.mxu0 %v102
    %1914 = vmatpush1.msra.mxu0 %v101
    %1915 = vmatprep.subr.mxu0 %v100
    %1916 = vmatpush1.msra.mxu0 %v99
    %1917 = vmatprep.subr.mxu0 %v98
    %1918 = vmatpush1.msra.mxu0 %v97
    %1919 = vmatprep.subr.mxu0 %v96
    %1920 = vmatpush1.msra.mxu0 %v95
    %1921 = vmatprep.subr.mxu0 %v94
    %1922 = vmatpush1.msra.mxu0 %v93
    %1923 = vmatprep.subr.mxu0 %v92
    %1924 = vmatpush1.msra.mxu0 %v91
    %1925 = vmatprep.subr.mxu0 0.0
    %1926 = vmatpush2.msra.mxu0 0.0
    %1927 = vmatprep.subr.mxu0 0.0
    %1928 = vmatpush2.msra.mxu0 0.0
    %1929 = vmatprep.subr.mxu0 0.0
    %1930 = vmatpush2.msra.mxu0 0.0
    %1931 = vmatprep.subr.mxu0 0.0
    %1932 = vmatpush2.msra.mxu0 0.0
    %1933 = vmatprep.subr.mxu0 0.0
    %1934 = vmatpush2.msra.mxu0 0.0
    %1935 = vmatprep.subr.mxu0 0.0
    %1936 = vmatpush2.msra.mxu0 0.0
    %1937 = vmatprep.subr.mxu0 0.0
    %1938 = vmatpush2.msra.mxu0 0.0
    %1939 = vmatprep.subr.mxu0 0.0
    %1940 = vmatpush2.msra.mxu0 0.0
    %1941 = vmatprep.subr.mxu0 0.0
    %1942 = vmatpush2.msra.mxu0 0.0
    %1943 = vmatprep.subr.mxu0 0.0
    %1944 = vmatpush2.msra.mxu0 0.0
    %1945 = vmatprep.subr.mxu0 0.0
    %1946 = vmatpush2.msra.mxu0 0.0
    %1947 = vmatprep.subr.mxu0 0.0
    %1948 = vmatpush2.msra.mxu0 0.0
    %1949 = vmatprep.subr.mxu0 0.0
    %1950 = vmatpush2.msra.mxu0 0.0
    %1951 = vmatprep.subr.mxu0 0.0
    %1952 = vmatpush2.msra.mxu0 0.0
    %1953 = vmatprep.subr.mxu0 0.0
    %1954 = vmatpush2.msra.mxu0 0.0
    %1955 = vmatprep.subr.mxu0 0.0
    %1956 = vmatpush2.msra.mxu0 0.0
    %1957 = vmatprep.mubr.f32.mxu0 0.0
    %1958 = vmatmul.mubr.f32.gmra.mxu0 %v1891
    %v1959 = vpop.f32.mrf.mxu0
    %v1960 = vadd.f32 %v1886, %v1959
    %v1961 = vpop.f32.mrf.mxu0
    %v1962 = vadd.f32 %v1888, %v1961
    %1963 = vdwg.mxu0
    %v1964 = vadd.f32 %v1960, %v128
    %v1965 = vadd.f32 %v1962, %v132
    %v1966 = vxor.u32 %v1964, 2147483648
    %v1967 = vxor.u32 %v1965, 2147483648
    %v1968 = vmul.f32 %v1966, 1.442695
    %v1969 = vpow.pop %v1968
    %v1970 = vmul.f32 %v1967, 1.442695
    %v1971 = vpow.pop %v1970
    %v1972 = vadd.f32 %v1969, 1.0
    %v1973 = vadd.f32 %v1971, 1.0
    %v1974 = vrcp.pop %v1972
    %v1975 = vmul.f32 1.0, %v1974
    %v1976 = vrcp.pop %v1973
    %v1977 = vmul.f32 1.0, %v1976
    %v1978 = vtanh.pop %v1965
    %v1979 = vmul.f32 %v1975, %v1706
    %1981 = vrot.lane.b32.xlu0 %v1978, 64
    %v1982 = vpop.permute.xlu0 %1981
    %v1984 = vmul.f32 %v1975, %v1982
    %1986 = vrot.lane.b32.xlu0 %v1984, 64
    %v1987 = vpop.permute.xlu0 %1986
    %v1989 = vadd.f32 %v1979, %v1987
    %v1990 = vtanh.pop %v1989
    %1992 = vrot.lane.b32.xlu0 %v1990, 64
    %v1993 = vpop.permute.xlu0 %1992
    %v1995 = vmul.f32 %v1977, %v1993
    %1996 = vmatprep.subr.mxu0 0.0
    %1997 = vmatpush1.msra.mxu0 0.0
    %1998 = vmatprep.subr.mxu0 0.0
    %1999 = vmatpush1.msra.mxu0 0.0
    %2000 = vmatprep.subr.mxu0 0.0
    %2001 = vmatpush1.msra.mxu0 0.0
    %2002 = vmatprep.subr.mxu0 0.0
    %2003 = vmatpush1.msra.mxu0 0.0
    %2004 = vmatprep.subr.mxu0 0.0
    %2005 = vmatpush1.msra.mxu0 0.0
    %2006 = vmatprep.subr.mxu0 0.0
    %2007 = vmatpush1.msra.mxu0 0.0
    %2008 = vmatprep.subr.mxu0 0.0
    %2009 = vmatpush1.msra.mxu0 0.0
    %2010 = vmatprep.subr.mxu0 0.0
    %2011 = vmatpush1.msra.mxu0 0.0
    %2012 = vmatprep.subr.mxu0 %v90
    %2013 = vmatpush1.msra.mxu0 %v89
    %2014 = vmatprep.subr.mxu0 %v88
    %2015 = vmatpush1.msra.mxu0 %v87
    %2016 = vmatprep.subr.mxu0 %v86
    %2017 = vmatpush1.msra.mxu0 %v85
    %2018 = vmatprep.subr.mxu0 %v84
    %2019 = vmatpush1.msra.mxu0 %v83
    %2020 = vmatprep.subr.mxu0 %v82
    %2021 = vmatpush1.msra.mxu0 %v81
    %2022 = vmatprep.subr.mxu0 %v80
    %2023 = vmatpush1.msra.mxu0 %v79
    %2024 = vmatprep.subr.mxu0 %v78
    %2025 = vmatpush1.msra.mxu0 %v77
    %2026 = vmatprep.subr.mxu0 %v76
    %2027 = vmatpush1.msra.mxu0 %v75
    %2028 = vmatprep.subr.mxu0 0.0
    %2029 = vmatpush2.msra.mxu0 0.0
    %2030 = vmatprep.subr.mxu0 0.0
    %2031 = vmatpush2.msra.mxu0 0.0
    %2032 = vmatprep.subr.mxu0 0.0
    %2033 = vmatpush2.msra.mxu0 0.0
    %2034 = vmatprep.subr.mxu0 0.0
    %2035 = vmatpush2.msra.mxu0 0.0
    %2036 = vmatprep.subr.mxu0 0.0
    %2037 = vmatpush2.msra.mxu0 0.0
    %2038 = vmatprep.subr.mxu0 0.0
    %2039 = vmatpush2.msra.mxu0 0.0
    %2040 = vmatprep.subr.mxu0 0.0
    %2041 = vmatpush2.msra.mxu0 0.0
    %2042 = vmatprep.subr.mxu0 0.0
    %2043 = vmatpush2.msra.mxu0 0.0
    %2044 = vmatprep.subr.mxu0 0.0
    %2045 = vmatpush2.msra.mxu0 0.0
    %2046 = vmatprep.subr.mxu0 0.0
    %2047 = vmatpush2.msra.mxu0 0.0
    %2048 = vmatprep.subr.mxu0 0.0
    %2049 = vmatpush2.msra.mxu0 0.0
    %2050 = vmatprep.subr.mxu0 0.0
    %2051 = vmatpush2.msra.mxu0 0.0
    %2052 = vmatprep.subr.mxu0 0.0
    %2053 = vmatpush2.msra.mxu0 0.0
    %2054 = vmatprep.subr.mxu0 0.0
    %2055 = vmatpush2.msra.mxu0 0.0
    %2056 = vmatprep.subr.mxu0 0.0
    %2057 = vmatpush2.msra.mxu0 0.0
    %2058 = vmatprep.subr.mxu0 0.0
    %2059 = vmatpush2.msra.mxu0 0.0
    %2060 = vmatprep.mubr.f32.mxu0 0.0
    %2061 = vmatmul.mubr.f32.gmra.mxu0 %v1891
    %v2062 = vpop.f32.mrf.mxu0
    %v2063 = vadd.f32 0.0, %v2062
    %v2064 = vpop.f32.mrf.mxu0
    %v2065 = vadd.f32 0.0, %v2064
    %2066 = vdwg.mxu0
    %v2067 = vadd.f32 %v287, %v2063
    %v2068 = vadd.f32 %v289, %v2065
    %v2069 = vxor.u32 %v2067, 2147483648
    %v2070 = vxor.u32 %v2068, 2147483648
    %v2071 = vmul.f32 %v2069, 1.442695
    %v2072 = vpow.pop %v2071
    %v2073 = vmul.f32 %v2070, 1.442695
    %v2074 = vpow.pop %v2073
    %v2075 = vadd.f32 %v2072, 1.0
    %v2076 = vadd.f32 %v2074, 1.0
    %v2077 = vrcp.pop %v2075
    %v2078 = vmul.f32 1.0, %v2077
    %v2079 = vrcp.pop %v2076
    %v2080 = vmul.f32 1.0, %v2079
    %v2081 = vtanh.pop %v2068
    %v2082 = vmul.f32 %v2078, %v1809
    %2084 = vrot.lane.b32.xlu0 %v2081, 64
    %v2085 = vpop.permute.xlu0 %2084
    %v2087 = vmul.f32 %v2078, %v2085
    %2089 = vrot.lane.b32.xlu0 %v2087, 64
    %v2090 = vpop.permute.xlu0 %2089
    %v2092 = vadd.f32 %v2082, %v2090
    %v2093 = vtanh.pop %v2092
    %2095 = vrot.lane.b32.xlu0 %v2093, 64
    %v2096 = vpop.permute.xlu0 %2095
    %v2098 = vmul.f32 %v2080, %v2096
    %v2100 = vsel %vm297, %v1995, 0
    %2102 = vmatprep.subr.mxu0 0.0
    %2103 = vmatpush1.msra.mxu0 0.0
    %2104 = vmatprep.subr.mxu0 0.0
    %2105 = vmatpush1.msra.mxu0 0.0
    %2106 = vmatprep.subr.mxu0 0.0
    %2107 = vmatpush1.msra.mxu0 0.0
    %2108 = vmatprep.subr.mxu0 0.0
    %2109 = vmatpush1.msra.mxu0 0.0
    %2110 = vmatprep.subr.mxu0 0.0
    %2111 = vmatpush1.msra.mxu0 0.0
    %2112 = vmatprep.subr.mxu0 0.0
    %2113 = vmatpush1.msra.mxu0 0.0
    %2114 = vmatprep.subr.mxu0 0.0
    %2115 = vmatpush1.msra.mxu0 0.0
    %2116 = vmatprep.subr.mxu0 0.0
    %2117 = vmatpush1.msra.mxu0 0.0
    %2118 = vmatprep.subr.mxu0 %v122
    %2119 = vmatpush1.msra.mxu0 %v121
    %2120 = vmatprep.subr.mxu0 %v120
    %2121 = vmatpush1.msra.mxu0 %v119
    %2122 = vmatprep.subr.mxu0 %v118
    %2123 = vmatpush1.msra.mxu0 %v117
    %2124 = vmatprep.subr.mxu0 %v116
    %2125 = vmatpush1.msra.mxu0 %v115
    %2126 = vmatprep.subr.mxu0 %v114
    %2127 = vmatpush1.msra.mxu0 %v113
    %2128 = vmatprep.subr.mxu0 %v112
    %2129 = vmatpush1.msra.mxu0 %v111
    %2130 = vmatprep.subr.mxu0 %v110
    %2131 = vmatpush1.msra.mxu0 %v109
    %2132 = vmatprep.subr.mxu0 %v108
    %2133 = vmatpush1.msra.mxu0 %v107
    %2134 = vmatprep.subr.mxu0 0.0
    %2135 = vmatpush2.msra.mxu0 0.0
    %2136 = vmatprep.subr.mxu0 0.0
    %2137 = vmatpush2.msra.mxu0 0.0
    %2138 = vmatprep.subr.mxu0 0.0
    %2139 = vmatpush2.msra.mxu0 0.0
    %2140 = vmatprep.subr.mxu0 0.0
    %2141 = vmatpush2.msra.mxu0 0.0
    %2142 = vmatprep.subr.mxu0 0.0
    %2143 = vmatpush2.msra.mxu0 0.0
    %2144 = vmatprep.subr.mxu0 0.0
    %2145 = vmatpush2.msra.mxu0 0.0
    %2146 = vmatprep.subr.mxu0 0.0
    %2147 = vmatpush2.msra.mxu0 0.0
    %2148 = vmatprep.subr.mxu0 0.0
    %2149 = vmatpush2.msra.mxu0 0.0
    %2150 = vmatprep.subr.mxu0 0.0
    %2151 = vmatpush2.msra.mxu0 0.0
    %2152 = vmatprep.subr.mxu0 0.0
    %2153 = vmatpush2.msra.mxu0 0.0
    %2154 = vmatprep.subr.mxu0 0.0
    %2155 = vmatpush2.msra.mxu0 0.0
    %2156 = vmatprep.subr.mxu0 0.0
    %2157 = vmatpush2.msra.mxu0 0.0
    %2158 = vmatprep.subr.mxu0 0.0
    %2159 = vmatpush2.msra.mxu0 0.0
    %2160 = vmatprep.subr.mxu0 0.0
    %2161 = vmatpush2.msra.mxu0 0.0
    %2162 = vmatprep.subr.mxu0 0.0
    %2163 = vmatpush2.msra.mxu0 0.0
    %2164 = vmatprep.subr.mxu0 0.0
    %2165 = vmatpush2.msra.mxu0 0.0
    %2166 = vmatprep.mubr.f32.mxu0 0.0
    %2167 = vmatmul.mubr.f32.gmra.mxu0 %v2100
    %v2168 = vpop.f32.mrf.mxu0
    %v2169 = vadd.f32 0.0, %v2168
    %v2170 = vpop.f32.mrf.mxu0
    %v2171 = vadd.f32 0.0, %v2170
    %2172 = vdwg.mxu0
    %v2174 = vsel %vm297, %v2098, 0
    %2176 = vmatprep.subr.mxu0 0.0
    %2177 = vmatpush1.msra.mxu0 0.0
    %2178 = vmatprep.subr.mxu0 0.0
    %2179 = vmatpush1.msra.mxu0 0.0
    %2180 = vmatprep.subr.mxu0 0.0
    %2181 = vmatpush1.msra.mxu0 0.0
    %2182 = vmatprep.subr.mxu0 0.0
    %2183 = vmatpush1.msra.mxu0 0.0
    %2184 = vmatprep.subr.mxu0 0.0
    %2185 = vmatpush1.msra.mxu0 0.0
    %2186 = vmatprep.subr.mxu0 0.0
    %2187 = vmatpush1.msra.mxu0 0.0
    %2188 = vmatprep.subr.mxu0 0.0
    %2189 = vmatpush1.msra.mxu0 0.0
    %2190 = vmatprep.subr.mxu0 0.0
    %2191 = vmatpush1.msra.mxu0 0.0
    %2192 = vmatprep.subr.mxu0 %v106
    %2193 = vmatpush1.msra.mxu0 %v105
    %2194 = vmatprep.subr.mxu0 %v104
    %2195 = vmatpush1.msra.mxu0 %v103
    %2196 = vmatprep.subr.mxu0 %v102
    %2197 = vmatpush1.msra.mxu0 %v101
    %2198 = vmatprep.subr.mxu0 %v100
    %2199 = vmatpush1.msra.mxu0 %v99
    %2200 = vmatprep.subr.mxu0 %v98
    %2201 = vmatpush1.msra.mxu0 %v97
    %2202 = vmatprep.subr.mxu0 %v96
    %2203 = vmatpush1.msra.mxu0 %v95
    %2204 = vmatprep.subr.mxu0 %v94
    %2205 = vmatpush1.msra.mxu0 %v93
    %2206 = vmatprep.subr.mxu0 %v92
    %2207 = vmatpush1.msra.mxu0 %v91
    %2208 = vmatprep.subr.mxu0 0.0
    %2209 = vmatpush2.msra.mxu0 0.0
    %2210 = vmatprep.subr.mxu0 0.0
    %2211 = vmatpush2.msra.mxu0 0.0
    %2212 = vmatprep.subr.mxu0 0.0
    %2213 = vmatpush2.msra.mxu0 0.0
    %2214 = vmatprep.subr.mxu0 0.0
    %2215 = vmatpush2.msra.mxu0 0.0
    %2216 = vmatprep.subr.mxu0 0.0
    %2217 = vmatpush2.msra.mxu0 0.0
    %2218 = vmatprep.subr.mxu0 0.0
    %2219 = vmatpush2.msra.mxu0 0.0
    %2220 = vmatprep.subr.mxu0 0.0
    %2221 = vmatpush2.msra.mxu0 0.0
    %2222 = vmatprep.subr.mxu0 0.0
    %2223 = vmatpush2.msra.mxu0 0.0
    %2224 = vmatprep.subr.mxu0 0.0
    %2225 = vmatpush2.msra.mxu0 0.0
    %2226 = vmatprep.subr.mxu0 0.0
    %2227 = vmatpush2.msra.mxu0 0.0
    %2228 = vmatprep.subr.mxu0 0.0
    %2229 = vmatpush2.msra.mxu0 0.0
    %2230 = vmatprep.subr.mxu0 0.0
    %2231 = vmatpush2.msra.mxu0 0.0
    %2232 = vmatprep.subr.mxu0 0.0
    %2233 = vmatpush2.msra.mxu0 0.0
    %2234 = vmatprep.subr.mxu0 0.0
    %2235 = vmatpush2.msra.mxu0 0.0
    %2236 = vmatprep.subr.mxu0 0.0
    %2237 = vmatpush2.msra.mxu0 0.0
    %2238 = vmatprep.subr.mxu0 0.0
    %2239 = vmatpush2.msra.mxu0 0.0
    %2240 = vmatprep.mubr.f32.mxu0 0.0
    %2241 = vmatmul.mubr.f32.gmra.mxu0 %v2174
    %v2242 = vpop.f32.mrf.mxu0
    %v2243 = vadd.f32 %v2169, %v2242
    %v2244 = vpop.f32.mrf.mxu0
    %v2245 = vadd.f32 %v2171, %v2244
    %2246 = vdwg.mxu0
    %v2247 = vadd.f32 %v2243, %v128
    %v2248 = vadd.f32 %v2245, %v132
    %v2249 = vxor.u32 %v2247, 2147483648
    %v2250 = vxor.u32 %v2248, 2147483648
    %v2251 = vmul.f32 %v2249, 1.442695
    %v2252 = vpow.pop %v2251
    %v2253 = vmul.f32 %v2250, 1.442695
    %v2254 = vpow.pop %v2253
    %v2255 = vadd.f32 %v2252, 1.0
    %v2256 = vadd.f32 %v2254, 1.0
    %v2257 = vrcp.pop %v2255
    %v2258 = vmul.f32 1.0, %v2257
    %v2259 = vrcp.pop %v2256
    %v2260 = vmul.f32 1.0, %v2259
    %v2261 = vtanh.pop %v2248
    %v2262 = vmul.f32 %v2258, %v1989
    %2264 = vrot.lane.b32.xlu0 %v2261, 64
    %v2265 = vpop.permute.xlu0 %2264
    %v2267 = vmul.f32 %v2258, %v2265
    %2269 = vrot.lane.b32.xlu0 %v2267, 64
    %v2270 = vpop.permute.xlu0 %2269
    %v2272 = vadd.f32 %v2262, %v2270
    %v2273 = vtanh.pop %v2272
    %2275 = vrot.lane.b32.xlu0 %v2273, 64
    %v2276 = vpop.permute.xlu0 %2275
    %v2278 = vmul.f32 %v2260, %v2276
    %2279 = vmatprep.subr.mxu0 0.0
    %2280 = vmatpush1.msra.mxu0 0.0
    %2281 = vmatprep.subr.mxu0 0.0
    %2282 = vmatpush1.msra.mxu0 0.0
    %2283 = vmatprep.subr.mxu0 0.0
    %2284 = vmatpush1.msra.mxu0 0.0
    %2285 = vmatprep.subr.mxu0 0.0
    %2286 = vmatpush1.msra.mxu0 0.0
    %2287 = vmatprep.subr.mxu0 0.0
    %2288 = vmatpush1.msra.mxu0 0.0
    %2289 = vmatprep.subr.mxu0 0.0
    %2290 = vmatpush1.msra.mxu0 0.0
    %2291 = vmatprep.subr.mxu0 0.0
    %2292 = vmatpush1.msra.mxu0 0.0
    %2293 = vmatprep.subr.mxu0 0.0
    %2294 = vmatpush1.msra.mxu0 0.0
    %2295 = vmatprep.subr.mxu0 %v90
    %2296 = vmatpush1.msra.mxu0 %v89
    %2297 = vmatprep.subr.mxu0 %v88
    %2298 = vmatpush1.msra.mxu0 %v87
    %2299 = vmatprep.subr.mxu0 %v86
    %2300 = vmatpush1.msra.mxu0 %v85
    %2301 = vmatprep.subr.mxu0 %v84
    %2302 = vmatpush1.msra.mxu0 %v83
    %2303 = vmatprep.subr.mxu0 %v82
    %2304 = vmatpush1.msra.mxu0 %v81
    %2305 = vmatprep.subr.mxu0 %v80
    %2306 = vmatpush1.msra.mxu0 %v79
    %2307 = vmatprep.subr.mxu0 %v78
    %2308 = vmatpush1.msra.mxu0 %v77
    %2309 = vmatprep.subr.mxu0 %v76
    %2310 = vmatpush1.msra.mxu0 %v75
    %2311 = vmatprep.subr.mxu0 0.0
    %2312 = vmatpush2.msra.mxu0 0.0
    %2313 = vmatprep.subr.mxu0 0.0
    %2314 = vmatpush2.msra.mxu0 0.0
    %2315 = vmatprep.subr.mxu0 0.0
    %2316 = vmatpush2.msra.mxu0 0.0
    %2317 = vmatprep.subr.mxu0 0.0
    %2318 = vmatpush2.msra.mxu0 0.0
    %2319 = vmatprep.subr.mxu0 0.0
    %2320 = vmatpush2.msra.mxu0 0.0
    %2321 = vmatprep.subr.mxu0 0.0
    %2322 = vmatpush2.msra.mxu0 0.0
    %2323 = vmatprep.subr.mxu0 0.0
    %2324 = vmatpush2.msra.mxu0 0.0
    %2325 = vmatprep.subr.mxu0 0.0
    %2326 = vmatpush2.msra.mxu0 0.0
    %2327 = vmatprep.subr.mxu0 0.0
    %2328 = vmatpush2.msra.mxu0 0.0
    %2329 = vmatprep.subr.mxu0 0.0
    %2330 = vmatpush2.msra.mxu0 0.0
    %2331 = vmatprep.subr.mxu0 0.0
    %2332 = vmatpush2.msra.mxu0 0.0
    %2333 = vmatprep.subr.mxu0 0.0
    %2334 = vmatpush2.msra.mxu0 0.0
    %2335 = vmatprep.subr.mxu0 0.0
    %2336 = vmatpush2.msra.mxu0 0.0
    %2337 = vmatprep.subr.mxu0 0.0
    %2338 = vmatpush2.msra.mxu0 0.0
    %2339 = vmatprep.subr.mxu0 0.0
    %2340 = vmatpush2.msra.mxu0 0.0
    %2341 = vmatprep.subr.mxu0 0.0
    %2342 = vmatpush2.msra.mxu0 0.0
    %2343 = vmatprep.mubr.f32.mxu0 0.0
    %2344 = vmatmul.mubr.f32.gmra.mxu0 %v2174
    %v2345 = vpop.f32.mrf.mxu0
    %v2346 = vadd.f32 0.0, %v2345
    %v2347 = vpop.f32.mrf.mxu0
    %v2348 = vadd.f32 0.0, %v2347
    %2349 = vdwg.mxu0
    %v2350 = vadd.f32 %v293, %v2346
    %v2351 = vadd.f32 %v295, %v2348
    %v2352 = vxor.u32 %v2350, 2147483648
    %v2353 = vxor.u32 %v2351, 2147483648
    %v2354 = vmul.f32 %v2352, 1.442695
    %v2355 = vpow.pop %v2354
    %v2356 = vmul.f32 %v2353, 1.442695
    %v2357 = vpow.pop %v2356
    %v2358 = vadd.f32 %v2355, 1.0
    %v2359 = vadd.f32 %v2357, 1.0
    %v2360 = vrcp.pop %v2358
    %v2361 = vmul.f32 1.0, %v2360
    %v2362 = vrcp.pop %v2359
    %v2363 = vmul.f32 1.0, %v2362
    %v2364 = vtanh.pop %v2351
    %v2365 = vmul.f32 %v2361, %v2092
    %2367 = vrot.lane.b32.xlu0 %v2364, 64
    %v2368 = vpop.permute.xlu0 %2367
    %v2370 = vmul.f32 %v2361, %v2368
    %2372 = vrot.lane.b32.xlu0 %v2370, 64
    %v2373 = vpop.permute.xlu0 %2372
    %v2375 = vadd.f32 %v2365, %v2373
    %v2376 = vtanh.pop %v2375
    %2378 = vrot.lane.b32.xlu0 %v2376, 64
    %v2379 = vpop.permute.xlu0 %2378
    %v2381 = vmul.f32 %v2363, %v2379
    %v2383 = vsel %vm297, %v2278, 0
    %2385 = vmatprep.subr.mxu0 0.0
    %2386 = vmatpush1.msra.mxu0 0.0
    %2387 = vmatprep.subr.mxu0 0.0
    %2388 = vmatpush1.msra.mxu0 0.0
    %2389 = vmatprep.subr.mxu0 0.0
    %2390 = vmatpush1.msra.mxu0 0.0
    %2391 = vmatprep.subr.mxu0 0.0
    %2392 = vmatpush1.msra.mxu0 0.0
    %2393 = vmatprep.subr.mxu0 0.0
    %2394 = vmatpush1.msra.mxu0 0.0
    %2395 = vmatprep.subr.mxu0 0.0
    %2396 = vmatpush1.msra.mxu0 0.0
    %2397 = vmatprep.subr.mxu0 0.0
    %2398 = vmatpush1.msra.mxu0 0.0
    %2399 = vmatprep.subr.mxu0 0.0
    %2400 = vmatpush1.msra.mxu0 0.0
    %2401 = vmatprep.subr.mxu0 %v122
    %2402 = vmatpush1.msra.mxu0 %v121
    %2403 = vmatprep.subr.mxu0 %v120
    %2404 = vmatpush1.msra.mxu0 %v119
    %2405 = vmatprep.subr.mxu0 %v118
    %2406 = vmatpush1.msra.mxu0 %v117
    %2407 = vmatprep.subr.mxu0 %v116
    %2408 = vmatpush1.msra.mxu0 %v115
    %2409 = vmatprep.subr.mxu0 %v114
    %2410 = vmatpush1.msra.mxu0 %v113
    %2411 = vmatprep.subr.mxu0 %v112
    %2412 = vmatpush1.msra.mxu0 %v111
    %2413 = vmatprep.subr.mxu0 %v110
    %2414 = vmatpush1.msra.mxu0 %v109
    %2415 = vmatprep.subr.mxu0 %v108
    %2416 = vmatpush1.msra.mxu0 %v107
    %2417 = vmatprep.subr.mxu0 0.0
    %2418 = vmatpush2.msra.mxu0 0.0
    %2419 = vmatprep.subr.mxu0 0.0
    %2420 = vmatpush2.msra.mxu0 0.0
    %2421 = vmatprep.subr.mxu0 0.0
    %2422 = vmatpush2.msra.mxu0 0.0
    %2423 = vmatprep.subr.mxu0 0.0
    %2424 = vmatpush2.msra.mxu0 0.0
    %2425 = vmatprep.subr.mxu0 0.0
    %2426 = vmatpush2.msra.mxu0 0.0
    %2427 = vmatprep.subr.mxu0 0.0
    %2428 = vmatpush2.msra.mxu0 0.0
    %2429 = vmatprep.subr.mxu0 0.0
    %2430 = vmatpush2.msra.mxu0 0.0
    %2431 = vmatprep.subr.mxu0 0.0
    %2432 = vmatpush2.msra.mxu0 0.0
    %2433 = vmatprep.subr.mxu0 0.0
    %2434 = vmatpush2.msra.mxu0 0.0
    %2435 = vmatprep.subr.mxu0 0.0
    %2436 = vmatpush2.msra.mxu0 0.0
    %2437 = vmatprep.subr.mxu0 0.0
    %2438 = vmatpush2.msra.mxu0 0.0
    %2439 = vmatprep.subr.mxu0 0.0
    %2440 = vmatpush2.msra.mxu0 0.0
    %2441 = vmatprep.subr.mxu0 0.0
    %2442 = vmatpush2.msra.mxu0 0.0
    %2443 = vmatprep.subr.mxu0 0.0
    %2444 = vmatpush2.msra.mxu0 0.0
    %2445 = vmatprep.subr.mxu0 0.0
    %2446 = vmatpush2.msra.mxu0 0.0
    %2447 = vmatprep.subr.mxu0 0.0
    %2448 = vmatpush2.msra.mxu0 0.0
    %2449 = vmatprep.mubr.f32.mxu0 0.0
    %2450 = vmatmul.mubr.f32.gmra.mxu0 %v2383
    %v2451 = vpop.f32.mrf.mxu0
    %v2452 = vadd.f32 0.0, %v2451
    %v2453 = vpop.f32.mrf.mxu0
    %v2454 = vadd.f32 0.0, %v2453
    %2455 = vdwg.mxu0
    %v2457 = vsel %vm297, %v2381, 0
    %2459 = vmatprep.subr.mxu0 0.0
    %2460 = vmatpush1.msra.mxu0 0.0
    %2461 = vmatprep.subr.mxu0 0.0
    %2462 = vmatpush1.msra.mxu0 0.0
    %2463 = vmatprep.subr.mxu0 0.0
    %2464 = vmatpush1.msra.mxu0 0.0
    %2465 = vmatprep.subr.mxu0 0.0
    %2466 = vmatpush1.msra.mxu0 0.0
    %2467 = vmatprep.subr.mxu0 0.0
    %2468 = vmatpush1.msra.mxu0 0.0
    %2469 = vmatprep.subr.mxu0 0.0
    %2470 = vmatpush1.msra.mxu0 0.0
    %2471 = vmatprep.subr.mxu0 0.0
    %2472 = vmatpush1.msra.mxu0 0.0
    %2473 = vmatprep.subr.mxu0 0.0
    %2474 = vmatpush1.msra.mxu0 0.0
    %2475 = vmatprep.subr.mxu0 %v106
    %2476 = vmatpush1.msra.mxu0 %v105
    %2477 = vmatprep.subr.mxu0 %v104
    %2478 = vmatpush1.msra.mxu0 %v103
    %2479 = vmatprep.subr.mxu0 %v102
    %2480 = vmatpush1.msra.mxu0 %v101
    %2481 = vmatprep.subr.mxu0 %v100
    %2482 = vmatpush1.msra.mxu0 %v99
    %2483 = vmatprep.subr.mxu0 %v98
    %2484 = vmatpush1.msra.mxu0 %v97
    %2485 = vmatprep.subr.mxu0 %v96
    %2486 = vmatpush1.msra.mxu0 %v95
    %2487 = vmatprep.subr.mxu0 %v94
    %2488 = vmatpush1.msra.mxu0 %v93
    %2489 = vmatprep.subr.mxu0 %v92
    %2490 = vmatpush1.msra.mxu0 %v91
    %2491 = vmatprep.subr.mxu0 0.0
    %2492 = vmatpush2.msra.mxu0 0.0
    %2493 = vmatprep.subr.mxu0 0.0
    %2494 = vmatpush2.msra.mxu0 0.0
    %2495 = vmatprep.subr.mxu0 0.0
    %2496 = vmatpush2.msra.mxu0 0.0
    %2497 = vmatprep.subr.mxu0 0.0
    %2498 = vmatpush2.msra.mxu0 0.0
    %2499 = vmatprep.subr.mxu0 0.0
    %2500 = vmatpush2.msra.mxu0 0.0
    %2501 = vmatprep.subr.mxu0 0.0
    %2502 = vmatpush2.msra.mxu0 0.0
    %2503 = vmatprep.subr.mxu0 0.0
    %2504 = vmatpush2.msra.mxu0 0.0
    %2505 = vmatprep.subr.mxu0 0.0
    %2506 = vmatpush2.msra.mxu0 0.0
    %2507 = vmatprep.subr.mxu0 0.0
    %2508 = vmatpush2.msra.mxu0 0.0
    %2509 = vmatprep.subr.mxu0 0.0
    %2510 = vmatpush2.msra.mxu0 0.0
    %2511 = vmatprep.subr.mxu0 0.0
    %2512 = vmatpush2.msra.mxu0 0.0
    %2513 = vmatprep.subr.mxu0 0.0
    %2514 = vmatpush2.msra.mxu0 0.0
    %2515 = vmatprep.subr.mxu0 0.0
    %2516 = vmatpush2.msra.mxu0 0.0
    %2517 = vmatprep.subr.mxu0 0.0
    %2518 = vmatpush2.msra.mxu0 0.0
    %2519 = vmatprep.subr.mxu0 0.0
    %2520 = vmatpush2.msra.mxu0 0.0
    %2521 = vmatprep.subr.mxu0 0.0
    %2522 = vmatpush2.msra.mxu0 0.0
    %2523 = vmatprep.mubr.f32.mxu0 0.0
    %2524 = vmatmul.mubr.f32.gmra.mxu0 %v2457
    %v2525 = vpop.f32.mrf.mxu0
    %v2526 = vadd.f32 %v2452, %v2525
    %v2527 = vpop.f32.mrf.mxu0
    %v2528 = vadd.f32 %v2454, %v2527
    %2529 = vdwg.mxu0
    %v2530 = vadd.f32 %v2526, %v128
    %v2531 = vadd.f32 %v2528, %v132
    %v2532 = vxor.u32 %v2530, 2147483648
    %v2533 = vxor.u32 %v2531, 2147483648
    %v2534 = vmul.f32 %v2532, 1.442695
    %v2535 = vpow.pop %v2534
    %v2536 = vmul.f32 %v2533, 1.442695
    %v2537 = vpow.pop %v2536
    %v2538 = vadd.f32 %v2535, 1.0
    %v2539 = vadd.f32 %v2537, 1.0
    %v2540 = vrcp.pop %v2538
    %v2541 = vmul.f32 1.0, %v2540
    %v2542 = vrcp.pop %v2539
    %v2543 = vmul.f32 1.0, %v2542
    %v2544 = vtanh.pop %v2531
    %v2545 = vmul.f32 %v2541, %v2272
    %2547 = vrot.lane.b32.xlu0 %v2544, 64
    %v2548 = vpop.permute.xlu0 %2547
    %v2550 = vmul.f32 %v2541, %v2548
    %2552 = vrot.lane.b32.xlu0 %v2550, 64
    %v2553 = vpop.permute.xlu0 %2552
    %v2555 = vadd.f32 %v2545, %v2553
    %v2556 = vtanh.pop %v2555
    %2558 = vrot.lane.b32.xlu0 %v2556, 64
    %v2559 = vpop.permute.xlu0 %2558
    %v2561 = vmul.f32 %v2543, %v2559
    %v2562 = vld [vmem:[%s7] sm:$0xff]
    %v2563 = vld [vmem:[%s7 + $0x8] sm:$0xff]
    %v2564 = vld [vmem:[%s7 + $0x10] sm:$0xff]
    %v2565 = vld [vmem:[%s7 + $0x18] sm:$0xff]
    %v2566 = vld [vmem:[%s7 + $0x20] sm:$0xff]
    %v2567 = vld [vmem:[%s7 + $0x28] sm:$0xff]
    %v2568 = vld [vmem:[%s7 + $0x30] sm:$0xff]
    %v2569 = vld [vmem:[%s7 + $0x38] sm:$0xff]
    %v2570 = vld [vmem:[#allocation2] sm:$0x1]
    %v2572 = vlaneseq
    %v2573 = vshrl.u32 %v2572, 7
    %v2574 = vsub.s32 0, %v2573
    %v2575 = vrot.slane %v2570, %v2574
    %v2578 = vsel %vm297, %v2561, 0
    %2580 = vmatprep.subr.mxu0 0.0
    %2581 = vmatpush1.msra.mxu0 0.0
    %2582 = vmatprep.subr.mxu0 0.0
    %2583 = vmatpush1.msra.mxu0 0.0
    %2584 = vmatprep.subr.mxu0 0.0
    %2585 = vmatpush1.msra.mxu0 0.0
    %2586 = vmatprep.subr.mxu0 0.0
    %2587 = vmatpush1.msra.mxu0 0.0
    %2588 = vmatprep.subr.mxu0 0.0
    %2589 = vmatpush1.msra.mxu0 0.0
    %2590 = vmatprep.subr.mxu0 0.0
    %2591 = vmatpush1.msra.mxu0 0.0
    %2592 = vmatprep.subr.mxu0 0.0
    %2593 = vmatpush1.msra.mxu0 0.0
    %2594 = vmatprep.subr.mxu0 0.0
    %2595 = vmatpush1.msra.mxu0 0.0
    %2596 = vmatprep.subr.mxu0 0.0
    %2597 = vmatpush1.msra.mxu0 %v2569
    %2598 = vmatprep.subr.mxu0 0.0
    %2599 = vmatpush1.msra.mxu0 %v2568
    %2600 = vmatprep.subr.mxu0 0.0
    %2601 = vmatpush1.msra.mxu0 %v2567
    %2602 = vmatprep.subr.mxu0 0.0
    %2603 = vmatpush1.msra.mxu0 %v2566
    %2604 = vmatprep.subr.mxu0 0.0
    %2605 = vmatpush1.msra.mxu0 %v2565
    %2606 = vmatprep.subr.mxu0 0.0
    %2607 = vmatpush1.msra.mxu0 %v2564
    %2608 = vmatprep.subr.mxu0 0.0
    %2609 = vmatpush1.msra.mxu0 %v2563
    %2610 = vmatprep.subr.mxu0 0.0
    %2611 = vmatpush1.msra.mxu0 %v2562
    %2612 = vmatprep.subr.mxu0 0.0
    %2613 = vmatpush2.msra.mxu0 0.0
    %2614 = vmatprep.subr.mxu0 0.0
    %2615 = vmatpush2.msra.mxu0 0.0
    %2616 = vmatprep.subr.mxu0 0.0
    %2617 = vmatpush2.msra.mxu0 0.0
    %2618 = vmatprep.subr.mxu0 0.0
    %2619 = vmatpush2.msra.mxu0 0.0
    %2620 = vmatprep.subr.mxu0 0.0
    %2621 = vmatpush2.msra.mxu0 0.0
    %2622 = vmatprep.subr.mxu0 0.0
    %2623 = vmatpush2.msra.mxu0 0.0
    %2624 = vmatprep.subr.mxu0 0.0
    %2625 = vmatpush2.msra.mxu0 0.0
    %2626 = vmatprep.subr.mxu0 0.0
    %2627 = vmatpush2.msra.mxu0 0.0
    %2628 = vmatprep.subr.mxu0 0.0
    %2629 = vmatpush2.msra.mxu0 0.0
    %2630 = vmatprep.subr.mxu0 0.0
    %2631 = vmatpush2.msra.mxu0 0.0
    %2632 = vmatprep.subr.mxu0 0.0
    %2633 = vmatpush2.msra.mxu0 0.0
    %2634 = vmatprep.subr.mxu0 0.0
    %2635 = vmatpush2.msra.mxu0 0.0
    %2636 = vmatprep.subr.mxu0 0.0
    %2637 = vmatpush2.msra.mxu0 0.0
    %2638 = vmatprep.subr.mxu0 0.0
    %2639 = vmatpush2.msra.mxu0 0.0
    %2640 = vmatprep.subr.mxu0 0.0
    %2641 = vmatpush2.msra.mxu0 0.0
    %2642 = vmatprep.subr.mxu0 0.0
    %2643 = vmatpush2.msra.mxu0 0.0
    %2644 = vmatprep.mubr.f32.mxu0 0.0
    %2645 = vmatmul.mubr.f32.gmra.mxu0 %v2578
    %v2646 = vpop.f32.mrf.mxu0
    %v2647 = vadd.f32 %v2575, %v2646
    %v2648 = vpop.f32.mrf.mxu0
    %2649 = vdwg.mxu0
    %vm2650 = vcmask 7168
    %2651 = vst.msk [vmem:[%s9] sm:$0xff] %vm2650, %v2647
    // Predicated region
    $region50: #{tpu_custom_call.1} parent=1 // pred_check
      _
    $region51: #{tpu_custom_call.1} parent=1 // pred_check_branch
      %2653 = sbr.rel (0) target = $region53
    $region52: #{tpu_custom_call.1} parent=1 // pred_region
      _
    $region53: #{tpu_custom_call.1} parent=1 // pred_fallthru
      _
    // Predicated region
    $region54: #{tpu_custom_call.1} parent=1 // pred_check
      _
    $region55: #{tpu_custom_call.1} parent=1 // pred_check_branch
      %2655 = sbr.rel (0) target = $region57
    $region56: #{tpu_custom_call.1} parent=1 // pred_region
      _
    $region57: #{tpu_custom_call.1} parent=1 // pred_fallthru
      _
    %2656 = vsyncpa [#allocation4], 1
    %2657 = vsyncpa [#allocation6], 1

</llo_original>
